<compile_context>
chip_gen: v5e
topology: v5e:2x2
jax: 0.10.0
libtpu: 0.0.40
codegen_flags: <defaults>
</compile_context>

<pallas_src>
import numpy as np
import jax
import jax.numpy as jnp
from jax import lax
from jax.experimental import pallas as pl
from jax.experimental.pallas import tpu as pltpu


_VMEM = pl.BlockSpec(memory_space=pltpu.MemorySpace.VMEM)


def _round_up(x, m):
    return (x + m - 1) // m * m


def make_scatter(nOut):
    # Row-major lower-triangular order, matching torch.tril_indices(offset=0).
    S = np.zeros((nOut * (nOut + 1) // 2, nOut * nOut), np.float32)
    k = 0
    for i in range(nOut):
        for j in range(i + 1):
            S[k, i * nOut + j] = 1.0
            k += 1
    return jnp.asarray(S)


def _sigmoid_eup(x):
    # sigmoid(x) == 0.5 * (tanh(x/2) + 1): one EUP tanh instead of a VPU
    # exp + add + divide chain on the serial per-step path.
    return 0.5 * (jnp.tanh(0.5 * x) + 1.0)


# ----------------------------- Fused Pallas kernel --------------------------

def make_fused_kernel(nLayers, T, Bp, Hp, nOut):
    """GRU stack + linear head + tril scatter + Sigma, fully fused."""

    def kernel(*refs):
        # inputs : x2d, (wih, whh, bih_comb, bhh_n) * nLayers, wL, bL, S
        # outputs: sigma_flat (Bp, nOut*nOut), l_flat (Bp, nOut*nOut)
        # scratch: y_scr (T*Bp, Hp), gi_scr (T*Bp, 3Hp)
        x_ref = refs[0]
        p = 1
        layer_refs = []
        for _ in range(nLayers):
            layer_refs.append(refs[p:p + 4])
            p += 4
        wl_ref, bl_ref, s_ref = refs[p], refs[p + 1], refs[p + 2]
        sigma_ref, l_ref = refs[p + 3], refs[p + 4]
        y_scr, gi_scr = refs[p + 5], refs[p + 6]

        h_finals = []
        for layer in range(nLayers):
            wih_ref, whh_ref, bih_ref, bhn_ref = layer_refs[layer]
            src = x_ref[...] if layer == 0 else y_scr[...]

            # Hoisted input projection for all timesteps at once (off the
            # serial recurrence chain).  bih already carries b_hh[r], b_hh[z].
            gi_scr[...] = (jnp.dot(src, wih_ref[...],
                                   preferred_element_type=jnp.float32)
                           + bih_ref[...])

            whh = whh_ref[...]                               # (Hp, 3Hp), loop-invariant
            bhn = jnp.broadcast_to(bhn_ref[...], (Bp, Hp))   # hoisted broadcast

            h = jnp.zeros((Bp, Hp), dtype=jnp.float32)
            last = layer == nLayers - 1
            # Static unroll: T is small; for large T use lax.fori_loop(unroll=4..8).
            for t in range(T):
                gi = gi_scr[t * Bp:(t + 1) * Bp, :]          # 8-row aligned load
                gh = jnp.dot(h, whh, preferred_element_type=jnp.float32)
                r = _sigmoid_eup(gi[:, 0:Hp] + gh[:, 0:Hp])          # lane-aligned
                z = _sigmoid_eup(gi[:, Hp:2 * Hp] + gh[:, Hp:2 * Hp])
                n = jnp.tanh(gi[:, 2 * Hp:3 * Hp] + r * (gh[:, 2 * Hp:3 * Hp] + bhn))
                h = (1.0 - z) * n + z * h
                if not last:
                    # Last layer's sequence output is never read downstream.
                    y_scr[t * Bp:(t + 1) * Bp, :] = h        # aligned, unmasked store
            h_finals.append(h)

        # h.transpose(0,1).flatten(1): layer-final states concatenated (layer-major).
        hcat = (jnp.concatenate(h_finals, axis=1)
                if nLayers > 1 else h_finals[0])             # (Bp, nLayers*Hp)

        # Linear head, then scatter into row-major flattened lower triangle.
        zed = jnp.dot(hcat, wl_ref[...],
                      preferred_element_type=jnp.float32) + bl_ref[...]   # (Bp, tril)
        lflat = jnp.dot(zed, s_ref[...],
                        preferred_element_type=jnp.float32)               # (Bp, nOut*nOut)
        l_ref[...] = lflat                                   # single dense store

        # Sigma = L @ L^T + 0.001*I, from the register-resident lflat
        # (no reload of l_ref, no in-kernel 3-D reshape).
        rows_L = [lflat[:, i * nOut:(i + 1) * nOut] for i in range(nOut)]
        lane_idx = lax.broadcasted_iota(jnp.int32, (1, nOut * nOut), 1)
        sig = jnp.zeros((Bp, nOut * nOut), jnp.float32)
        for i in range(nOut):
            for k in range(i + 1):
                v = jnp.sum(rows_L[i] * rows_L[k], axis=1, keepdims=True)  # (Bp,1)
                if i == k:
                    v = v + 0.001
                    oh = (lane_idx == i * nOut + k).astype(jnp.float32)
                else:
                    oh = ((lane_idx == i * nOut + k)
                          | (lane_idx == k * nOut + i)).astype(jnp.float32)
                sig = sig + v * oh
        sigma_ref[...] = sig

    return kernel


# ------------------------------ Wrapper -------------------------------------

def gru_net_diffusion_forward(x, gru_params, w_L, b_L, nOut):
    """x: (B, T, nIn) batch-first, like the PyTorch module.
    Returns (Sigma (B, nOut, nOut), L (B, nOut, nOut))."""
    B, T, nIn = x.shape
    nLayers = len(gru_params)
    H = gru_params[0][1].shape[1]          # w_hh: (3H, H)
    Hp = _round_up(H, 128)                 # lane-aligned gate blocks
    Bp = _round_up(B, 8)                   # sublane-aligned batch tile

    # time-major, batch padded, flattened: (T*Bp, nIn)  (pure XLA glue)
    x_tm = jnp.transpose(x, (1, 0, 2)).astype(jnp.float32)
    x_tm = jnp.pad(x_tm, ((0, 0), (0, Bp - B), (0, 0)))
    x2d = x_tm.reshape(T * Bp, nIn)

    def pad_gate_cols(w_t, h, hp):
        # (rows, 3h) -> (rows, 3hp): each gate block starts at a 128-aligned lane.
        parts = [jnp.pad(w_t[:, g * h:(g + 1) * h], ((0, 0), (0, hp - h)))
                 for g in range(3)]
        return jnp.concatenate(parts, axis=1)

    inputs = [x2d]
    for layer, (w_ih, w_hh, b_ih, b_hh) in enumerate(gru_params):
        din = nIn if layer == 0 else H
        din_p = nIn if layer == 0 else Hp
        wih = pad_gate_cols(w_ih.T.astype(jnp.float32), H, Hp)          # (din, 3Hp)
        wih = jnp.pad(wih, ((0, din_p - din), (0, 0)))                  # (din_p, 3Hp)
        whh = pad_gate_cols(w_hh.T.astype(jnp.float32), H, Hp)          # (H, 3Hp)
        whh = jnp.pad(whh, ((0, Hp - H), (0, 0)))                       # (Hp, 3Hp)
        # Fold the recurrent r/z biases into the hoisted input-side bias;
        # only the n-gate recurrent bias stays in-loop (multiplied by r).
        b_comb = jnp.concatenate([
            jnp.pad(b_ih[0:H] + b_hh[0:H], (0, Hp - H)),
            jnp.pad(b_ih[H:2 * H] + b_hh[H:2 * H], (0, Hp - H)),
            jnp.pad(b_ih[2 * H:3 * H], (0, Hp - H)),
        ]).astype(jnp.float32).reshape(1, 3 * Hp)
        b_hn = jnp.pad(b_hh[2 * H:3 * H], (0, Hp - H)).astype(jnp.float32).reshape(1, Hp)
        inputs += [wih, whh, b_comb, b_hn]

    tril = nOut * (nOut + 1) // 2
    wl_t = w_L.T.astype(jnp.float32)                                    # (nLayers*H, tril)
    wl_parts = [jnp.pad(wl_t[l * H:(l + 1) * H, :], ((0, Hp - H), (0, 0)))
                for l in range(nLayers)]
    wl = jnp.concatenate(wl_parts, axis=0)                              # (nLayers*Hp, tril)
    inputs += [wl, b_L.astype(jnp.float32).reshape(1, tril), make_scatter(nOut)]

    kernel = make_fused_kernel(nLayers, T, Bp, Hp, nOut)
    sigma_flat, l_flat = pl.pallas_call(
        kernel,
        out_shape=(jax.ShapeDtypeStruct((Bp, nOut * nOut), jnp.float32),
                   jax.ShapeDtypeStruct((Bp, nOut * nOut), jnp.float32)),
        in_specs=[_VMEM] * len(inputs),
        out_specs=(_VMEM, _VMEM),
        scratch_shapes=[pltpu.VMEM((T * Bp, Hp), jnp.float32),      # inter-layer seq
                        pltpu.VMEM((T * Bp, 3 * Hp), jnp.float32)], # hoisted projection
        compiler_params=pltpu.CompilerParams(vmem_limit_bytes=32 * 1024 * 1024),
    )(*inputs)

    # Drop batch padding; the (B, nOut, nOut) reshape is wrapper-side XLA glue.
    Sigma = sigma_flat[:B].reshape(B, nOut, nOut)
    L = l_flat[:B].reshape(B, nOut, nOut)
    return Sigma, L


# --------------------------- Parameter init ---------------------------------

def init_params(key, nIn, nHidden, nLayers, nOut):
    bound = 1.0 / np.sqrt(nHidden)
    keys = jax.random.split(key, 4 * nLayers + 1)
    gru_params = []
    for layer in range(nLayers):
        din = nIn if layer == 0 else nHidden
        k0, k1, k2, k3 = keys[4 * layer:4 * layer + 4]
        w_ih = jax.random.uniform(k0, (3 * nHidden, din), jnp.float32, -bound, bound)
        w_hh = jax.random.uniform(k1, (3 * nHidden, nHidden), jnp.float32, -bound, bound)
        b_ih = jax.random.uniform(k2, (3 * nHidden,), jnp.float32, -bound, bound)
        b_hh = jax.random.uniform(k3, (3 * nHidden,), jnp.float32, -bound, bound)
        gru_params.append((w_ih, w_hh, b_ih, b_hh))
    tril = nOut * (nOut + 1) // 2
    # prop_gru_to_L: weight ~ U(-0.01, 0.01), bias = 0.001
    w_L = jax.random.uniform(keys[-1], (tril, nHidden * nLayers), jnp.float32, -0.01, 0.01)
    b_L = jnp.full((tril,), 0.001, jnp.float32)
    return gru_params, w_L, b_L


# --------------------------- Pure-numpy reference ---------------------------

def reference_forward(x, gru_params, w_L, b_L, nOut):
    x = np.asarray(x, np.float64)
    B, T, _ = x.shape
    h_finals = []
    cur = x
    for (w_ih, w_hh, b_ih, b_hh) in gru_params:
        w_ih = np.asarray(w_ih, np.float64); w_hh = np.asarray(w_hh, np.float64)
        b_ih = np.asarray(b_ih, np.float64); b_hh = np.asarray(b_hh, np.float64)
        H = w_hh.shape[1]
        h = np.zeros((B, H), np.float64)
        outs = []
        for t in range(T):
            gi = cur[:, t, :] @ w_ih.T + b_ih
            gh = h @ w_hh.T + b_hh
            r = 1.0 / (1.0 + np.exp(-(gi[:, :H] + gh[:, :H])))
            z = 1.0 / (1.0 + np.exp(-(gi[:, H:2 * H] + gh[:, H:2 * H])))
            n = np.tanh(gi[:, 2 * H:] + r * gh[:, 2 * H:])
            h = (1.0 - z) * n + z * h
            outs.append(h)
        cur = np.stack(outs, axis=1)
        h_finals.append(h)
    hcat = np.concatenate(h_finals, axis=1)
    vals = hcat @ np.asarray(w_L, np.float64).T + np.asarray(b_L, np.float64)
    L = np.zeros((B, nOut, nOut))
    k = 0
    for i in range(nOut):
        for j in range(i + 1):
            L[:, i, j] = vals[:, k]
            k += 1
    return L @ np.transpose(L, (0, 2, 1)) + 0.001 * np.eye(nOut)


# --------------------------------- Main -------------------------------------

if __name__ == "__main__":
    nIn, nHidden, nLayers, nOut = 4, 32, 2, 4
    B, T = 2, 8

    key = jax.random.PRNGKey(0)
    key_x, key_p = jax.random.split(key)
    x = jax.random.normal(key_x, (B, T, nIn), dtype=jnp.float32)
    gru_params, w_L, b_L = init_params(key_p, nIn, nHidden, nLayers, nOut)

    fwd = jax.jit(gru_net_diffusion_forward, static_argnums=(4,))
    Sigma, L = fwd(x, gru_params, w_L, b_L, nOut)
    Sigma = jax.block_until_ready(Sigma)

    Sigma_ref = reference_forward(x, gru_params, w_L, b_L, nOut)
    assert Sigma.shape == (B, nOut, nOut)
    assert L.shape == (B, nOut, nOut)
    np.testing.assert_allclose(np.asarray(Sigma), Sigma_ref, rtol=1e-4, atol=1e-5)

    print("KERNEL_OK")
</pallas_src>

<mosaic_0001>
module attributes {stable_mosaic.version = 11 : i64} {
  func.func @kernel(%arg0: memref<64x4xf32, #tpu.memory_space<vmem>>, %arg1: memref<4x384xf32, #tpu.memory_space<vmem>>, %arg2: memref<128x384xf32, #tpu.memory_space<vmem>>, %arg3: memref<1x384xf32, #tpu.memory_space<vmem>>, %arg4: memref<1x128xf32, #tpu.memory_space<vmem>>, %arg5: memref<128x384xf32, #tpu.memory_space<vmem>>, %arg6: memref<128x384xf32, #tpu.memory_space<vmem>>, %arg7: memref<1x384xf32, #tpu.memory_space<vmem>>, %arg8: memref<1x128xf32, #tpu.memory_space<vmem>>, %arg9: memref<256x10xf32, #tpu.memory_space<vmem>>, %arg10: memref<1x10xf32, #tpu.memory_space<vmem>>, %arg11: memref<10x16xf32, #tpu.memory_space<vmem>>, %arg12: memref<8x16xf32, #tpu.memory_space<vmem>>, %arg13: memref<8x16xf32, #tpu.memory_space<vmem>>, %arg14: memref<64x128xf32, #tpu.memory_space<vmem>>, %arg15: memref<64x384xf32, #tpu.memory_space<vmem>>) attributes {dimension_semantics = [], scalar_prefetch = 0 : i64, scratch_operands = 2 : i64, tpu.core_type = #tpu.core_type<tc>} {
    %c0 = arith.constant 0 : index
    %c0_0 = arith.constant 0 : index
    %0 = vector.load %arg0[%c0, %c0_0] : memref<64x4xf32, #tpu.memory_space<vmem>>, vector<64x4xf32>
    %c0_1 = arith.constant 0 : index
    %c0_2 = arith.constant 0 : index
    %1 = vector.load %arg1[%c0_1, %c0_2] : memref<4x384xf32, #tpu.memory_space<vmem>>, vector<4x384xf32>
    %cst = arith.constant dense<0.000000e+00> : vector<64x384xf32>
    %2 = tpu.matmul %0, %1, %cst {dimension_numbers = #tpu.dot_dimension_numbers<[1], [0], [0], [1], [0, 0, 1, 1], [], []>} : vector<64x4xf32>, vector<4x384xf32>, vector<64x384xf32> -> vector<64x384xf32>
    %c0_3 = arith.constant 0 : index
    %c0_4 = arith.constant 0 : index
    %3 = vector.load %arg3[%c0_3, %c0_4] : memref<1x384xf32, #tpu.memory_space<vmem>>, vector<1x384xf32>
    %4 = vector.broadcast %3 : vector<1x384xf32> to vector<64x384xf32>
    %5 = arith.addf %2, %4 : vector<64x384xf32>
    %c0_5 = arith.constant 0 : index
    %c0_6 = arith.constant 0 : index
    %6 = vector.load %arg15[%c0_5, %c0_6] : memref<64x384xf32, #tpu.memory_space<vmem>>, vector<64x384xf32>
    tpu.vector_store %arg15[%c0_5, %c0_6], %5 {strides = array<i32>} : memref<64x384xf32, #tpu.memory_space<vmem>>, vector<64x384xf32>,
    %c0_7 = arith.constant 0 : index
    %c0_8 = arith.constant 0 : index
    %7 = vector.load %arg2[%c0_7, %c0_8] : memref<128x384xf32, #tpu.memory_space<vmem>>, vector<128x384xf32>
    %c0_9 = arith.constant 0 : index
    %c0_10 = arith.constant 0 : index
    %8 = vector.load %arg4[%c0_9, %c0_10] : memref<1x128xf32, #tpu.memory_space<vmem>>, vector<1x128xf32>
    %9 = vector.shape_cast %8 : vector<1x128xf32> to vector<1x128xf32>
    %10 = vector.broadcast %9 : vector<1x128xf32> to vector<8x128xf32>
    %cst_11 = arith.constant 0.000000e+00 : f32
    %11 = vector.broadcast %cst_11 : f32 to vector<8x128xf32>
    %c0_12 = arith.constant 0 : index
    %c0_13 = arith.constant 0 : index
    %12 = vector.load %arg15[%c0_12, %c0_13] : memref<64x384xf32, #tpu.memory_space<vmem>>, vector<8x384xf32>
    %cst_14 = arith.constant dense<0.000000e+00> : vector<8x384xf32>
    %13 = tpu.matmul %11, %7, %cst_14 {dimension_numbers = #tpu.dot_dimension_numbers<[1], [0], [0], [1], [0, 0, 1, 1], [], []>} : vector<8x128xf32>, vector<128x384xf32>, vector<8x384xf32> -> vector<8x384xf32>
    %14 = vector.extract_strided_slice %12 {offsets = [0, 0], sizes = [8, 128], strides = [1, 1]} : vector<8x384xf32> to vector<8x128xf32>
    %15 = vector.extract_strided_slice %13 {offsets = [0, 0], sizes = [8, 128], strides = [1, 1]} : vector<8x384xf32> to vector<8x128xf32>
    %16 = arith.addf %14, %15 : vector<8x128xf32>
    %cst_15 = arith.constant 5.000000e-01 : f32
    %17 = vector.broadcast %cst_15 : f32 to vector<8x128xf32>
    %18 = arith.mulf %17, %16 : vector<8x128xf32>
    %19 = math.tanh %18 : vector<8x128xf32>
    %cst_16 = arith.constant 1.000000e+00 : f32
    %20 = vector.broadcast %cst_16 : f32 to vector<8x128xf32>
    %21 = arith.addf %19, %20 : vector<8x128xf32>
    %cst_17 = arith.constant 5.000000e-01 : f32
    %22 = vector.broadcast %cst_17 : f32 to vector<8x128xf32>
    %23 = arith.mulf %22, %21 : vector<8x128xf32>
    %24 = vector.extract_strided_slice %12 {offsets = [0, 128], sizes = [8, 128], strides = [1, 1]} : vector<8x384xf32> to vector<8x128xf32>
    %25 = vector.extract_strided_slice %13 {offsets = [0, 128], sizes = [8, 128], strides = [1, 1]} : vector<8x384xf32> to vector<8x128xf32>
    %26 = arith.addf %24, %25 : vector<8x128xf32>
    %cst_18 = arith.constant 5.000000e-01 : f32
    %27 = vector.broadcast %cst_18 : f32 to vector<8x128xf32>
    %28 = arith.mulf %27, %26 : vector<8x128xf32>
    %29 = math.tanh %28 : vector<8x128xf32>
    %cst_19 = arith.constant 1.000000e+00 : f32
    %30 = vector.broadcast %cst_19 : f32 to vector<8x128xf32>
    %31 = arith.addf %29, %30 : vector<8x128xf32>
    %cst_20 = arith.constant 5.000000e-01 : f32
    %32 = vector.broadcast %cst_20 : f32 to vector<8x128xf32>
    %33 = arith.mulf %32, %31 : vector<8x128xf32>
    %34 = vector.extract_strided_slice %12 {offsets = [0, 256], sizes = [8, 128], strides = [1, 1]} : vector<8x384xf32> to vector<8x128xf32>
    %35 = vector.extract_strided_slice %13 {offsets = [0, 256], sizes = [8, 128], strides = [1, 1]} : vector<8x384xf32> to vector<8x128xf32>
    %36 = arith.addf %35, %10 : vector<8x128xf32>
    %37 = arith.mulf %23, %36 : vector<8x128xf32>
    %38 = arith.addf %34, %37 : vector<8x128xf32>
    %39 = math.tanh %38 : vector<8x128xf32>
    %cst_21 = arith.constant 1.000000e+00 : f32
    %40 = vector.broadcast %cst_21 : f32 to vector<8x128xf32>
    %41 = arith.subf %40, %33 : vector<8x128xf32>
    %42 = arith.mulf %41, %39 : vector<8x128xf32>
    %43 = arith.mulf %33, %11 : vector<8x128xf32>
    %44 = arith.addf %42, %43 : vector<8x128xf32>
    %c0_22 = arith.constant 0 : index
    %c0_23 = arith.constant 0 : index
    %45 = vector.load %arg14[%c0_22, %c0_23] : memref<64x128xf32, #tpu.memory_space<vmem>>, vector<8x128xf32>
    tpu.vector_store %arg14[%c0_22, %c0_23], %44 {strides = array<i32>} : memref<64x128xf32, #tpu.memory_space<vmem>>, vector<8x128xf32>,
    %c8 = arith.constant 8 : index
    %c0_24 = arith.constant 0 : index
    %46 = vector.load %arg15[%c8, %c0_24] : memref<64x384xf32, #tpu.memory_space<vmem>>, vector<8x384xf32>
    %cst_25 = arith.constant dense<0.000000e+00> : vector<8x384xf32>
    %47 = tpu.matmul %44, %7, %cst_25 {dimension_numbers = #tpu.dot_dimension_numbers<[1], [0], [0], [1], [0, 0, 1, 1], [], []>} : vector<8x128xf32>, vector<128x384xf32>, vector<8x384xf32> -> vector<8x384xf32>
    %48 = vector.extract_strided_slice %46 {offsets = [0, 0], sizes = [8, 128], strides = [1, 1]} : vector<8x384xf32> to vector<8x128xf32>
    %49 = vector.extract_strided_slice %47 {offsets = [0, 0], sizes = [8, 128], strides = [1, 1]} : vector<8x384xf32> to vector<8x128xf32>
    %50 = arith.addf %48, %49 : vector<8x128xf32>
    %cst_26 = arith.constant 5.000000e-01 : f32
    %51 = vector.broadcast %cst_26 : f32 to vector<8x128xf32>
    %52 = arith.mulf %51, %50 : vector<8x128xf32>
    %53 = math.tanh %52 : vector<8x128xf32>
    %cst_27 = arith.constant 1.000000e+00 : f32
    %54 = vector.broadcast %cst_27 : f32 to vector<8x128xf32>
    %55 = arith.addf %53, %54 : vector<8x128xf32>
    %cst_28 = arith.constant 5.000000e-01 : f32
    %56 = vector.broadcast %cst_28 : f32 to vector<8x128xf32>
    %57 = arith.mulf %56, %55 : vector<8x128xf32>
    %58 = vector.extract_strided_slice %46 {offsets = [0, 128], sizes = [8, 128], strides = [1, 1]} : vector<8x384xf32> to vector<8x128xf32>
    %59 = vector.extract_strided_slice %47 {offsets = [0, 128], sizes = [8, 128], strides = [1, 1]} : vector<8x384xf32> to vector<8x128xf32>
    %60 = arith.addf %58, %59 : vector<8x128xf32>
    %cst_29 = arith.constant 5.000000e-01 : f32
    %61 = vector.broadcast %cst_29 : f32 to vector<8x128xf32>
    %62 = arith.mulf %61, %60 : vector<8x128xf32>
    %63 = math.tanh %62 : vector<8x128xf32>
    %cst_30 = arith.constant 1.000000e+00 : f32
    %64 = vector.broadcast %cst_30 : f32 to vector<8x128xf32>
    %65 = arith.addf %63, %64 : vector<8x128xf32>
    %cst_31 = arith.constant 5.000000e-01 : f32
    %66 = vector.broadcast %cst_31 : f32 to vector<8x128xf32>
    %67 = arith.mulf %66, %65 : vector<8x128xf32>
    %68 = vector.extract_strided_slice %46 {offsets = [0, 256], sizes = [8, 128], strides = [1, 1]} : vector<8x384xf32> to vector<8x128xf32>
    %69 = vector.extract_strided_slice %47 {offsets = [0, 256], sizes = [8, 128], strides = [1, 1]} : vector<8x384xf32> to vector<8x128xf32>
    %70 = arith.addf %69, %10 : vector<8x128xf32>
    %71 = arith.mulf %57, %70 : vector<8x128xf32>
    %72 = arith.addf %68, %71 : vector<8x128xf32>
    %73 = math.tanh %72 : vector<8x128xf32>
    %cst_32 = arith.constant 1.000000e+00 : f32
    %74 = vector.broadcast %cst_32 : f32 to vector<8x128xf32>
    %75 = arith.subf %74, %67 : vector<8x128xf32>
    %76 = arith.mulf %75, %73 : vector<8x128xf32>
    %77 = arith.mulf %67, %44 : vector<8x128xf32>
    %78 = arith.addf %76, %77 : vector<8x128xf32>
    %c8_33 = arith.constant 8 : index
    %c0_34 = arith.constant 0 : index
    %79 = vector.load %arg14[%c8_33, %c0_34] : memref<64x128xf32, #tpu.memory_space<vmem>>, vector<8x128xf32>
    tpu.vector_store %arg14[%c8_33, %c0_34], %78 {strides = array<i32>} : memref<64x128xf32, #tpu.memory_space<vmem>>, vector<8x128xf32>,
    %c16 = arith.constant 16 : index
    %c0_35 = arith.constant 0 : index
    %80 = vector.load %arg15[%c16, %c0_35] : memref<64x384xf32, #tpu.memory_space<vmem>>, vector<8x384xf32>
    %cst_36 = arith.constant dense<0.000000e+00> : vector<8x384xf32>
    %81 = tpu.matmul %78, %7, %cst_36 {dimension_numbers = #tpu.dot_dimension_numbers<[1], [0], [0], [1], [0, 0, 1, 1], [], []>} : vector<8x128xf32>, vector<128x384xf32>, vector<8x384xf32> -> vector<8x384xf32>
    %82 = vector.extract_strided_slice %80 {offsets = [0, 0], sizes = [8, 128], strides = [1, 1]} : vector<8x384xf32> to vector<8x128xf32>
    %83 = vector.extract_strided_slice %81 {offsets = [0, 0], sizes = [8, 128], strides = [1, 1]} : vector<8x384xf32> to vector<8x128xf32>
    %84 = arith.addf %82, %83 : vector<8x128xf32>
    %cst_37 = arith.constant 5.000000e-01 : f32
    %85 = vector.broadcast %cst_37 : f32 to vector<8x128xf32>
    %86 = arith.mulf %85, %84 : vector<8x128xf32>
    %87 = math.tanh %86 : vector<8x128xf32>
    %cst_38 = arith.constant 1.000000e+00 : f32
    %88 = vector.broadcast %cst_38 : f32 to vector<8x128xf32>
    %89 = arith.addf %87, %88 : vector<8x128xf32>
    %cst_39 = arith.constant 5.000000e-01 : f32
    %90 = vector.broadcast %cst_39 : f32 to vector<8x128xf32>
    %91 = arith.mulf %90, %89 : vector<8x128xf32>
    %92 = vector.extract_strided_slice %80 {offsets = [0, 128], sizes = [8, 128], strides = [1, 1]} : vector<8x384xf32> to vector<8x128xf32>
    %93 = vector.extract_strided_slice %81 {offsets = [0, 128], sizes = [8, 128], strides = [1, 1]} : vector<8x384xf32> to vector<8x128xf32>
    %94 = arith.addf %92, %93 : vector<8x128xf32>
    %cst_40 = arith.constant 5.000000e-01 : f32
    %95 = vector.broadcast %cst_40 : f32 to vector<8x128xf32>
    %96 = arith.mulf %95, %94 : vector<8x128xf32>
    %97 = math.tanh %96 : vector<8x128xf32>
    %cst_41 = arith.constant 1.000000e+00 : f32
    %98 = vector.broadcast %cst_41 : f32 to vector<8x128xf32>
    %99 = arith.addf %97, %98 : vector<8x128xf32>
    %cst_42 = arith.constant 5.000000e-01 : f32
    %100 = vector.broadcast %cst_42 : f32 to vector<8x128xf32>
    %101 = arith.mulf %100, %99 : vector<8x128xf32>
    %102 = vector.extract_strided_slice %80 {offsets = [0, 256], sizes = [8, 128], strides = [1, 1]} : vector<8x384xf32> to vector<8x128xf32>
    %103 = vector.extract_strided_slice %81 {offsets = [0, 256], sizes = [8, 128], strides = [1, 1]} : vector<8x384xf32> to vector<8x128xf32>
    %104 = arith.addf %103, %10 : vector<8x128xf32>
    %105 = arith.mulf %91, %104 : vector<8x128xf32>
    %106 = arith.addf %102, %105 : vector<8x128xf32>
    %107 = math.tanh %106 : vector<8x128xf32>
    %cst_43 = arith.constant 1.000000e+00 : f32
    %108 = vector.broadcast %cst_43 : f32 to vector<8x128xf32>
    %109 = arith.subf %108, %101 : vector<8x128xf32>
    %110 = arith.mulf %109, %107 : vector<8x128xf32>
    %111 = arith.mulf %101, %78 : vector<8x128xf32>
    %112 = arith.addf %110, %111 : vector<8x128xf32>
    %c16_44 = arith.constant 16 : index
    %c0_45 = arith.constant 0 : index
    %113 = vector.load %arg14[%c16_44, %c0_45] : memref<64x128xf32, #tpu.memory_space<vmem>>, vector<8x128xf32>
    tpu.vector_store %arg14[%c16_44, %c0_45], %112 {strides = array<i32>} : memref<64x128xf32, #tpu.memory_space<vmem>>, vector<8x128xf32>,
    %c24 = arith.constant 24 : index
    %c0_46 = arith.constant 0 : index
    %114 = vector.load %arg15[%c24, %c0_46] : memref<64x384xf32, #tpu.memory_space<vmem>>, vector<8x384xf32>
    %cst_47 = arith.constant dense<0.000000e+00> : vector<8x384xf32>
    %115 = tpu.matmul %112, %7, %cst_47 {dimension_numbers = #tpu.dot_dimension_numbers<[1], [0], [0], [1], [0, 0, 1, 1], [], []>} : vector<8x128xf32>, vector<128x384xf32>, vector<8x384xf32> -> vector<8x384xf32>
    %116 = vector.extract_strided_slice %114 {offsets = [0, 0], sizes = [8, 128], strides = [1, 1]} : vector<8x384xf32> to vector<8x128xf32>
    %117 = vector.extract_strided_slice %115 {offsets = [0, 0], sizes = [8, 128], strides = [1, 1]} : vector<8x384xf32> to vector<8x128xf32>
    %118 = arith.addf %116, %117 : vector<8x128xf32>
    %cst_48 = arith.constant 5.000000e-01 : f32
    %119 = vector.broadcast %cst_48 : f32 to vector<8x128xf32>
    %120 = arith.mulf %119, %118 : vector<8x128xf32>
    %121 = math.tanh %120 : vector<8x128xf32>
    %cst_49 = arith.constant 1.000000e+00 : f32
    %122 = vector.broadcast %cst_49 : f32 to vector<8x128xf32>
    %123 = arith.addf %121, %122 : vector<8x128xf32>
    %cst_50 = arith.constant 5.000000e-01 : f32
    %124 = vector.broadcast %cst_50 : f32 to vector<8x128xf32>
    %125 = arith.mulf %124, %123 : vector<8x128xf32>
    %126 = vector.extract_strided_slice %114 {offsets = [0, 128], sizes = [8, 128], strides = [1, 1]} : vector<8x384xf32> to vector<8x128xf32>
    %127 = vector.extract_strided_slice %115 {offsets = [0, 128], sizes = [8, 128], strides = [1, 1]} : vector<8x384xf32> to vector<8x128xf32>
    %128 = arith.addf %126, %127 : vector<8x128xf32>
    %cst_51 = arith.constant 5.000000e-01 : f32
    %129 = vector.broadcast %cst_51 : f32 to vector<8x128xf32>
    %130 = arith.mulf %129, %128 : vector<8x128xf32>
    %131 = math.tanh %130 : vector<8x128xf32>
    %cst_52 = arith.constant 1.000000e+00 : f32
    %132 = vector.broadcast %cst_52 : f32 to vector<8x128xf32>
    %133 = arith.addf %131, %132 : vector<8x128xf32>
    %cst_53 = arith.constant 5.000000e-01 : f32
    %134 = vector.broadcast %cst_53 : f32 to vector<8x128xf32>
    %135 = arith.mulf %134, %133 : vector<8x128xf32>
    %136 = vector.extract_strided_slice %114 {offsets = [0, 256], sizes = [8, 128], strides = [1, 1]} : vector<8x384xf32> to vector<8x128xf32>
    %137 = vector.extract_strided_slice %115 {offsets = [0, 256], sizes = [8, 128], strides = [1, 1]} : vector<8x384xf32> to vector<8x128xf32>
    %138 = arith.addf %137, %10 : vector<8x128xf32>
    %139 = arith.mulf %125, %138 : vector<8x128xf32>
    %140 = arith.addf %136, %139 : vector<8x128xf32>
    %141 = math.tanh %140 : vector<8x128xf32>
    %cst_54 = arith.constant 1.000000e+00 : f32
    %142 = vector.broadcast %cst_54 : f32 to vector<8x128xf32>
    %143 = arith.subf %142, %135 : vector<8x128xf32>
    %144 = arith.mulf %143, %141 : vector<8x128xf32>
    %145 = arith.mulf %135, %112 : vector<8x128xf32>
    %146 = arith.addf %144, %145 : vector<8x128xf32>
    %c24_55 = arith.constant 24 : index
    %c0_56 = arith.constant 0 : index
    %147 = vector.load %arg14[%c24_55, %c0_56] : memref<64x128xf32, #tpu.memory_space<vmem>>, vector<8x128xf32>
    tpu.vector_store %arg14[%c24_55, %c0_56], %146 {strides = array<i32>} : memref<64x128xf32, #tpu.memory_space<vmem>>, vector<8x128xf32>,
    %c32 = arith.constant 32 : index
    %c0_57 = arith.constant 0 : index
    %148 = vector.load %arg15[%c32, %c0_57] : memref<64x384xf32, #tpu.memory_space<vmem>>, vector<8x384xf32>
    %cst_58 = arith.constant dense<0.000000e+00> : vector<8x384xf32>
    %149 = tpu.matmul %146, %7, %cst_58 {dimension_numbers = #tpu.dot_dimension_numbers<[1], [0], [0], [1], [0, 0, 1, 1], [], []>} : vector<8x128xf32>, vector<128x384xf32>, vector<8x384xf32> -> vector<8x384xf32>
    %150 = vector.extract_strided_slice %148 {offsets = [0, 0], sizes = [8, 128], strides = [1, 1]} : vector<8x384xf32> to vector<8x128xf32>
    %151 = vector.extract_strided_slice %149 {offsets = [0, 0], sizes = [8, 128], strides = [1, 1]} : vector<8x384xf32> to vector<8x128xf32>
    %152 = arith.addf %150, %151 : vector<8x128xf32>
    %cst_59 = arith.constant 5.000000e-01 : f32
    %153 = vector.broadcast %cst_59 : f32 to vector<8x128xf32>
    %154 = arith.mulf %153, %152 : vector<8x128xf32>
    %155 = math.tanh %154 : vector<8x128xf32>
    %cst_60 = arith.constant 1.000000e+00 : f32
    %156 = vector.broadcast %cst_60 : f32 to vector<8x128xf32>
    %157 = arith.addf %155, %156 : vector<8x128xf32>
    %cst_61 = arith.constant 5.000000e-01 : f32
    %158 = vector.broadcast %cst_61 : f32 to vector<8x128xf32>
    %159 = arith.mulf %158, %157 : vector<8x128xf32>
    %160 = vector.extract_strided_slice %148 {offsets = [0, 128], sizes = [8, 128], strides = [1, 1]} : vector<8x384xf32> to vector<8x128xf32>
    %161 = vector.extract_strided_slice %149 {offsets = [0, 128], sizes = [8, 128], strides = [1, 1]} : vector<8x384xf32> to vector<8x128xf32>
    %162 = arith.addf %160, %161 : vector<8x128xf32>
    %cst_62 = arith.constant 5.000000e-01 : f32
    %163 = vector.broadcast %cst_62 : f32 to vector<8x128xf32>
    %164 = arith.mulf %163, %162 : vector<8x128xf32>
    %165 = math.tanh %164 : vector<8x128xf32>
    %cst_63 = arith.constant 1.000000e+00 : f32
    %166 = vector.broadcast %cst_63 : f32 to vector<8x128xf32>
    %167 = arith.addf %165, %166 : vector<8x128xf32>
    %cst_64 = arith.constant 5.000000e-01 : f32
    %168 = vector.broadcast %cst_64 : f32 to vector<8x128xf32>
    %169 = arith.mulf %168, %167 : vector<8x128xf32>
    %170 = vector.extract_strided_slice %148 {offsets = [0, 256], sizes = [8, 128], strides = [1, 1]} : vector<8x384xf32> to vector<8x128xf32>
    %171 = vector.extract_strided_slice %149 {offsets = [0, 256], sizes = [8, 128], strides = [1, 1]} : vector<8x384xf32> to vector<8x128xf32>
    %172 = arith.addf %171, %10 : vector<8x128xf32>
    %173 = arith.mulf %159, %172 : vector<8x128xf32>
    %174 = arith.addf %170, %173 : vector<8x128xf32>
    %175 = math.tanh %174 : vector<8x128xf32>
    %cst_65 = arith.constant 1.000000e+00 : f32
    %176 = vector.broadcast %cst_65 : f32 to vector<8x128xf32>
    %177 = arith.subf %176, %169 : vector<8x128xf32>
    %178 = arith.mulf %177, %175 : vector<8x128xf32>
    %179 = arith.mulf %169, %146 : vector<8x128xf32>
    %180 = arith.addf %178, %179 : vector<8x128xf32>
    %c32_66 = arith.constant 32 : index
    %c0_67 = arith.constant 0 : index
    %181 = vector.load %arg14[%c32_66, %c0_67] : memref<64x128xf32, #tpu.memory_space<vmem>>, vector<8x128xf32>
    tpu.vector_store %arg14[%c32_66, %c0_67], %180 {strides = array<i32>} : memref<64x128xf32, #tpu.memory_space<vmem>>, vector<8x128xf32>,
    %c40 = arith.constant 40 : index
    %c0_68 = arith.constant 0 : index
    %182 = vector.load %arg15[%c40, %c0_68] : memref<64x384xf32, #tpu.memory_space<vmem>>, vector<8x384xf32>
    %cst_69 = arith.constant dense<0.000000e+00> : vector<8x384xf32>
    %183 = tpu.matmul %180, %7, %cst_69 {dimension_numbers = #tpu.dot_dimension_numbers<[1], [0], [0], [1], [0, 0, 1, 1], [], []>} : vector<8x128xf32>, vector<128x384xf32>, vector<8x384xf32> -> vector<8x384xf32>
    %184 = vector.extract_strided_slice %182 {offsets = [0, 0], sizes = [8, 128], strides = [1, 1]} : vector<8x384xf32> to vector<8x128xf32>
    %185 = vector.extract_strided_slice %183 {offsets = [0, 0], sizes = [8, 128], strides = [1, 1]} : vector<8x384xf32> to vector<8x128xf32>
    %186 = arith.addf %184, %185 : vector<8x128xf32>
    %cst_70 = arith.constant 5.000000e-01 : f32
    %187 = vector.broadcast %cst_70 : f32 to vector<8x128xf32>
    %188 = arith.mulf %187, %186 : vector<8x128xf32>
    %189 = math.tanh %188 : vector<8x128xf32>
    %cst_71 = arith.constant 1.000000e+00 : f32
    %190 = vector.broadcast %cst_71 : f32 to vector<8x128xf32>
    %191 = arith.addf %189, %190 : vector<8x128xf32>
    %cst_72 = arith.constant 5.000000e-01 : f32
    %192 = vector.broadcast %cst_72 : f32 to vector<8x128xf32>
    %193 = arith.mulf %192, %191 : vector<8x128xf32>
    %194 = vector.extract_strided_slice %182 {offsets = [0, 128], sizes = [8, 128], strides = [1, 1]} : vector<8x384xf32> to vector<8x128xf32>
    %195 = vector.extract_strided_slice %183 {offsets = [0, 128], sizes = [8, 128], strides = [1, 1]} : vector<8x384xf32> to vector<8x128xf32>
    %196 = arith.addf %194, %195 : vector<8x128xf32>
    %cst_73 = arith.constant 5.000000e-01 : f32
    %197 = vector.broadcast %cst_73 : f32 to vector<8x128xf32>
    %198 = arith.mulf %197, %196 : vector<8x128xf32>
    %199 = math.tanh %198 : vector<8x128xf32>
    %cst_74 = arith.constant 1.000000e+00 : f32
    %200 = vector.broadcast %cst_74 : f32 to vector<8x128xf32>
    %201 = arith.addf %199, %200 : vector<8x128xf32>
    %cst_75 = arith.constant 5.000000e-01 : f32
    %202 = vector.broadcast %cst_75 : f32 to vector<8x128xf32>
    %203 = arith.mulf %202, %201 : vector<8x128xf32>
    %204 = vector.extract_strided_slice %182 {offsets = [0, 256], sizes = [8, 128], strides = [1, 1]} : vector<8x384xf32> to vector<8x128xf32>
    %205 = vector.extract_strided_slice %183 {offsets = [0, 256], sizes = [8, 128], strides = [1, 1]} : vector<8x384xf32> to vector<8x128xf32>
    %206 = arith.addf %205, %10 : vector<8x128xf32>
    %207 = arith.mulf %193, %206 : vector<8x128xf32>
    %208 = arith.addf %204, %207 : vector<8x128xf32>
    %209 = math.tanh %208 : vector<8x128xf32>
    %cst_76 = arith.constant 1.000000e+00 : f32
    %210 = vector.broadcast %cst_76 : f32 to vector<8x128xf32>
    %211 = arith.subf %210, %203 : vector<8x128xf32>
    %212 = arith.mulf %211, %209 : vector<8x128xf32>
    %213 = arith.mulf %203, %180 : vector<8x128xf32>
    %214 = arith.addf %212, %213 : vector<8x128xf32>
    %c40_77 = arith.constant 40 : index
    %c0_78 = arith.constant 0 : index
    %215 = vector.load %arg14[%c40_77, %c0_78] : memref<64x128xf32, #tpu.memory_space<vmem>>, vector<8x128xf32>
    tpu.vector_store %arg14[%c40_77, %c0_78], %214 {strides = array<i32>} : memref<64x128xf32, #tpu.memory_space<vmem>>, vector<8x128xf32>,
    %c48 = arith.constant 48 : index
    %c0_79 = arith.constant 0 : index
    %216 = vector.load %arg15[%c48, %c0_79] : memref<64x384xf32, #tpu.memory_space<vmem>>, vector<8x384xf32>
    %cst_80 = arith.constant dense<0.000000e+00> : vector<8x384xf32>
    %217 = tpu.matmul %214, %7, %cst_80 {dimension_numbers = #tpu.dot_dimension_numbers<[1], [0], [0], [1], [0, 0, 1, 1], [], []>} : vector<8x128xf32>, vector<128x384xf32>, vector<8x384xf32> -> vector<8x384xf32>
    %218 = vector.extract_strided_slice %216 {offsets = [0, 0], sizes = [8, 128], strides = [1, 1]} : vector<8x384xf32> to vector<8x128xf32>
    %219 = vector.extract_strided_slice %217 {offsets = [0, 0], sizes = [8, 128], strides = [1, 1]} : vector<8x384xf32> to vector<8x128xf32>
    %220 = arith.addf %218, %219 : vector<8x128xf32>
    %cst_81 = arith.constant 5.000000e-01 : f32
    %221 = vector.broadcast %cst_81 : f32 to vector<8x128xf32>
    %222 = arith.mulf %221, %220 : vector<8x128xf32>
    %223 = math.tanh %222 : vector<8x128xf32>
    %cst_82 = arith.constant 1.000000e+00 : f32
    %224 = vector.broadcast %cst_82 : f32 to vector<8x128xf32>
    %225 = arith.addf %223, %224 : vector<8x128xf32>
    %cst_83 = arith.constant 5.000000e-01 : f32
    %226 = vector.broadcast %cst_83 : f32 to vector<8x128xf32>
    %227 = arith.mulf %226, %225 : vector<8x128xf32>
    %228 = vector.extract_strided_slice %216 {offsets = [0, 128], sizes = [8, 128], strides = [1, 1]} : vector<8x384xf32> to vector<8x128xf32>
    %229 = vector.extract_strided_slice %217 {offsets = [0, 128], sizes = [8, 128], strides = [1, 1]} : vector<8x384xf32> to vector<8x128xf32>
    %230 = arith.addf %228, %229 : vector<8x128xf32>
    %cst_84 = arith.constant 5.000000e-01 : f32
    %231 = vector.broadcast %cst_84 : f32 to vector<8x128xf32>
    %232 = arith.mulf %231, %230 : vector<8x128xf32>
    %233 = math.tanh %232 : vector<8x128xf32>
    %cst_85 = arith.constant 1.000000e+00 : f32
    %234 = vector.broadcast %cst_85 : f32 to vector<8x128xf32>
    %235 = arith.addf %233, %234 : vector<8x128xf32>
    %cst_86 = arith.constant 5.000000e-01 : f32
    %236 = vector.broadcast %cst_86 : f32 to vector<8x128xf32>
    %237 = arith.mulf %236, %235 : vector<8x128xf32>
    %238 = vector.extract_strided_slice %216 {offsets = [0, 256], sizes = [8, 128], strides = [1, 1]} : vector<8x384xf32> to vector<8x128xf32>
    %239 = vector.extract_strided_slice %217 {offsets = [0, 256], sizes = [8, 128], strides = [1, 1]} : vector<8x384xf32> to vector<8x128xf32>
    %240 = arith.addf %239, %10 : vector<8x128xf32>
    %241 = arith.mulf %227, %240 : vector<8x128xf32>
    %242 = arith.addf %238, %241 : vector<8x128xf32>
    %243 = math.tanh %242 : vector<8x128xf32>
    %cst_87 = arith.constant 1.000000e+00 : f32
    %244 = vector.broadcast %cst_87 : f32 to vector<8x128xf32>
    %245 = arith.subf %244, %237 : vector<8x128xf32>
    %246 = arith.mulf %245, %243 : vector<8x128xf32>
    %247 = arith.mulf %237, %214 : vector<8x128xf32>
    %248 = arith.addf %246, %247 : vector<8x128xf32>
    %c48_88 = arith.constant 48 : index
    %c0_89 = arith.constant 0 : index
    %249 = vector.load %arg14[%c48_88, %c0_89] : memref<64x128xf32, #tpu.memory_space<vmem>>, vector<8x128xf32>
    tpu.vector_store %arg14[%c48_88, %c0_89], %248 {strides = array<i32>} : memref<64x128xf32, #tpu.memory_space<vmem>>, vector<8x128xf32>,
    %c56 = arith.constant 56 : index
    %c0_90 = arith.constant 0 : index
    %250 = vector.load %arg15[%c56, %c0_90] : memref<64x384xf32, #tpu.memory_space<vmem>>, vector<8x384xf32>
    %cst_91 = arith.constant dense<0.000000e+00> : vector<8x384xf32>
    %251 = tpu.matmul %248, %7, %cst_91 {dimension_numbers = #tpu.dot_dimension_numbers<[1], [0], [0], [1], [0, 0, 1, 1], [], []>} : vector<8x128xf32>, vector<128x384xf32>, vector<8x384xf32> -> vector<8x384xf32>
    %252 = vector.extract_strided_slice %250 {offsets = [0, 0], sizes = [8, 128], strides = [1, 1]} : vector<8x384xf32> to vector<8x128xf32>
    %253 = vector.extract_strided_slice %251 {offsets = [0, 0], sizes = [8, 128], strides = [1, 1]} : vector<8x384xf32> to vector<8x128xf32>
    %254 = arith.addf %252, %253 : vector<8x128xf32>
    %cst_92 = arith.constant 5.000000e-01 : f32
    %255 = vector.broadcast %cst_92 : f32 to vector<8x128xf32>
    %256 = arith.mulf %255, %254 : vector<8x128xf32>
    %257 = math.tanh %256 : vector<8x128xf32>
    %cst_93 = arith.constant 1.000000e+00 : f32
    %258 = vector.broadcast %cst_93 : f32 to vector<8x128xf32>
    %259 = arith.addf %257, %258 : vector<8x128xf32>
    %cst_94 = arith.constant 5.000000e-01 : f32
    %260 = vector.broadcast %cst_94 : f32 to vector<8x128xf32>
    %261 = arith.mulf %260, %259 : vector<8x128xf32>
    %262 = vector.extract_strided_slice %250 {offsets = [0, 128], sizes = [8, 128], strides = [1, 1]} : vector<8x384xf32> to vector<8x128xf32>
    %263 = vector.extract_strided_slice %251 {offsets = [0, 128], sizes = [8, 128], strides = [1, 1]} : vector<8x384xf32> to vector<8x128xf32>
    %264 = arith.addf %262, %263 : vector<8x128xf32>
    %cst_95 = arith.constant 5.000000e-01 : f32
    %265 = vector.broadcast %cst_95 : f32 to vector<8x128xf32>
    %266 = arith.mulf %265, %264 : vector<8x128xf32>
    %267 = math.tanh %266 : vector<8x128xf32>
    %cst_96 = arith.constant 1.000000e+00 : f32
    %268 = vector.broadcast %cst_96 : f32 to vector<8x128xf32>
    %269 = arith.addf %267, %268 : vector<8x128xf32>
    %cst_97 = arith.constant 5.000000e-01 : f32
    %270 = vector.broadcast %cst_97 : f32 to vector<8x128xf32>
    %271 = arith.mulf %270, %269 : vector<8x128xf32>
    %272 = vector.extract_strided_slice %250 {offsets = [0, 256], sizes = [8, 128], strides = [1, 1]} : vector<8x384xf32> to vector<8x128xf32>
    %273 = vector.extract_strided_slice %251 {offsets = [0, 256], sizes = [8, 128], strides = [1, 1]} : vector<8x384xf32> to vector<8x128xf32>
    %274 = arith.addf %273, %10 : vector<8x128xf32>
    %275 = arith.mulf %261, %274 : vector<8x128xf32>
    %276 = arith.addf %272, %275 : vector<8x128xf32>
    %277 = math.tanh %276 : vector<8x128xf32>
    %cst_98 = arith.constant 1.000000e+00 : f32
    %278 = vector.broadcast %cst_98 : f32 to vector<8x128xf32>
    %279 = arith.subf %278, %271 : vector<8x128xf32>
    %280 = arith.mulf %279, %277 : vector<8x128xf32>
    %281 = arith.mulf %271, %248 : vector<8x128xf32>
    %282 = arith.addf %280, %281 : vector<8x128xf32>
    %c56_99 = arith.constant 56 : index
    %c0_100 = arith.constant 0 : index
    %283 = vector.load %arg14[%c56_99, %c0_100] : memref<64x128xf32, #tpu.memory_space<vmem>>, vector<8x128xf32>
    tpu.vector_store %arg14[%c56_99, %c0_100], %282 {strides = array<i32>} : memref<64x128xf32, #tpu.memory_space<vmem>>, vector<8x128xf32>,
    %c0_101 = arith.constant 0 : index
    %c0_102 = arith.constant 0 : index
    %284 = vector.load %arg14[%c0_101, %c0_102] : memref<64x128xf32, #tpu.memory_space<vmem>>, vector<64x128xf32>
    %c0_103 = arith.constant 0 : index
    %c0_104 = arith.constant 0 : index
    %285 = vector.load %arg5[%c0_103, %c0_104] : memref<128x384xf32, #tpu.memory_space<vmem>>, vector<128x384xf32>
    %cst_105 = arith.constant dense<0.000000e+00> : vector<64x384xf32>
    %286 = tpu.matmul %284, %285, %cst_105 {dimension_numbers = #tpu.dot_dimension_numbers<[1], [0], [0], [1], [0, 0, 1, 1], [], []>} : vector<64x128xf32>, vector<128x384xf32>, vector<64x384xf32> -> vector<64x384xf32>
    %c0_106 = arith.constant 0 : index
    %c0_107 = arith.constant 0 : index
    %287 = vector.load %arg7[%c0_106, %c0_107] : memref<1x384xf32, #tpu.memory_space<vmem>>, vector<1x384xf32>
    %288 = vector.broadcast %287 : vector<1x384xf32> to vector<64x384xf32>
    %289 = arith.addf %286, %288 : vector<64x384xf32>
    %c0_108 = arith.constant 0 : index
    %c0_109 = arith.constant 0 : index
    %290 = vector.load %arg15[%c0_108, %c0_109] : memref<64x384xf32, #tpu.memory_space<vmem>>, vector<64x384xf32>
    tpu.vector_store %arg15[%c0_108, %c0_109], %289 {strides = array<i32>} : memref<64x384xf32, #tpu.memory_space<vmem>>, vector<64x384xf32>,
    %c0_110 = arith.constant 0 : index
    %c0_111 = arith.constant 0 : index
    %291 = vector.load %arg6[%c0_110, %c0_111] : memref<128x384xf32, #tpu.memory_space<vmem>>, vector<128x384xf32>
    %c0_112 = arith.constant 0 : index
    %c0_113 = arith.constant 0 : index
    %292 = vector.load %arg8[%c0_112, %c0_113] : memref<1x128xf32, #tpu.memory_space<vmem>>, vector<1x128xf32>
    %293 = vector.shape_cast %292 : vector<1x128xf32> to vector<1x128xf32>
    %294 = vector.broadcast %293 : vector<1x128xf32> to vector<8x128xf32>
    %cst_114 = arith.constant 0.000000e+00 : f32
    %295 = vector.broadcast %cst_114 : f32 to vector<8x128xf32>
    %c0_115 = arith.constant 0 : index
    %c0_116 = arith.constant 0 : index
    %296 = vector.load %arg15[%c0_115, %c0_116] : memref<64x384xf32, #tpu.memory_space<vmem>>, vector<8x384xf32>
    %cst_117 = arith.constant dense<0.000000e+00> : vector<8x384xf32>
    %297 = tpu.matmul %295, %291, %cst_117 {dimension_numbers = #tpu.dot_dimension_numbers<[1], [0], [0], [1], [0, 0, 1, 1], [], []>} : vector<8x128xf32>, vector<128x384xf32>, vector<8x384xf32> -> vector<8x384xf32>
    %298 = vector.extract_strided_slice %296 {offsets = [0, 0], sizes = [8, 128], strides = [1, 1]} : vector<8x384xf32> to vector<8x128xf32>
    %299 = vector.extract_strided_slice %297 {offsets = [0, 0], sizes = [8, 128], strides = [1, 1]} : vector<8x384xf32> to vector<8x128xf32>
    %300 = arith.addf %298, %299 : vector<8x128xf32>
    %cst_118 = arith.constant 5.000000e-01 : f32
    %301 = vector.broadcast %cst_118 : f32 to vector<8x128xf32>
    %302 = arith.mulf %301, %300 : vector<8x128xf32>
    %303 = math.tanh %302 : vector<8x128xf32>
    %cst_119 = arith.constant 1.000000e+00 : f32
    %304 = vector.broadcast %cst_119 : f32 to vector<8x128xf32>
    %305 = arith.addf %303, %304 : vector<8x128xf32>
    %cst_120 = arith.constant 5.000000e-01 : f32
    %306 = vector.broadcast %cst_120 : f32 to vector<8x128xf32>
    %307 = arith.mulf %306, %305 : vector<8x128xf32>
    %308 = vector.extract_strided_slice %296 {offsets = [0, 128], sizes = [8, 128], strides = [1, 1]} : vector<8x384xf32> to vector<8x128xf32>
    %309 = vector.extract_strided_slice %297 {offsets = [0, 128], sizes = [8, 128], strides = [1, 1]} : vector<8x384xf32> to vector<8x128xf32>
    %310 = arith.addf %308, %309 : vector<8x128xf32>
    %cst_121 = arith.constant 5.000000e-01 : f32
    %311 = vector.broadcast %cst_121 : f32 to vector<8x128xf32>
    %312 = arith.mulf %311, %310 : vector<8x128xf32>
    %313 = math.tanh %312 : vector<8x128xf32>
    %cst_122 = arith.constant 1.000000e+00 : f32
    %314 = vector.broadcast %cst_122 : f32 to vector<8x128xf32>
    %315 = arith.addf %313, %314 : vector<8x128xf32>
    %cst_123 = arith.constant 5.000000e-01 : f32
    %316 = vector.broadcast %cst_123 : f32 to vector<8x128xf32>
    %317 = arith.mulf %316, %315 : vector<8x128xf32>
    %318 = vector.extract_strided_slice %296 {offsets = [0, 256], sizes = [8, 128], strides = [1, 1]} : vector<8x384xf32> to vector<8x128xf32>
    %319 = vector.extract_strided_slice %297 {offsets = [0, 256], sizes = [8, 128], strides = [1, 1]} : vector<8x384xf32> to vector<8x128xf32>
    %320 = arith.addf %319, %294 : vector<8x128xf32>
    %321 = arith.mulf %307, %320 : vector<8x128xf32>
    %322 = arith.addf %318, %321 : vector<8x128xf32>
    %323 = math.tanh %322 : vector<8x128xf32>
    %cst_124 = arith.constant 1.000000e+00 : f32
    %324 = vector.broadcast %cst_124 : f32 to vector<8x128xf32>
    %325 = arith.subf %324, %317 : vector<8x128xf32>
    %326 = arith.mulf %325, %323 : vector<8x128xf32>
    %327 = arith.mulf %317, %295 : vector<8x128xf32>
    %328 = arith.addf %326, %327 : vector<8x128xf32>
    %c8_125 = arith.constant 8 : index
    %c0_126 = arith.constant 0 : index
    %329 = vector.load %arg15[%c8_125, %c0_126] : memref<64x384xf32, #tpu.memory_space<vmem>>, vector<8x384xf32>
    %cst_127 = arith.constant dense<0.000000e+00> : vector<8x384xf32>
    %330 = tpu.matmul %328, %291, %cst_127 {dimension_numbers = #tpu.dot_dimension_numbers<[1], [0], [0], [1], [0, 0, 1, 1], [], []>} : vector<8x128xf32>, vector<128x384xf32>, vector<8x384xf32> -> vector<8x384xf32>
    %331 = vector.extract_strided_slice %329 {offsets = [0, 0], sizes = [8, 128], strides = [1, 1]} : vector<8x384xf32> to vector<8x128xf32>
    %332 = vector.extract_strided_slice %330 {offsets = [0, 0], sizes = [8, 128], strides = [1, 1]} : vector<8x384xf32> to vector<8x128xf32>
    %333 = arith.addf %331, %332 : vector<8x128xf32>
    %cst_128 = arith.constant 5.000000e-01 : f32
    %334 = vector.broadcast %cst_128 : f32 to vector<8x128xf32>
    %335 = arith.mulf %334, %333 : vector<8x128xf32>
    %336 = math.tanh %335 : vector<8x128xf32>
    %cst_129 = arith.constant 1.000000e+00 : f32
    %337 = vector.broadcast %cst_129 : f32 to vector<8x128xf32>
    %338 = arith.addf %336, %337 : vector<8x128xf32>
    %cst_130 = arith.constant 5.000000e-01 : f32
    %339 = vector.broadcast %cst_130 : f32 to vector<8x128xf32>
    %340 = arith.mulf %339, %338 : vector<8x128xf32>
    %341 = vector.extract_strided_slice %329 {offsets = [0, 128], sizes = [8, 128], strides = [1, 1]} : vector<8x384xf32> to vector<8x128xf32>
    %342 = vector.extract_strided_slice %330 {offsets = [0, 128], sizes = [8, 128], strides = [1, 1]} : vector<8x384xf32> to vector<8x128xf32>
    %343 = arith.addf %341, %342 : vector<8x128xf32>
    %cst_131 = arith.constant 5.000000e-01 : f32
    %344 = vector.broadcast %cst_131 : f32 to vector<8x128xf32>
    %345 = arith.mulf %344, %343 : vector<8x128xf32>
    %346 = math.tanh %345 : vector<8x128xf32>
    %cst_132 = arith.constant 1.000000e+00 : f32
    %347 = vector.broadcast %cst_132 : f32 to vector<8x128xf32>
    %348 = arith.addf %346, %347 : vector<8x128xf32>
    %cst_133 = arith.constant 5.000000e-01 : f32
    %349 = vector.broadcast %cst_133 : f32 to vector<8x128xf32>
    %350 = arith.mulf %349, %348 : vector<8x128xf32>
    %351 = vector.extract_strided_slice %329 {offsets = [0, 256], sizes = [8, 128], strides = [1, 1]} : vector<8x384xf32> to vector<8x128xf32>
    %352 = vector.extract_strided_slice %330 {offsets = [0, 256], sizes = [8, 128], strides = [1, 1]} : vector<8x384xf32> to vector<8x128xf32>
    %353 = arith.addf %352, %294 : vector<8x128xf32>
    %354 = arith.mulf %340, %353 : vector<8x128xf32>
    %355 = arith.addf %351, %354 : vector<8x128xf32>
    %356 = math.tanh %355 : vector<8x128xf32>
    %cst_134 = arith.constant 1.000000e+00 : f32
    %357 = vector.broadcast %cst_134 : f32 to vector<8x128xf32>
    %358 = arith.subf %357, %350 : vector<8x128xf32>
    %359 = arith.mulf %358, %356 : vector<8x128xf32>
    %360 = arith.mulf %350, %328 : vector<8x128xf32>
    %361 = arith.addf %359, %360 : vector<8x128xf32>
    %c16_135 = arith.constant 16 : index
    %c0_136 = arith.constant 0 : index
    %362 = vector.load %arg15[%c16_135, %c0_136] : memref<64x384xf32, #tpu.memory_space<vmem>>, vector<8x384xf32>
    %cst_137 = arith.constant dense<0.000000e+00> : vector<8x384xf32>
    %363 = tpu.matmul %361, %291, %cst_137 {dimension_numbers = #tpu.dot_dimension_numbers<[1], [0], [0], [1], [0, 0, 1, 1], [], []>} : vector<8x128xf32>, vector<128x384xf32>, vector<8x384xf32> -> vector<8x384xf32>
    %364 = vector.extract_strided_slice %362 {offsets = [0, 0], sizes = [8, 128], strides = [1, 1]} : vector<8x384xf32> to vector<8x128xf32>
    %365 = vector.extract_strided_slice %363 {offsets = [0, 0], sizes = [8, 128], strides = [1, 1]} : vector<8x384xf32> to vector<8x128xf32>
    %366 = arith.addf %364, %365 : vector<8x128xf32>
    %cst_138 = arith.constant 5.000000e-01 : f32
    %367 = vector.broadcast %cst_138 : f32 to vector<8x128xf32>
    %368 = arith.mulf %367, %366 : vector<8x128xf32>
    %369 = math.tanh %368 : vector<8x128xf32>
    %cst_139 = arith.constant 1.000000e+00 : f32
    %370 = vector.broadcast %cst_139 : f32 to vector<8x128xf32>
    %371 = arith.addf %369, %370 : vector<8x128xf32>
    %cst_140 = arith.constant 5.000000e-01 : f32
    %372 = vector.broadcast %cst_140 : f32 to vector<8x128xf32>
    %373 = arith.mulf %372, %371 : vector<8x128xf32>
    %374 = vector.extract_strided_slice %362 {offsets = [0, 128], sizes = [8, 128], strides = [1, 1]} : vector<8x384xf32> to vector<8x128xf32>
    %375 = vector.extract_strided_slice %363 {offsets = [0, 128], sizes = [8, 128], strides = [1, 1]} : vector<8x384xf32> to vector<8x128xf32>
    %376 = arith.addf %374, %375 : vector<8x128xf32>
    %cst_141 = arith.constant 5.000000e-01 : f32
    %377 = vector.broadcast %cst_141 : f32 to vector<8x128xf32>
    %378 = arith.mulf %377, %376 : vector<8x128xf32>
    %379 = math.tanh %378 : vector<8x128xf32>
    %cst_142 = arith.constant 1.000000e+00 : f32
    %380 = vector.broadcast %cst_142 : f32 to vector<8x128xf32>
    %381 = arith.addf %379, %380 : vector<8x128xf32>
    %cst_143 = arith.constant 5.000000e-01 : f32
    %382 = vector.broadcast %cst_143 : f32 to vector<8x128xf32>
    %383 = arith.mulf %382, %381 : vector<8x128xf32>
    %384 = vector.extract_strided_slice %362 {offsets = [0, 256], sizes = [8, 128], strides = [1, 1]} : vector<8x384xf32> to vector<8x128xf32>
    %385 = vector.extract_strided_slice %363 {offsets = [0, 256], sizes = [8, 128], strides = [1, 1]} : vector<8x384xf32> to vector<8x128xf32>
    %386 = arith.addf %385, %294 : vector<8x128xf32>
    %387 = arith.mulf %373, %386 : vector<8x128xf32>
    %388 = arith.addf %384, %387 : vector<8x128xf32>
    %389 = math.tanh %388 : vector<8x128xf32>
    %cst_144 = arith.constant 1.000000e+00 : f32
    %390 = vector.broadcast %cst_144 : f32 to vector<8x128xf32>
    %391 = arith.subf %390, %383 : vector<8x128xf32>
    %392 = arith.mulf %391, %389 : vector<8x128xf32>
    %393 = arith.mulf %383, %361 : vector<8x128xf32>
    %394 = arith.addf %392, %393 : vector<8x128xf32>
    %c24_145 = arith.constant 24 : index
    %c0_146 = arith.constant 0 : index
    %395 = vector.load %arg15[%c24_145, %c0_146] : memref<64x384xf32, #tpu.memory_space<vmem>>, vector<8x384xf32>
    %cst_147 = arith.constant dense<0.000000e+00> : vector<8x384xf32>
    %396 = tpu.matmul %394, %291, %cst_147 {dimension_numbers = #tpu.dot_dimension_numbers<[1], [0], [0], [1], [0, 0, 1, 1], [], []>} : vector<8x128xf32>, vector<128x384xf32>, vector<8x384xf32> -> vector<8x384xf32>
    %397 = vector.extract_strided_slice %395 {offsets = [0, 0], sizes = [8, 128], strides = [1, 1]} : vector<8x384xf32> to vector<8x128xf32>
    %398 = vector.extract_strided_slice %396 {offsets = [0, 0], sizes = [8, 128], strides = [1, 1]} : vector<8x384xf32> to vector<8x128xf32>
    %399 = arith.addf %397, %398 : vector<8x128xf32>
    %cst_148 = arith.constant 5.000000e-01 : f32
    %400 = vector.broadcast %cst_148 : f32 to vector<8x128xf32>
    %401 = arith.mulf %400, %399 : vector<8x128xf32>
    %402 = math.tanh %401 : vector<8x128xf32>
    %cst_149 = arith.constant 1.000000e+00 : f32
    %403 = vector.broadcast %cst_149 : f32 to vector<8x128xf32>
    %404 = arith.addf %402, %403 : vector<8x128xf32>
    %cst_150 = arith.constant 5.000000e-01 : f32
    %405 = vector.broadcast %cst_150 : f32 to vector<8x128xf32>
    %406 = arith.mulf %405, %404 : vector<8x128xf32>
    %407 = vector.extract_strided_slice %395 {offsets = [0, 128], sizes = [8, 128], strides = [1, 1]} : vector<8x384xf32> to vector<8x128xf32>
    %408 = vector.extract_strided_slice %396 {offsets = [0, 128], sizes = [8, 128], strides = [1, 1]} : vector<8x384xf32> to vector<8x128xf32>
    %409 = arith.addf %407, %408 : vector<8x128xf32>
    %cst_151 = arith.constant 5.000000e-01 : f32
    %410 = vector.broadcast %cst_151 : f32 to vector<8x128xf32>
    %411 = arith.mulf %410, %409 : vector<8x128xf32>
    %412 = math.tanh %411 : vector<8x128xf32>
    %cst_152 = arith.constant 1.000000e+00 : f32
    %413 = vector.broadcast %cst_152 : f32 to vector<8x128xf32>
    %414 = arith.addf %412, %413 : vector<8x128xf32>
    %cst_153 = arith.constant 5.000000e-01 : f32
    %415 = vector.broadcast %cst_153 : f32 to vector<8x128xf32>
    %416 = arith.mulf %415, %414 : vector<8x128xf32>
    %417 = vector.extract_strided_slice %395 {offsets = [0, 256], sizes = [8, 128], strides = [1, 1]} : vector<8x384xf32> to vector<8x128xf32>
    %418 = vector.extract_strided_slice %396 {offsets = [0, 256], sizes = [8, 128], strides = [1, 1]} : vector<8x384xf32> to vector<8x128xf32>
    %419 = arith.addf %418, %294 : vector<8x128xf32>
    %420 = arith.mulf %406, %419 : vector<8x128xf32>
    %421 = arith.addf %417, %420 : vector<8x128xf32>
    %422 = math.tanh %421 : vector<8x128xf32>
    %cst_154 = arith.constant 1.000000e+00 : f32
    %423 = vector.broadcast %cst_154 : f32 to vector<8x128xf32>
    %424 = arith.subf %423, %416 : vector<8x128xf32>
    %425 = arith.mulf %424, %422 : vector<8x128xf32>
    %426 = arith.mulf %416, %394 : vector<8x128xf32>
    %427 = arith.addf %425, %426 : vector<8x128xf32>
    %c32_155 = arith.constant 32 : index
    %c0_156 = arith.constant 0 : index
    %428 = vector.load %arg15[%c32_155, %c0_156] : memref<64x384xf32, #tpu.memory_space<vmem>>, vector<8x384xf32>
    %cst_157 = arith.constant dense<0.000000e+00> : vector<8x384xf32>
    %429 = tpu.matmul %427, %291, %cst_157 {dimension_numbers = #tpu.dot_dimension_numbers<[1], [0], [0], [1], [0, 0, 1, 1], [], []>} : vector<8x128xf32>, vector<128x384xf32>, vector<8x384xf32> -> vector<8x384xf32>
    %430 = vector.extract_strided_slice %428 {offsets = [0, 0], sizes = [8, 128], strides = [1, 1]} : vector<8x384xf32> to vector<8x128xf32>
    %431 = vector.extract_strided_slice %429 {offsets = [0, 0], sizes = [8, 128], strides = [1, 1]} : vector<8x384xf32> to vector<8x128xf32>
    %432 = arith.addf %430, %431 : vector<8x128xf32>
    %cst_158 = arith.constant 5.000000e-01 : f32
    %433 = vector.broadcast %cst_158 : f32 to vector<8x128xf32>
    %434 = arith.mulf %433, %432 : vector<8x128xf32>
    %435 = math.tanh %434 : vector<8x128xf32>
    %cst_159 = arith.constant 1.000000e+00 : f32
    %436 = vector.broadcast %cst_159 : f32 to vector<8x128xf32>
    %437 = arith.addf %435, %436 : vector<8x128xf32>
    %cst_160 = arith.constant 5.000000e-01 : f32
    %438 = vector.broadcast %cst_160 : f32 to vector<8x128xf32>
    %439 = arith.mulf %438, %437 : vector<8x128xf32>
    %440 = vector.extract_strided_slice %428 {offsets = [0, 128], sizes = [8, 128], strides = [1, 1]} : vector<8x384xf32> to vector<8x128xf32>
    %441 = vector.extract_strided_slice %429 {offsets = [0, 128], sizes = [8, 128], strides = [1, 1]} : vector<8x384xf32> to vector<8x128xf32>
    %442 = arith.addf %440, %441 : vector<8x128xf32>
    %cst_161 = arith.constant 5.000000e-01 : f32
    %443 = vector.broadcast %cst_161 : f32 to vector<8x128xf32>
    %444 = arith.mulf %443, %442 : vector<8x128xf32>
    %445 = math.tanh %444 : vector<8x128xf32>
    %cst_162 = arith.constant 1.000000e+00 : f32
    %446 = vector.broadcast %cst_162 : f32 to vector<8x128xf32>
    %447 = arith.addf %445, %446 : vector<8x128xf32>
    %cst_163 = arith.constant 5.000000e-01 : f32
    %448 = vector.broadcast %cst_163 : f32 to vector<8x128xf32>
    %449 = arith.mulf %448, %447 : vector<8x128xf32>
    %450 = vector.extract_strided_slice %428 {offsets = [0, 256], sizes = [8, 128], strides = [1, 1]} : vector<8x384xf32> to vector<8x128xf32>
    %451 = vector.extract_strided_slice %429 {offsets = [0, 256], sizes = [8, 128], strides = [1, 1]} : vector<8x384xf32> to vector<8x128xf32>
    %452 = arith.addf %451, %294 : vector<8x128xf32>
    %453 = arith.mulf %439, %452 : vector<8x128xf32>
    %454 = arith.addf %450, %453 : vector<8x128xf32>
    %455 = math.tanh %454 : vector<8x128xf32>
    %cst_164 = arith.constant 1.000000e+00 : f32
    %456 = vector.broadcast %cst_164 : f32 to vector<8x128xf32>
    %457 = arith.subf %456, %449 : vector<8x128xf32>
    %458 = arith.mulf %457, %455 : vector<8x128xf32>
    %459 = arith.mulf %449, %427 : vector<8x128xf32>
    %460 = arith.addf %458, %459 : vector<8x128xf32>
    %c40_165 = arith.constant 40 : index
    %c0_166 = arith.constant 0 : index
    %461 = vector.load %arg15[%c40_165, %c0_166] : memref<64x384xf32, #tpu.memory_space<vmem>>, vector<8x384xf32>
    %cst_167 = arith.constant dense<0.000000e+00> : vector<8x384xf32>
    %462 = tpu.matmul %460, %291, %cst_167 {dimension_numbers = #tpu.dot_dimension_numbers<[1], [0], [0], [1], [0, 0, 1, 1], [], []>} : vector<8x128xf32>, vector<128x384xf32>, vector<8x384xf32> -> vector<8x384xf32>
    %463 = vector.extract_strided_slice %461 {offsets = [0, 0], sizes = [8, 128], strides = [1, 1]} : vector<8x384xf32> to vector<8x128xf32>
    %464 = vector.extract_strided_slice %462 {offsets = [0, 0], sizes = [8, 128], strides = [1, 1]} : vector<8x384xf32> to vector<8x128xf32>
    %465 = arith.addf %463, %464 : vector<8x128xf32>
    %cst_168 = arith.constant 5.000000e-01 : f32
    %466 = vector.broadcast %cst_168 : f32 to vector<8x128xf32>
    %467 = arith.mulf %466, %465 : vector<8x128xf32>
    %468 = math.tanh %467 : vector<8x128xf32>
    %cst_169 = arith.constant 1.000000e+00 : f32
    %469 = vector.broadcast %cst_169 : f32 to vector<8x128xf32>
    %470 = arith.addf %468, %469 : vector<8x128xf32>
    %cst_170 = arith.constant 5.000000e-01 : f32
    %471 = vector.broadcast %cst_170 : f32 to vector<8x128xf32>
    %472 = arith.mulf %471, %470 : vector<8x128xf32>
    %473 = vector.extract_strided_slice %461 {offsets = [0, 128], sizes = [8, 128], strides = [1, 1]} : vector<8x384xf32> to vector<8x128xf32>
    %474 = vector.extract_strided_slice %462 {offsets = [0, 128], sizes = [8, 128], strides = [1, 1]} : vector<8x384xf32> to vector<8x128xf32>
    %475 = arith.addf %473, %474 : vector<8x128xf32>
    %cst_171 = arith.constant 5.000000e-01 : f32
    %476 = vector.broadcast %cst_171 : f32 to vector<8x128xf32>
    %477 = arith.mulf %476, %475 : vector<8x128xf32>
    %478 = math.tanh %477 : vector<8x128xf32>
    %cst_172 = arith.constant 1.000000e+00 : f32
    %479 = vector.broadcast %cst_172 : f32 to vector<8x128xf32>
    %480 = arith.addf %478, %479 : vector<8x128xf32>
    %cst_173 = arith.constant 5.000000e-01 : f32
    %481 = vector.broadcast %cst_173 : f32 to vector<8x128xf32>
    %482 = arith.mulf %481, %480 : vector<8x128xf32>
    %483 = vector.extract_strided_slice %461 {offsets = [0, 256], sizes = [8, 128], strides = [1, 1]} : vector<8x384xf32> to vector<8x128xf32>
    %484 = vector.extract_strided_slice %462 {offsets = [0, 256], sizes = [8, 128], strides = [1, 1]} : vector<8x384xf32> to vector<8x128xf32>
    %485 = arith.addf %484, %294 : vector<8x128xf32>
    %486 = arith.mulf %472, %485 : vector<8x128xf32>
    %487 = arith.addf %483, %486 : vector<8x128xf32>
    %488 = math.tanh %487 : vector<8x128xf32>
    %cst_174 = arith.constant 1.000000e+00 : f32
    %489 = vector.broadcast %cst_174 : f32 to vector<8x128xf32>
    %490 = arith.subf %489, %482 : vector<8x128xf32>
    %491 = arith.mulf %490, %488 : vector<8x128xf32>
    %492 = arith.mulf %482, %460 : vector<8x128xf32>
    %493 = arith.addf %491, %492 : vector<8x128xf32>
    %c48_175 = arith.constant 48 : index
    %c0_176 = arith.constant 0 : index
    %494 = vector.load %arg15[%c48_175, %c0_176] : memref<64x384xf32, #tpu.memory_space<vmem>>, vector<8x384xf32>
    %cst_177 = arith.constant dense<0.000000e+00> : vector<8x384xf32>
    %495 = tpu.matmul %493, %291, %cst_177 {dimension_numbers = #tpu.dot_dimension_numbers<[1], [0], [0], [1], [0, 0, 1, 1], [], []>} : vector<8x128xf32>, vector<128x384xf32>, vector<8x384xf32> -> vector<8x384xf32>
    %496 = vector.extract_strided_slice %494 {offsets = [0, 0], sizes = [8, 128], strides = [1, 1]} : vector<8x384xf32> to vector<8x128xf32>
    %497 = vector.extract_strided_slice %495 {offsets = [0, 0], sizes = [8, 128], strides = [1, 1]} : vector<8x384xf32> to vector<8x128xf32>
    %498 = arith.addf %496, %497 : vector<8x128xf32>
    %cst_178 = arith.constant 5.000000e-01 : f32
    %499 = vector.broadcast %cst_178 : f32 to vector<8x128xf32>
    %500 = arith.mulf %499, %498 : vector<8x128xf32>
    %501 = math.tanh %500 : vector<8x128xf32>
    %cst_179 = arith.constant 1.000000e+00 : f32
    %502 = vector.broadcast %cst_179 : f32 to vector<8x128xf32>
    %503 = arith.addf %501, %502 : vector<8x128xf32>
    %cst_180 = arith.constant 5.000000e-01 : f32
    %504 = vector.broadcast %cst_180 : f32 to vector<8x128xf32>
    %505 = arith.mulf %504, %503 : vector<8x128xf32>
    %506 = vector.extract_strided_slice %494 {offsets = [0, 128], sizes = [8, 128], strides = [1, 1]} : vector<8x384xf32> to vector<8x128xf32>
    %507 = vector.extract_strided_slice %495 {offsets = [0, 128], sizes = [8, 128], strides = [1, 1]} : vector<8x384xf32> to vector<8x128xf32>
    %508 = arith.addf %506, %507 : vector<8x128xf32>
    %cst_181 = arith.constant 5.000000e-01 : f32
    %509 = vector.broadcast %cst_181 : f32 to vector<8x128xf32>
    %510 = arith.mulf %509, %508 : vector<8x128xf32>
    %511 = math.tanh %510 : vector<8x128xf32>
    %cst_182 = arith.constant 1.000000e+00 : f32
    %512 = vector.broadcast %cst_182 : f32 to vector<8x128xf32>
    %513 = arith.addf %511, %512 : vector<8x128xf32>
    %cst_183 = arith.constant 5.000000e-01 : f32
    %514 = vector.broadcast %cst_183 : f32 to vector<8x128xf32>
    %515 = arith.mulf %514, %513 : vector<8x128xf32>
    %516 = vector.extract_strided_slice %494 {offsets = [0, 256], sizes = [8, 128], strides = [1, 1]} : vector<8x384xf32> to vector<8x128xf32>
    %517 = vector.extract_strided_slice %495 {offsets = [0, 256], sizes = [8, 128], strides = [1, 1]} : vector<8x384xf32> to vector<8x128xf32>
    %518 = arith.addf %517, %294 : vector<8x128xf32>
    %519 = arith.mulf %505, %518 : vector<8x128xf32>
    %520 = arith.addf %516, %519 : vector<8x128xf32>
    %521 = math.tanh %520 : vector<8x128xf32>
    %cst_184 = arith.constant 1.000000e+00 : f32
    %522 = vector.broadcast %cst_184 : f32 to vector<8x128xf32>
    %523 = arith.subf %522, %515 : vector<8x128xf32>
    %524 = arith.mulf %523, %521 : vector<8x128xf32>
    %525 = arith.mulf %515, %493 : vector<8x128xf32>
    %526 = arith.addf %524, %525 : vector<8x128xf32>
    %c56_185 = arith.constant 56 : index
    %c0_186 = arith.constant 0 : index
    %527 = vector.load %arg15[%c56_185, %c0_186] : memref<64x384xf32, #tpu.memory_space<vmem>>, vector<8x384xf32>
    %cst_187 = arith.constant dense<0.000000e+00> : vector<8x384xf32>
    %528 = tpu.matmul %526, %291, %cst_187 {dimension_numbers = #tpu.dot_dimension_numbers<[1], [0], [0], [1], [0, 0, 1, 1], [], []>} : vector<8x128xf32>, vector<128x384xf32>, vector<8x384xf32> -> vector<8x384xf32>
    %529 = vector.extract_strided_slice %527 {offsets = [0, 0], sizes = [8, 128], strides = [1, 1]} : vector<8x384xf32> to vector<8x128xf32>
    %530 = vector.extract_strided_slice %528 {offsets = [0, 0], sizes = [8, 128], strides = [1, 1]} : vector<8x384xf32> to vector<8x128xf32>
    %531 = arith.addf %529, %530 : vector<8x128xf32>
    %cst_188 = arith.constant 5.000000e-01 : f32
    %532 = vector.broadcast %cst_188 : f32 to vector<8x128xf32>
    %533 = arith.mulf %532, %531 : vector<8x128xf32>
    %534 = math.tanh %533 : vector<8x128xf32>
    %cst_189 = arith.constant 1.000000e+00 : f32
    %535 = vector.broadcast %cst_189 : f32 to vector<8x128xf32>
    %536 = arith.addf %534, %535 : vector<8x128xf32>
    %cst_190 = arith.constant 5.000000e-01 : f32
    %537 = vector.broadcast %cst_190 : f32 to vector<8x128xf32>
    %538 = arith.mulf %537, %536 : vector<8x128xf32>
    %539 = vector.extract_strided_slice %527 {offsets = [0, 128], sizes = [8, 128], strides = [1, 1]} : vector<8x384xf32> to vector<8x128xf32>
    %540 = vector.extract_strided_slice %528 {offsets = [0, 128], sizes = [8, 128], strides = [1, 1]} : vector<8x384xf32> to vector<8x128xf32>
    %541 = arith.addf %539, %540 : vector<8x128xf32>
    %cst_191 = arith.constant 5.000000e-01 : f32
    %542 = vector.broadcast %cst_191 : f32 to vector<8x128xf32>
    %543 = arith.mulf %542, %541 : vector<8x128xf32>
    %544 = math.tanh %543 : vector<8x128xf32>
    %cst_192 = arith.constant 1.000000e+00 : f32
    %545 = vector.broadcast %cst_192 : f32 to vector<8x128xf32>
    %546 = arith.addf %544, %545 : vector<8x128xf32>
    %cst_193 = arith.constant 5.000000e-01 : f32
    %547 = vector.broadcast %cst_193 : f32 to vector<8x128xf32>
    %548 = arith.mulf %547, %546 : vector<8x128xf32>
    %549 = vector.extract_strided_slice %527 {offsets = [0, 256], sizes = [8, 128], strides = [1, 1]} : vector<8x384xf32> to vector<8x128xf32>
    %550 = vector.extract_strided_slice %528 {offsets = [0, 256], sizes = [8, 128], strides = [1, 1]} : vector<8x384xf32> to vector<8x128xf32>
    %551 = arith.addf %550, %294 : vector<8x128xf32>
    %552 = arith.mulf %538, %551 : vector<8x128xf32>
    %553 = arith.addf %549, %552 : vector<8x128xf32>
    %554 = math.tanh %553 : vector<8x128xf32>
    %cst_194 = arith.constant 1.000000e+00 : f32
    %555 = vector.broadcast %cst_194 : f32 to vector<8x128xf32>
    %556 = arith.subf %555, %548 : vector<8x128xf32>
    %557 = arith.mulf %556, %554 : vector<8x128xf32>
    %558 = arith.mulf %548, %526 : vector<8x128xf32>
    %559 = arith.addf %557, %558 : vector<8x128xf32>
    %560 = tpu.concatenate %282, %559 in 1 : vector<8x128xf32>, vector<8x128xf32> -> vector<8x256xf32>
    %c0_195 = arith.constant 0 : index
    %c0_196 = arith.constant 0 : index
    %561 = vector.load %arg9[%c0_195, %c0_196] : memref<256x10xf32, #tpu.memory_space<vmem>>, vector<256x10xf32>
    %cst_197 = arith.constant dense<0.000000e+00> : vector<8x10xf32>
    %562 = tpu.matmul %560, %561, %cst_197 {dimension_numbers = #tpu.dot_dimension_numbers<[1], [0], [0], [1], [0, 0, 1, 1], [], []>} : vector<8x256xf32>, vector<256x10xf32>, vector<8x10xf32> -> vector<8x10xf32>
    %c0_198 = arith.constant 0 : index
    %c0_199 = arith.constant 0 : index
    %563 = vector.load %arg10[%c0_198, %c0_199] : memref<1x10xf32, #tpu.memory_space<vmem>>, vector<1x10xf32>
    %564 = vector.broadcast %563 : vector<1x10xf32> to vector<8x10xf32>
    %565 = arith.addf %562, %564 : vector<8x10xf32>
    %c0_200 = arith.constant 0 : index
    %c0_201 = arith.constant 0 : index
    %566 = vector.load %arg11[%c0_200, %c0_201] : memref<10x16xf32, #tpu.memory_space<vmem>>, vector<10x16xf32>
    %cst_202 = arith.constant dense<0.000000e+00> : vector<8x16xf32>
    %567 = tpu.matmul %565, %566, %cst_202 {dimension_numbers = #tpu.dot_dimension_numbers<[1], [0], [0], [1], [0, 0, 1, 1], [], []>} : vector<8x10xf32>, vector<10x16xf32>, vector<8x16xf32> -> vector<8x16xf32>
    %c0_203 = arith.constant 0 : index
    %c0_204 = arith.constant 0 : index
    %568 = vector.load %arg13[%c0_203, %c0_204] : memref<8x16xf32, #tpu.memory_space<vmem>>, vector<8x16xf32>
    tpu.vector_store %arg13[%c0_203, %c0_204], %567 {strides = array<i32>} : memref<8x16xf32, #tpu.memory_space<vmem>>, vector<8x16xf32>,
    %569 = vector.extract_strided_slice %567 {offsets = [0, 0], sizes = [8, 4], strides = [1, 1]} : vector<8x16xf32> to vector<8x4xf32>
    %570 = vector.extract_strided_slice %567 {offsets = [0, 4], sizes = [8, 4], strides = [1, 1]} : vector<8x16xf32> to vector<8x4xf32>
    %571 = vector.extract_strided_slice %567 {offsets = [0, 8], sizes = [8, 4], strides = [1, 1]} : vector<8x16xf32> to vector<8x4xf32>
    %572 = vector.extract_strided_slice %567 {offsets = [0, 12], sizes = [8, 4], strides = [1, 1]} : vector<8x16xf32> to vector<8x4xf32>
    %573 = tpu.iota {dimensions = array<i32: 1>} : vector<1x16xi32>
    %cst_205 = arith.constant 0.000000e+00 : f32
    %574 = vector.broadcast %cst_205 : f32 to vector<8x16xf32>
    %575 = arith.mulf %569, %569 : vector<8x4xf32>
    %cst_206 = arith.constant dense<0.000000e+00> : vector<8xf32>
    %576 = vector.multi_reduction <add>, %575, %cst_206 [1] : vector<8x4xf32> to vector<8xf32>
    %577 = vector.shape_cast %576 : vector<8xf32> to vector<8x1xf32>
    %cst_207 = arith.constant 1.000000e-03 : f32
    %578 = vector.broadcast %cst_207 : f32 to vector<8x1xf32>
    %579 = arith.addf %577, %578 : vector<8x1xf32>
    %c0_i32 = arith.constant 0 : i32
    %580 = vector.broadcast %c0_i32 : i32 to vector<1x16xi32>
    %581 = arith.cmpi eq, %573, %580 : vector<1x16xi32>
    %582 = arith.extui %581 : vector<1x16xi1> to vector<1x16xi32>
    %583 = arith.sitofp %582 : vector<1x16xi32> to vector<1x16xf32>
    %584 = vector.broadcast %579 : vector<8x1xf32> to vector<8x16xf32>
    %585 = vector.broadcast %583 : vector<1x16xf32> to vector<8x16xf32>
    %586 = arith.mulf %584, %585 : vector<8x16xf32>
    %587 = arith.addf %574, %586 : vector<8x16xf32>
    %588 = arith.mulf %570, %569 : vector<8x4xf32>
    %cst_208 = arith.constant dense<0.000000e+00> : vector<8xf32>
    %589 = vector.multi_reduction <add>, %588, %cst_208 [1] : vector<8x4xf32> to vector<8xf32>
    %590 = vector.shape_cast %589 : vector<8xf32> to vector<8x1xf32>
    %c4_i32 = arith.constant 4 : i32
    %591 = vector.broadcast %c4_i32 : i32 to vector<1x16xi32>
    %592 = arith.cmpi eq, %573, %591 : vector<1x16xi32>
    %c1_i32 = arith.constant 1 : i32
    %593 = vector.broadcast %c1_i32 : i32 to vector<1x16xi32>
    %594 = arith.cmpi eq, %573, %593 : vector<1x16xi32>
    %595 = arith.ori %592, %594 : vector<1x16xi1>
    %596 = arith.extui %595 : vector<1x16xi1> to vector<1x16xi32>
    %597 = arith.sitofp %596 : vector<1x16xi32> to vector<1x16xf32>
    %598 = vector.broadcast %590 : vector<8x1xf32> to vector<8x16xf32>
    %599 = vector.broadcast %597 : vector<1x16xf32> to vector<8x16xf32>
    %600 = arith.mulf %598, %599 : vector<8x16xf32>
    %601 = arith.addf %587, %600 : vector<8x16xf32>
    %602 = arith.mulf %570, %570 : vector<8x4xf32>
    %cst_209 = arith.constant dense<0.000000e+00> : vector<8xf32>
    %603 = vector.multi_reduction <add>, %602, %cst_209 [1] : vector<8x4xf32> to vector<8xf32>
    %604 = vector.shape_cast %603 : vector<8xf32> to vector<8x1xf32>
    %cst_210 = arith.constant 1.000000e-03 : f32
    %605 = vector.broadcast %cst_210 : f32 to vector<8x1xf32>
    %606 = arith.addf %604, %605 : vector<8x1xf32>
    %c5_i32 = arith.constant 5 : i32
    %607 = vector.broadcast %c5_i32 : i32 to vector<1x16xi32>
    %608 = arith.cmpi eq, %573, %607 : vector<1x16xi32>
    %609 = arith.extui %608 : vector<1x16xi1> to vector<1x16xi32>
    %610 = arith.sitofp %609 : vector<1x16xi32> to vector<1x16xf32>
    %611 = vector.broadcast %606 : vector<8x1xf32> to vector<8x16xf32>
    %612 = vector.broadcast %610 : vector<1x16xf32> to vector<8x16xf32>
    %613 = arith.mulf %611, %612 : vector<8x16xf32>
    %614 = arith.addf %601, %613 : vector<8x16xf32>
    %615 = arith.mulf %571, %569 : vector<8x4xf32>
    %cst_211 = arith.constant dense<0.000000e+00> : vector<8xf32>
    %616 = vector.multi_reduction <add>, %615, %cst_211 [1] : vector<8x4xf32> to vector<8xf32>
    %617 = vector.shape_cast %616 : vector<8xf32> to vector<8x1xf32>
    %c8_i32 = arith.constant 8 : i32
    %618 = vector.broadcast %c8_i32 : i32 to vector<1x16xi32>
    %619 = arith.cmpi eq, %573, %618 : vector<1x16xi32>
    %c2_i32 = arith.constant 2 : i32
    %620 = vector.broadcast %c2_i32 : i32 to vector<1x16xi32>
    %621 = arith.cmpi eq, %573, %620 : vector<1x16xi32>
    %622 = arith.ori %619, %621 : vector<1x16xi1>
    %623 = arith.extui %622 : vector<1x16xi1> to vector<1x16xi32>
    %624 = arith.sitofp %623 : vector<1x16xi32> to vector<1x16xf32>
    %625 = vector.broadcast %617 : vector<8x1xf32> to vector<8x16xf32>
    %626 = vector.broadcast %624 : vector<1x16xf32> to vector<8x16xf32>
    %627 = arith.mulf %625, %626 : vector<8x16xf32>
    %628 = arith.addf %614, %627 : vector<8x16xf32>
    %629 = arith.mulf %571, %570 : vector<8x4xf32>
    %cst_212 = arith.constant dense<0.000000e+00> : vector<8xf32>
    %630 = vector.multi_reduction <add>, %629, %cst_212 [1] : vector<8x4xf32> to vector<8xf32>
    %631 = vector.shape_cast %630 : vector<8xf32> to vector<8x1xf32>
    %c9_i32 = arith.constant 9 : i32
    %632 = vector.broadcast %c9_i32 : i32 to vector<1x16xi32>
    %633 = arith.cmpi eq, %573, %632 : vector<1x16xi32>
    %c6_i32 = arith.constant 6 : i32
    %634 = vector.broadcast %c6_i32 : i32 to vector<1x16xi32>
    %635 = arith.cmpi eq, %573, %634 : vector<1x16xi32>
    %636 = arith.ori %633, %635 : vector<1x16xi1>
    %637 = arith.extui %636 : vector<1x16xi1> to vector<1x16xi32>
    %638 = arith.sitofp %637 : vector<1x16xi32> to vector<1x16xf32>
    %639 = vector.broadcast %631 : vector<8x1xf32> to vector<8x16xf32>
    %640 = vector.broadcast %638 : vector<1x16xf32> to vector<8x16xf32>
    %641 = arith.mulf %639, %640 : vector<8x16xf32>
    %642 = arith.addf %628, %641 : vector<8x16xf32>
    %643 = arith.mulf %571, %571 : vector<8x4xf32>
    %cst_213 = arith.constant dense<0.000000e+00> : vector<8xf32>
    %644 = vector.multi_reduction <add>, %643, %cst_213 [1] : vector<8x4xf32> to vector<8xf32>
    %645 = vector.shape_cast %644 : vector<8xf32> to vector<8x1xf32>
    %cst_214 = arith.constant 1.000000e-03 : f32
    %646 = vector.broadcast %cst_214 : f32 to vector<8x1xf32>
    %647 = arith.addf %645, %646 : vector<8x1xf32>
    %c10_i32 = arith.constant 10 : i32
    %648 = vector.broadcast %c10_i32 : i32 to vector<1x16xi32>
    %649 = arith.cmpi eq, %573, %648 : vector<1x16xi32>
    %650 = arith.extui %649 : vector<1x16xi1> to vector<1x16xi32>
    %651 = arith.sitofp %650 : vector<1x16xi32> to vector<1x16xf32>
    %652 = vector.broadcast %647 : vector<8x1xf32> to vector<8x16xf32>
    %653 = vector.broadcast %651 : vector<1x16xf32> to vector<8x16xf32>
    %654 = arith.mulf %652, %653 : vector<8x16xf32>
    %655 = arith.addf %642, %654 : vector<8x16xf32>
    %656 = arith.mulf %572, %569 : vector<8x4xf32>
    %cst_215 = arith.constant dense<0.000000e+00> : vector<8xf32>
    %657 = vector.multi_reduction <add>, %656, %cst_215 [1] : vector<8x4xf32> to vector<8xf32>
    %658 = vector.shape_cast %657 : vector<8xf32> to vector<8x1xf32>
    %c12_i32 = arith.constant 12 : i32
    %659 = vector.broadcast %c12_i32 : i32 to vector<1x16xi32>
    %660 = arith.cmpi eq, %573, %659 : vector<1x16xi32>
    %c3_i32 = arith.constant 3 : i32
    %661 = vector.broadcast %c3_i32 : i32 to vector<1x16xi32>
    %662 = arith.cmpi eq, %573, %661 : vector<1x16xi32>
    %663 = arith.ori %660, %662 : vector<1x16xi1>
    %664 = arith.extui %663 : vector<1x16xi1> to vector<1x16xi32>
    %665 = arith.sitofp %664 : vector<1x16xi32> to vector<1x16xf32>
    %666 = vector.broadcast %658 : vector<8x1xf32> to vector<8x16xf32>
    %667 = vector.broadcast %665 : vector<1x16xf32> to vector<8x16xf32>
    %668 = arith.mulf %666, %667 : vector<8x16xf32>
    %669 = arith.addf %655, %668 : vector<8x16xf32>
    %670 = arith.mulf %572, %570 : vector<8x4xf32>
    %cst_216 = arith.constant dense<0.000000e+00> : vector<8xf32>
    %671 = vector.multi_reduction <add>, %670, %cst_216 [1] : vector<8x4xf32> to vector<8xf32>
    %672 = vector.shape_cast %671 : vector<8xf32> to vector<8x1xf32>
    %c13_i32 = arith.constant 13 : i32
    %673 = vector.broadcast %c13_i32 : i32 to vector<1x16xi32>
    %674 = arith.cmpi eq, %573, %673 : vector<1x16xi32>
    %c7_i32 = arith.constant 7 : i32
    %675 = vector.broadcast %c7_i32 : i32 to vector<1x16xi32>
    %676 = arith.cmpi eq, %573, %675 : vector<1x16xi32>
    %677 = arith.ori %674, %676 : vector<1x16xi1>
    %678 = arith.extui %677 : vector<1x16xi1> to vector<1x16xi32>
    %679 = arith.sitofp %678 : vector<1x16xi32> to vector<1x16xf32>
    %680 = vector.broadcast %672 : vector<8x1xf32> to vector<8x16xf32>
    %681 = vector.broadcast %679 : vector<1x16xf32> to vector<8x16xf32>
    %682 = arith.mulf %680, %681 : vector<8x16xf32>
    %683 = arith.addf %669, %682 : vector<8x16xf32>
    %684 = arith.mulf %572, %571 : vector<8x4xf32>
    %cst_217 = arith.constant dense<0.000000e+00> : vector<8xf32>
    %685 = vector.multi_reduction <add>, %684, %cst_217 [1] : vector<8x4xf32> to vector<8xf32>
    %686 = vector.shape_cast %685 : vector<8xf32> to vector<8x1xf32>
    %c14_i32 = arith.constant 14 : i32
    %687 = vector.broadcast %c14_i32 : i32 to vector<1x16xi32>
    %688 = arith.cmpi eq, %573, %687 : vector<1x16xi32>
    %c11_i32 = arith.constant 11 : i32
    %689 = vector.broadcast %c11_i32 : i32 to vector<1x16xi32>
    %690 = arith.cmpi eq, %573, %689 : vector<1x16xi32>
    %691 = arith.ori %688, %690 : vector<1x16xi1>
    %692 = arith.extui %691 : vector<1x16xi1> to vector<1x16xi32>
    %693 = arith.sitofp %692 : vector<1x16xi32> to vector<1x16xf32>
    %694 = vector.broadcast %686 : vector<8x1xf32> to vector<8x16xf32>
    %695 = vector.broadcast %693 : vector<1x16xf32> to vector<8x16xf32>
    %696 = arith.mulf %694, %695 : vector<8x16xf32>
    %697 = arith.addf %683, %696 : vector<8x16xf32>
    %698 = arith.mulf %572, %572 : vector<8x4xf32>
    %cst_218 = arith.constant dense<0.000000e+00> : vector<8xf32>
    %699 = vector.multi_reduction <add>, %698, %cst_218 [1] : vector<8x4xf32> to vector<8xf32>
    %700 = vector.shape_cast %699 : vector<8xf32> to vector<8x1xf32>
    %cst_219 = arith.constant 1.000000e-03 : f32
    %701 = vector.broadcast %cst_219 : f32 to vector<8x1xf32>
    %702 = arith.addf %700, %701 : vector<8x1xf32>
    %c15_i32 = arith.constant 15 : i32
    %703 = vector.broadcast %c15_i32 : i32 to vector<1x16xi32>
    %704 = arith.cmpi eq, %573, %703 : vector<1x16xi32>
    %705 = arith.extui %704 : vector<1x16xi1> to vector<1x16xi32>
    %706 = arith.sitofp %705 : vector<1x16xi32> to vector<1x16xf32>
    %707 = vector.broadcast %702 : vector<8x1xf32> to vector<8x16xf32>
    %708 = vector.broadcast %706 : vector<1x16xf32> to vector<8x16xf32>
    %709 = arith.mulf %707, %708 : vector<8x16xf32>
    %710 = arith.addf %697, %709 : vector<8x16xf32>
    %c0_220 = arith.constant 0 : index
    %c0_221 = arith.constant 0 : index
    %711 = vector.load %arg12[%c0_220, %c0_221] : memref<8x16xf32, #tpu.memory_space<vmem>>, vector<8x16xf32>
    tpu.vector_store %arg12[%c0_220, %c0_221], %710 {strides = array<i32>} : memref<8x16xf32, #tpu.memory_space<vmem>>, vector<8x16xf32>,
    return
  }
}

</mosaic_0001>

<llo_original>
// kernel: gru_net_diffusion_forward.1
$region0: #{gru_net_diffusion_forward.1}
  #allocation0 [shape = 'u32[]', space=smem, size = 0x4, offset = 0x4, fixed_abs, tag = 'smem constant byte address 0x4 - core index']
  #allocation1 [shape = 'u32[72,128]{1,0:T(1,128)}', space=vmem, size = 0x9000, scoped, tag = 'internal scratch']
  #allocation2 [shape = 'f32[64,128]{1,0:T(8,128)}', space=vmem, size = 0x8000, scoped, tag = 'scratch operand']
  #allocation3 [shape = 'f32[64,384]{1,0:T(8,128)}', space=vmem, size = 0x18000, scoped, tag = 'scratch operand']
  %s0 = inlined_call_operand.vmem [shape: f32[64,4], index: 0, kind: input, shape index: {}]
  %s1 = inlined_call_operand.vmem [shape: f32[4,384], index: 1, kind: input, shape index: {}]
  %s2 = inlined_call_operand.vmem [shape: f32[128,384], index: 2, kind: input, shape index: {}]
  %s3 = inlined_call_operand.vmem [shape: f32[1,384], index: 3, kind: input, shape index: {}]
  %s4 = inlined_call_operand.vmem [shape: f32[1,128], index: 4, kind: input, shape index: {}]
  %s5 = inlined_call_operand.vmem [shape: f32[128,384], index: 5, kind: input, shape index: {}]
  %s6 = inlined_call_operand.vmem [shape: f32[128,384], index: 6, kind: input, shape index: {}]
  %s7 = inlined_call_operand.vmem [shape: f32[1,384], index: 7, kind: input, shape index: {}]
  %s8 = inlined_call_operand.vmem [shape: f32[1,128], index: 8, kind: input, shape index: {}]
  %s9 = inlined_call_operand.vmem [shape: f32[256,10], index: 9, kind: input, shape index: {}]
  %s10 = inlined_call_operand.vmem [shape: f32[1,10], index: 10, kind: input, shape index: {}]
  %s11 = inlined_call_operand.vmem [shape: f32[10,16], index: 11, kind: input, shape index: {}]
  %s12 = inlined_call_operand.vmem [shape: f32[8,16], index: 12, kind: output, shape index: {0}]
  %s13 = inlined_call_operand.vmem [shape: f32[8,16], index: 13, kind: output, shape index: {1}]
  %14 = xla_tuple %s12, %s13
  %s15 = sld [smem:[#allocation0]]
  $region66: #{gru_net_diffusion_forward.1} parent=0
    _
  %s17 = ssub.s32 1, %s15
  %s18 = scalar_select 0, %s17, %s15
  // Predicated region
  $region2: #{gru_net_diffusion_forward.1} parent=0 // pred_check
    _
  $region3: #{gru_net_diffusion_forward.1} parent=0 // pred_check_branch
    %20 = sbr.rel (0) target = $region5
  $region4: #{gru_net_diffusion_forward.1} parent=0 // pred_region
    _
  $region5: #{gru_net_diffusion_forward.1} parent=0 // pred_fallthru
    _
  // Predicated region
  $region6: #{gru_net_diffusion_forward.1} parent=0 // pred_check
    _
  $region7: #{gru_net_diffusion_forward.1} parent=0 // pred_check_branch
    %22 = sbr.rel (0) target = $region9
  $region8: #{gru_net_diffusion_forward.1} parent=0 // pred_region
    _
  $region9: #{gru_net_diffusion_forward.1} parent=0 // pred_fallthru
    _
  // Predicated region
  $region10: #{gru_net_diffusion_forward.1} parent=0 // pred_check
    _
  $region11: #{gru_net_diffusion_forward.1} parent=0 // pred_check_branch
    %24 = sbr.rel (0) target = $region13
  $region12: #{gru_net_diffusion_forward.1} parent=0 // pred_region
    _
  $region13: #{gru_net_diffusion_forward.1} parent=0 // pred_fallthru
    _
  // Predicated region
  $region14: #{gru_net_diffusion_forward.1} parent=0 // pred_check
    _
  $region15: #{gru_net_diffusion_forward.1} parent=0 // pred_check_branch
    %26 = sbr.rel (0) target = $region17
  $region16: #{gru_net_diffusion_forward.1} parent=0 // pred_region
    _
  $region17: #{gru_net_diffusion_forward.1} parent=0 // pred_fallthru
    _
  // Predicated region
  $region18: #{gru_net_diffusion_forward.1} parent=0 // pred_check
    _
  $region19: #{gru_net_diffusion_forward.1} parent=0 // pred_check_branch
    %28 = sbr.rel (0) target = $region21
  $region20: #{gru_net_diffusion_forward.1} parent=0 // pred_region
    _
  $region21: #{gru_net_diffusion_forward.1} parent=0 // pred_fallthru
    _
  // Predicated region
  $region22: #{gru_net_diffusion_forward.1} parent=0 // pred_check
    _
  $region23: #{gru_net_diffusion_forward.1} parent=0 // pred_check_branch
    %30 = sbr.rel (0) target = $region25
  $region24: #{gru_net_diffusion_forward.1} parent=0 // pred_region
    _
  $region25: #{gru_net_diffusion_forward.1} parent=0 // pred_fallthru
    _
  // Predicated region
  $region26: #{gru_net_diffusion_forward.1} parent=0 // pred_check
    _
  $region27: #{gru_net_diffusion_forward.1} parent=0 // pred_check_branch
    %32 = sbr.rel (0) target = $region29
  $region28: #{gru_net_diffusion_forward.1} parent=0 // pred_region
    _
  $region29: #{gru_net_diffusion_forward.1} parent=0 // pred_fallthru
    _
  // Predicated region
  $region30: #{gru_net_diffusion_forward.1} parent=0 // pred_check
    _
  $region31: #{gru_net_diffusion_forward.1} parent=0 // pred_check_branch
    %34 = sbr.rel (0) target = $region33
  $region32: #{gru_net_diffusion_forward.1} parent=0 // pred_region
    _
  $region33: #{gru_net_diffusion_forward.1} parent=0 // pred_fallthru
    _
  // Predicated region
  $region34: #{gru_net_diffusion_forward.1} parent=0 // pred_check
    _
  $region35: #{gru_net_diffusion_forward.1} parent=0 // pred_check_branch
    %36 = sbr.rel (0) target = $region37
  $region36: #{gru_net_diffusion_forward.1} parent=0 // pred_region
    _
  $region37: #{gru_net_diffusion_forward.1} parent=0 // pred_fallthru
    _
  // Predicated region
  $region38: #{gru_net_diffusion_forward.1} parent=0 // pred_check
    _
  $region39: #{gru_net_diffusion_forward.1} parent=0 // pred_check_branch
    %38 = sbr.rel (0) target = $region41
  $region40: #{gru_net_diffusion_forward.1} parent=0 // pred_region
    _
  $region41: #{gru_net_diffusion_forward.1} parent=0 // pred_fallthru
    _
  // Predicated region
  $region42: #{gru_net_diffusion_forward.1} parent=0 // pred_check
    _
  $region43: #{gru_net_diffusion_forward.1} parent=0 // pred_check_branch
    %40 = sbr.rel (0) target = $region45
  $region44: #{gru_net_diffusion_forward.1} parent=0 // pred_region
    _
  $region45: #{gru_net_diffusion_forward.1} parent=0 // pred_fallthru
    _
  // Predicated region
  $region46: #{gru_net_diffusion_forward.1} parent=0 // pred_check
    _
  $region47: #{gru_net_diffusion_forward.1} parent=0 // pred_check_branch
    %42 = sbr.rel (0) target = $region49
  $region48: #{gru_net_diffusion_forward.1} parent=0 // pred_region
    _
  $region49: #{gru_net_diffusion_forward.1} parent=0 // pred_fallthru
    _
  %v43 = vld [vmem:[%s0] sm:$0xff]
  %v44 = vld [vmem:[%s0 + $0x8] sm:$0xff]
  %v45 = vld [vmem:[%s0 + $0x10] sm:$0xff]
  %v46 = vld [vmem:[%s0 + $0x18] sm:$0xff]
  %v47 = vld [vmem:[%s0 + $0x20] sm:$0xff]
  %v48 = vld [vmem:[%s0 + $0x28] sm:$0xff]
  %v49 = vld [vmem:[%s0 + $0x30] sm:$0xff]
  %v50 = vld [vmem:[%s0 + $0x38] sm:$0xff]
  %v51 = vld [vmem:[%s1] sm:$0xff]
  %v52 = vld [vmem:[%s1 + $0x8] sm:$0xf]
  %v53 = vld [vmem:[%s3] sm:$0x7]
  %v55 = vperm.slane %v53, 0
  %v56 = vperm.slane %v53, 1
  %v57 = vperm.slane %v53, 2
  %63 = vst [vmem:[#allocation1] ss:$2 sm:$0xff] %v51
  %s64 = scalar_lea.vmem [#allocation1], 16
  %65 = vst [vmem:[%s64] ss:$2 sm:$0xff] %v52
  %v66 = vld.sshfl [vmem:[#allocation1] sm:$0xff pattern:$0x75316420]
  %v67 = vld.sshfl [vmem:[#allocation1 + $0x8] sm:$0xff pattern:$0x75316420]
  %v68 = vld.sshfl [vmem:[#allocation1 + $0x10] sm:$0xff pattern:$0x75316420]
  %vm69 = vcmask 31744
  %v71 = vsel %vm69, %v43, 0
  %v74 = vsel %vm69, %v44, 0
  %v77 = vsel %vm69, %v45, 0
  %v80 = vsel %vm69, %v46, 0
  %v83 = vsel %vm69, %v47, 0
  %v86 = vsel %vm69, %v48, 0
  %v89 = vsel %vm69, %v49, 0
  %v92 = vsel %vm69, %v50, 0
  %vm94 = vcmask 1043456
  %v95 = vsel %vm94, %v66, 0
  %v97 = vsel %vm94, %v67, 0
  %v99 = vsel %vm94, %v68, 0
  %101 = vmatpush.msra.mxu0 0.0
  %102 = vmatpush.msra.mxu0 0.0
  %103 = vmatpush.msra.mxu0 0.0
  %104 = vmatpush.msra.mxu0 0.0
  %105 = vmatpush.msra.mxu0 0.0
  %106 = vmatpush.msra.mxu0 0.0
  %107 = vmatpush.msra.mxu0 0.0
  %108 = vmatpush.msra.mxu0 0.0
  %109 = vmatpush.msra.mxu0 0.0
  %110 = vmatpush.msra.mxu0 0.0
  %111 = vmatpush.msra.mxu0 0.0
  %112 = vmatpush.msra.mxu0 0.0
  %113 = vmatpush.msra.mxu0 0.0
  %114 = vmatpush.msra.mxu0 0.0
  %115 = vmatpush.msra.mxu0 0.0
  %116 = vmatpush.msra.mxu0 %v95
  %117 = vmatmul.f32.gmra.mxu0 %v71
  %v118 = vpop.f32.mrf.mxu0
  %v119 = vadd.f32 %v55, %v118
  %120 = vmatmul.f32.gmra.mxu0 %v74
  %v121 = vpop.f32.mrf.mxu0
  %v122 = vadd.f32 %v55, %v121
  %123 = vmatmul.f32.gmra.mxu0 %v77
  %v124 = vpop.f32.mrf.mxu0
  %v125 = vadd.f32 %v55, %v124
  %126 = vmatmul.f32.gmra.mxu0 %v80
  %v127 = vpop.f32.mrf.mxu0
  %v128 = vadd.f32 %v55, %v127
  %129 = vmatmul.f32.gmra.mxu0 %v83
  %v130 = vpop.f32.mrf.mxu0
  %v131 = vadd.f32 %v55, %v130
  %132 = vmatmul.f32.gmra.mxu0 %v86
  %v133 = vpop.f32.mrf.mxu0
  %v134 = vadd.f32 %v55, %v133
  %135 = vmatmul.f32.gmra.mxu0 %v89
  %v136 = vpop.f32.mrf.mxu0
  %v137 = vadd.f32 %v55, %v136
  %138 = vmatmul.f32.gmra.mxu0 %v92
  %v139 = vpop.f32.mrf.mxu0
  %v140 = vadd.f32 %v55, %v139
  %141 = vdwg.mxu0
  %142 = vmatpush.msra.mxu0 0.0
  %143 = vmatpush.msra.mxu0 0.0
  %144 = vmatpush.msra.mxu0 0.0
  %145 = vmatpush.msra.mxu0 0.0
  %146 = vmatpush.msra.mxu0 0.0
  %147 = vmatpush.msra.mxu0 0.0
  %148 = vmatpush.msra.mxu0 0.0
  %149 = vmatpush.msra.mxu0 0.0
  %150 = vmatpush.msra.mxu0 0.0
  %151 = vmatpush.msra.mxu0 0.0
  %152 = vmatpush.msra.mxu0 0.0
  %153 = vmatpush.msra.mxu0 0.0
  %154 = vmatpush.msra.mxu0 0.0
  %155 = vmatpush.msra.mxu0 0.0
  %156 = vmatpush.msra.mxu0 0.0
  %157 = vmatpush.msra.mxu0 %v97
  %158 = vmatmul.f32.gmra.mxu0 %v71
  %v159 = vpop.f32.mrf.mxu0
  %v160 = vadd.f32 %v56, %v159
  %161 = vmatmul.f32.gmra.mxu0 %v74
  %v162 = vpop.f32.mrf.mxu0
  %v163 = vadd.f32 %v56, %v162
  %164 = vmatmul.f32.gmra.mxu0 %v77
  %v165 = vpop.f32.mrf.mxu0
  %v166 = vadd.f32 %v56, %v165
  %167 = vmatmul.f32.gmra.mxu0 %v80
  %v168 = vpop.f32.mrf.mxu0
  %v169 = vadd.f32 %v56, %v168
  %170 = vmatmul.f32.gmra.mxu0 %v83
  %v171 = vpop.f32.mrf.mxu0
  %v172 = vadd.f32 %v56, %v171
  %173 = vmatmul.f32.gmra.mxu0 %v86
  %v174 = vpop.f32.mrf.mxu0
  %v175 = vadd.f32 %v56, %v174
  %176 = vmatmul.f32.gmra.mxu0 %v89
  %v177 = vpop.f32.mrf.mxu0
  %v178 = vadd.f32 %v56, %v177
  %179 = vmatmul.f32.gmra.mxu0 %v92
  %v180 = vpop.f32.mrf.mxu0
  %v181 = vadd.f32 %v56, %v180
  %182 = vdwg.mxu0
  %183 = vmatpush.msra.mxu0 0.0
  %184 = vmatpush.msra.mxu0 0.0
  %185 = vmatpush.msra.mxu0 0.0
  %186 = vmatpush.msra.mxu0 0.0
  %187 = vmatpush.msra.mxu0 0.0
  %188 = vmatpush.msra.mxu0 0.0
  %189 = vmatpush.msra.mxu0 0.0
  %190 = vmatpush.msra.mxu0 0.0
  %191 = vmatpush.msra.mxu0 0.0
  %192 = vmatpush.msra.mxu0 0.0
  %193 = vmatpush.msra.mxu0 0.0
  %194 = vmatpush.msra.mxu0 0.0
  %195 = vmatpush.msra.mxu0 0.0
  %196 = vmatpush.msra.mxu0 0.0
  %197 = vmatpush.msra.mxu0 0.0
  %198 = vmatpush.msra.mxu0 %v99
  %199 = vmatmul.f32.gmra.mxu0 %v71
  %v200 = vpop.f32.mrf.mxu0
  %v201 = vadd.f32 %v57, %v200
  %202 = vmatmul.f32.gmra.mxu0 %v74
  %v203 = vpop.f32.mrf.mxu0
  %v204 = vadd.f32 %v57, %v203
  %205 = vmatmul.f32.gmra.mxu0 %v77
  %v206 = vpop.f32.mrf.mxu0
  %v207 = vadd.f32 %v57, %v206
  %208 = vmatmul.f32.gmra.mxu0 %v80
  %v209 = vpop.f32.mrf.mxu0
  %v210 = vadd.f32 %v57, %v209
  %211 = vmatmul.f32.gmra.mxu0 %v83
  %v212 = vpop.f32.mrf.mxu0
  %v213 = vadd.f32 %v57, %v212
  %214 = vmatmul.f32.gmra.mxu0 %v86
  %v215 = vpop.f32.mrf.mxu0
  %v216 = vadd.f32 %v57, %v215
  %217 = vmatmul.f32.gmra.mxu0 %v89
  %v218 = vpop.f32.mrf.mxu0
  %v219 = vadd.f32 %v57, %v218
  %220 = vmatmul.f32.gmra.mxu0 %v92
  %v221 = vpop.f32.mrf.mxu0
  %v222 = vadd.f32 %v57, %v221
  %223 = vdwg.mxu0
  %224 = vst [vmem:[#allocation3] sm:$0xff] %v119
  %225 = vst [vmem:[#allocation3 + $0x8] sm:$0xff] %v160
  %226 = vst [vmem:[#allocation3 + $0x10] sm:$0xff] %v201
  %227 = vst [vmem:[#allocation3 + $0x18] sm:$0xff] %v122
  %228 = vst [vmem:[#allocation3 + $0x20] sm:$0xff] %v163
  %229 = vst [vmem:[#allocation3 + $0x28] sm:$0xff] %v204
  %230 = vst [vmem:[#allocation3 + $0x30] sm:$0xff] %v125
  %231 = vst [vmem:[#allocation3 + $0x38] sm:$0xff] %v166
  %232 = vst [vmem:[#allocation3 + $0x40] sm:$0xff] %v207
  %233 = vst [vmem:[#allocation3 + $0x48] sm:$0xff] %v128
  %234 = vst [vmem:[#allocation3 + $0x50] sm:$0xff] %v169
  %235 = vst [vmem:[#allocation3 + $0x58] sm:$0xff] %v210
  %236 = vst [vmem:[#allocation3 + $0x60] sm:$0xff] %v131
  %237 = vst [vmem:[#allocation3 + $0x68] sm:$0xff] %v172
  %238 = vst [vmem:[#allocation3 + $0x70] sm:$0xff] %v213
  %239 = vst [vmem:[#allocation3 + $0x78] sm:$0xff] %v134
  %240 = vst [vmem:[#allocation3 + $0x80] sm:$0xff] %v175
  %241 = vst [vmem:[#allocation3 + $0x88] sm:$0xff] %v216
  %242 = vst [vmem:[#allocation3 + $0x90] sm:$0xff] %v137
  %243 = vst [vmem:[#allocation3 + $0x98] sm:$0xff] %v178
  %244 = vst [vmem:[#allocation3 + $0xa0] sm:$0xff] %v219
  %245 = vst [vmem:[#allocation3 + $0xa8] sm:$0xff] %v140
  %246 = vst [vmem:[#allocation3 + $0xb0] sm:$0xff] %v181
  %247 = vst [vmem:[#allocation3 + $0xb8] sm:$0xff] %v222
  %v248 = vld [vmem:[%s2] sm:$0xff]
  %v249 = vld [vmem:[%s2 + $0x8] sm:$0xff]
  %v250 = vld [vmem:[%s2 + $0x10] sm:$0xff]
  %v251 = vld [vmem:[%s2 + $0x18] sm:$0xff]
  %v252 = vld [vmem:[%s2 + $0x20] sm:$0xff]
  %v253 = vld [vmem:[%s2 + $0x28] sm:$0xff]
  %v254 = vld [vmem:[%s2 + $0x30] sm:$0xff]
  %v255 = vld [vmem:[%s2 + $0x38] sm:$0xff]
  %v256 = vld [vmem:[%s2 + $0x40] sm:$0xff]
  %v257 = vld [vmem:[%s2 + $0x48] sm:$0xff]
  %v258 = vld [vmem:[%s2 + $0x50] sm:$0xff]
  %v259 = vld [vmem:[%s2 + $0x58] sm:$0xff]
  %v260 = vld [vmem:[%s2 + $0x60] sm:$0xff]
  %v261 = vld [vmem:[%s2 + $0x68] sm:$0xff]
  %v262 = vld [vmem:[%s2 + $0x70] sm:$0xff]
  %v263 = vld [vmem:[%s2 + $0x78] sm:$0xff]
  %v264 = vld [vmem:[%s2 + $0x80] sm:$0xff]
  %v265 = vld [vmem:[%s2 + $0x88] sm:$0xff]
  %v266 = vld [vmem:[%s2 + $0x90] sm:$0xff]
  %v267 = vld [vmem:[%s2 + $0x98] sm:$0xff]
  %v268 = vld [vmem:[%s2 + $0xa0] sm:$0xff]
  %v269 = vld [vmem:[%s2 + $0xa8] sm:$0xff]
  %v270 = vld [vmem:[%s2 + $0xb0] sm:$0xff]
  %v271 = vld [vmem:[%s2 + $0xb8] sm:$0xff]
  %v272 = vld [vmem:[%s2 + $0xc0] sm:$0xff]
  %v273 = vld [vmem:[%s2 + $0xc8] sm:$0xff]
  %v274 = vld [vmem:[%s2 + $0xd0] sm:$0xff]
  %v275 = vld [vmem:[%s2 + $0xd8] sm:$0xff]
  %v276 = vld [vmem:[%s2 + $0xe0] sm:$0xff]
  %v277 = vld [vmem:[%s2 + $0xe8] sm:$0xff]
  %v278 = vld [vmem:[%s2 + $0xf0] sm:$0xff]
  %v279 = vld [vmem:[%s2 + $0xf8] sm:$0xff]
  %v280 = vld [vmem:[%s2 + $0x100] sm:$0xff]
  %v281 = vld [vmem:[%s2 + $0x108] sm:$0xff]
  %v282 = vld [vmem:[%s2 + $0x110] sm:$0xff]
  %v283 = vld [vmem:[%s2 + $0x118] sm:$0xff]
  %v284 = vld [vmem:[%s2 + $0x120] sm:$0xff]
  %v285 = vld [vmem:[%s2 + $0x128] sm:$0xff]
  %v286 = vld [vmem:[%s2 + $0x130] sm:$0xff]
  %v287 = vld [vmem:[%s2 + $0x138] sm:$0xff]
  %v288 = vld [vmem:[%s2 + $0x140] sm:$0xff]
  %v289 = vld [vmem:[%s2 + $0x148] sm:$0xff]
  %v290 = vld [vmem:[%s2 + $0x150] sm:$0xff]
  %v291 = vld [vmem:[%s2 + $0x158] sm:$0xff]
  %v292 = vld [vmem:[%s2 + $0x160] sm:$0xff]
  %v293 = vld [vmem:[%s2 + $0x168] sm:$0xff]
  %v294 = vld [vmem:[%s2 + $0x170] sm:$0xff]
  %v295 = vld [vmem:[%s2 + $0x178] sm:$0xff]
  %v296 = vld [vmem:[%s4] sm:$0x1]
  %v298 = vperm.slane %v296, 0
  %v300 = vld [vmem:[#allocation3] sm:$0xff]
  %v301 = vld [vmem:[#allocation3 + $0x8] sm:$0xff]
  %v302 = vld [vmem:[#allocation3 + $0x10] sm:$0xff]
  %303 = vmatpush.msra.mxu0 %v293
  %304 = vmatpush.msra.mxu0 %v290
  %305 = vmatpush.msra.mxu0 %v287
  %306 = vmatpush.msra.mxu0 %v284
  %307 = vmatpush.msra.mxu0 %v281
  %308 = vmatpush.msra.mxu0 %v278
  %309 = vmatpush.msra.mxu0 %v275
  %310 = vmatpush.msra.mxu0 %v272
  %311 = vmatpush.msra.mxu0 %v269
  %312 = vmatpush.msra.mxu0 %v266
  %313 = vmatpush.msra.mxu0 %v263
  %314 = vmatpush.msra.mxu0 %v260
  %315 = vmatpush.msra.mxu0 %v257
  %316 = vmatpush.msra.mxu0 %v254
  %317 = vmatpush.msra.mxu0 %v251
  %318 = vmatpush.msra.mxu0 %v248
  %319 = vmatmul.f32.gmra.mxu0 0.0
  %v320 = vpop.f32.mrf.mxu0
  %v321 = vadd.f32 0.0, %v320
  %322 = vdwg.mxu0
  %323 = vmatpush.msra.mxu0 %v294
  %324 = vmatpush.msra.mxu0 %v291
  %325 = vmatpush.msra.mxu0 %v288
  %326 = vmatpush.msra.mxu0 %v285
  %327 = vmatpush.msra.mxu0 %v282
  %328 = vmatpush.msra.mxu0 %v279
  %329 = vmatpush.msra.mxu0 %v276
  %330 = vmatpush.msra.mxu0 %v273
  %331 = vmatpush.msra.mxu0 %v270
  %332 = vmatpush.msra.mxu0 %v267
  %333 = vmatpush.msra.mxu0 %v264
  %334 = vmatpush.msra.mxu0 %v261
  %335 = vmatpush.msra.mxu0 %v258
  %336 = vmatpush.msra.mxu0 %v255
  %337 = vmatpush.msra.mxu0 %v252
  %338 = vmatpush.msra.mxu0 %v249
  %339 = vmatmul.f32.gmra.mxu0 0.0
  %v340 = vpop.f32.mrf.mxu0
  %v341 = vadd.f32 0.0, %v340
  %342 = vdwg.mxu0
  %343 = vmatpush.msra.mxu0 %v295
  %344 = vmatpush.msra.mxu0 %v292
  %345 = vmatpush.msra.mxu0 %v289
  %346 = vmatpush.msra.mxu0 %v286
  %347 = vmatpush.msra.mxu0 %v283
  %348 = vmatpush.msra.mxu0 %v280
  %349 = vmatpush.msra.mxu0 %v277
  %350 = vmatpush.msra.mxu0 %v274
  %351 = vmatpush.msra.mxu0 %v271
  %352 = vmatpush.msra.mxu0 %v268
  %353 = vmatpush.msra.mxu0 %v265
  %354 = vmatpush.msra.mxu0 %v262
  %355 = vmatpush.msra.mxu0 %v259
  %356 = vmatpush.msra.mxu0 %v256
  %357 = vmatpush.msra.mxu0 %v253
  %358 = vmatpush.msra.mxu0 %v250
  %359 = vmatmul.f32.gmra.mxu0 0.0
  %v360 = vpop.f32.mrf.mxu0
  %v361 = vadd.f32 0.0, %v360
  %362 = vdwg.mxu0
  %v363 = vadd.f32 %v300, %v321
  %v364 = vmul.f32 %v363, 0.5
  %v365 = vtanh.pop %v364
  %v366 = vadd.f32 %v365, 1.0
  %v367 = vmul.f32 %v366, 0.5
  %v368 = vadd.f32 %v301, %v341
  %v369 = vmul.f32 %v368, 0.5
  %v370 = vtanh.pop %v369
  %v371 = vadd.f32 %v370, 1.0
  %v372 = vmul.f32 %v371, 0.5
  %v373 = vadd.f32 %v361, %v298
  %v374 = vmul.f32 %v367, %v373
  %v375 = vadd.f32 %v302, %v374
  %v376 = vtanh.pop %v375
  %v377 = vsub.f32 1.0, %v372
  %v378 = vmul.f32 %v377, %v376
  %v379 = vmul.f32 %v372, 0.0
  %v380 = vadd.f32 %v378, %v379
  %381 = vst [vmem:[#allocation2] sm:$0xff] %v380
  %v382 = vld [vmem:[#allocation3 + $0x18] sm:$0xff]
  %v383 = vld [vmem:[#allocation3 + $0x20] sm:$0xff]
  %v384 = vld [vmem:[#allocation3 + $0x28] sm:$0xff]
  %385 = vmatpush.msra.mxu0 %v293
  %386 = vmatpush.msra.mxu0 %v290
  %387 = vmatpush.msra.mxu0 %v287
  %388 = vmatpush.msra.mxu0 %v284
  %389 = vmatpush.msra.mxu0 %v281
  %390 = vmatpush.msra.mxu0 %v278
  %391 = vmatpush.msra.mxu0 %v275
  %392 = vmatpush.msra.mxu0 %v272
  %393 = vmatpush.msra.mxu0 %v269
  %394 = vmatpush.msra.mxu0 %v266
  %395 = vmatpush.msra.mxu0 %v263
  %396 = vmatpush.msra.mxu0 %v260
  %397 = vmatpush.msra.mxu0 %v257
  %398 = vmatpush.msra.mxu0 %v254
  %399 = vmatpush.msra.mxu0 %v251
  %400 = vmatpush.msra.mxu0 %v248
  %401 = vmatmul.f32.gmra.mxu0 %v380
  %v402 = vpop.f32.mrf.mxu0
  %v403 = vadd.f32 0.0, %v402
  %404 = vdwg.mxu0
  %405 = vmatpush.msra.mxu0 %v294
  %406 = vmatpush.msra.mxu0 %v291
  %407 = vmatpush.msra.mxu0 %v288
  %408 = vmatpush.msra.mxu0 %v285
  %409 = vmatpush.msra.mxu0 %v282
  %410 = vmatpush.msra.mxu0 %v279
  %411 = vmatpush.msra.mxu0 %v276
  %412 = vmatpush.msra.mxu0 %v273
  %413 = vmatpush.msra.mxu0 %v270
  %414 = vmatpush.msra.mxu0 %v267
  %415 = vmatpush.msra.mxu0 %v264
  %416 = vmatpush.msra.mxu0 %v261
  %417 = vmatpush.msra.mxu0 %v258
  %418 = vmatpush.msra.mxu0 %v255
  %419 = vmatpush.msra.mxu0 %v252
  %420 = vmatpush.msra.mxu0 %v249
  %421 = vmatmul.f32.gmra.mxu0 %v380
  %v422 = vpop.f32.mrf.mxu0
  %v423 = vadd.f32 0.0, %v422
  %424 = vdwg.mxu0
  %425 = vmatpush.msra.mxu0 %v295
  %426 = vmatpush.msra.mxu0 %v292
  %427 = vmatpush.msra.mxu0 %v289
  %428 = vmatpush.msra.mxu0 %v286
  %429 = vmatpush.msra.mxu0 %v283
  %430 = vmatpush.msra.mxu0 %v280
  %431 = vmatpush.msra.mxu0 %v277
  %432 = vmatpush.msra.mxu0 %v274
  %433 = vmatpush.msra.mxu0 %v271
  %434 = vmatpush.msra.mxu0 %v268
  %435 = vmatpush.msra.mxu0 %v265
  %436 = vmatpush.msra.mxu0 %v262
  %437 = vmatpush.msra.mxu0 %v259
  %438 = vmatpush.msra.mxu0 %v256
  %439 = vmatpush.msra.mxu0 %v253
  %440 = vmatpush.msra.mxu0 %v250
  %441 = vmatmul.f32.gmra.mxu0 %v380
  %v442 = vpop.f32.mrf.mxu0
  %v443 = vadd.f32 0.0, %v442
  %444 = vdwg.mxu0
  %v445 = vadd.f32 %v382, %v403
  %v446 = vmul.f32 %v445, 0.5
  %v447 = vtanh.pop %v446
  %v448 = vadd.f32 %v447, 1.0
  %v449 = vmul.f32 %v448, 0.5
  %v450 = vadd.f32 %v383, %v423
  %v451 = vmul.f32 %v450, 0.5
  %v452 = vtanh.pop %v451
  %v453 = vadd.f32 %v452, 1.0
  %v454 = vmul.f32 %v453, 0.5
  %v455 = vadd.f32 %v443, %v298
  %v456 = vmul.f32 %v449, %v455
  %v457 = vadd.f32 %v384, %v456
  %v458 = vtanh.pop %v457
  %v459 = vsub.f32 1.0, %v454
  %v460 = vmul.f32 %v459, %v458
  %v461 = vmul.f32 %v454, %v380
  %v462 = vadd.f32 %v460, %v461
  %463 = vst [vmem:[#allocation2 + $0x8] sm:$0xff] %v462
  %v464 = vld [vmem:[#allocation3 + $0x30] sm:$0xff]
  %v465 = vld [vmem:[#allocation3 + $0x38] sm:$0xff]
  %v466 = vld [vmem:[#allocation3 + $0x40] sm:$0xff]
  %467 = vmatpush.msra.mxu0 %v293
  %468 = vmatpush.msra.mxu0 %v290
  %469 = vmatpush.msra.mxu0 %v287
  %470 = vmatpush.msra.mxu0 %v284
  %471 = vmatpush.msra.mxu0 %v281
  %472 = vmatpush.msra.mxu0 %v278
  %473 = vmatpush.msra.mxu0 %v275
  %474 = vmatpush.msra.mxu0 %v272
  %475 = vmatpush.msra.mxu0 %v269
  %476 = vmatpush.msra.mxu0 %v266
  %477 = vmatpush.msra.mxu0 %v263
  %478 = vmatpush.msra.mxu0 %v260
  %479 = vmatpush.msra.mxu0 %v257
  %480 = vmatpush.msra.mxu0 %v254
  %481 = vmatpush.msra.mxu0 %v251
  %482 = vmatpush.msra.mxu0 %v248
  %483 = vmatmul.f32.gmra.mxu0 %v462
  %v484 = vpop.f32.mrf.mxu0
  %v485 = vadd.f32 0.0, %v484
  %486 = vdwg.mxu0
  %487 = vmatpush.msra.mxu0 %v294
  %488 = vmatpush.msra.mxu0 %v291
  %489 = vmatpush.msra.mxu0 %v288
  %490 = vmatpush.msra.mxu0 %v285
  %491 = vmatpush.msra.mxu0 %v282
  %492 = vmatpush.msra.mxu0 %v279
  %493 = vmatpush.msra.mxu0 %v276
  %494 = vmatpush.msra.mxu0 %v273
  %495 = vmatpush.msra.mxu0 %v270
  %496 = vmatpush.msra.mxu0 %v267
  %497 = vmatpush.msra.mxu0 %v264
  %498 = vmatpush.msra.mxu0 %v261
  %499 = vmatpush.msra.mxu0 %v258
  %500 = vmatpush.msra.mxu0 %v255
  %501 = vmatpush.msra.mxu0 %v252
  %502 = vmatpush.msra.mxu0 %v249
  %503 = vmatmul.f32.gmra.mxu0 %v462
  %v504 = vpop.f32.mrf.mxu0
  %v505 = vadd.f32 0.0, %v504
  %506 = vdwg.mxu0
  %507 = vmatpush.msra.mxu0 %v295
  %508 = vmatpush.msra.mxu0 %v292
  %509 = vmatpush.msra.mxu0 %v289
  %510 = vmatpush.msra.mxu0 %v286
  %511 = vmatpush.msra.mxu0 %v283
  %512 = vmatpush.msra.mxu0 %v280
  %513 = vmatpush.msra.mxu0 %v277
  %514 = vmatpush.msra.mxu0 %v274
  %515 = vmatpush.msra.mxu0 %v271
  %516 = vmatpush.msra.mxu0 %v268
  %517 = vmatpush.msra.mxu0 %v265
  %518 = vmatpush.msra.mxu0 %v262
  %519 = vmatpush.msra.mxu0 %v259
  %520 = vmatpush.msra.mxu0 %v256
  %521 = vmatpush.msra.mxu0 %v253
  %522 = vmatpush.msra.mxu0 %v250
  %523 = vmatmul.f32.gmra.mxu0 %v462
  %v524 = vpop.f32.mrf.mxu0
  %v525 = vadd.f32 0.0, %v524
  %526 = vdwg.mxu0
  %v527 = vadd.f32 %v464, %v485
  %v528 = vmul.f32 %v527, 0.5
  %v529 = vtanh.pop %v528
  %v530 = vadd.f32 %v529, 1.0
  %v531 = vmul.f32 %v530, 0.5
  %v532 = vadd.f32 %v465, %v505
  %v533 = vmul.f32 %v532, 0.5
  %v534 = vtanh.pop %v533
  %v535 = vadd.f32 %v534, 1.0
  %v536 = vmul.f32 %v535, 0.5
  %v537 = vadd.f32 %v525, %v298
  %v538 = vmul.f32 %v531, %v537
  %v539 = vadd.f32 %v466, %v538
  %v540 = vtanh.pop %v539
  %v541 = vsub.f32 1.0, %v536
  %v542 = vmul.f32 %v541, %v540
  %v543 = vmul.f32 %v536, %v462
  %v544 = vadd.f32 %v542, %v543
  %545 = vst [vmem:[#allocation2 + $0x10] sm:$0xff] %v544
  %v546 = vld [vmem:[#allocation3 + $0x48] sm:$0xff]
  %v547 = vld [vmem:[#allocation3 + $0x50] sm:$0xff]
  %v548 = vld [vmem:[#allocation3 + $0x58] sm:$0xff]
  %549 = vmatpush.msra.mxu0 %v293
  %550 = vmatpush.msra.mxu0 %v290
  %551 = vmatpush.msra.mxu0 %v287
  %552 = vmatpush.msra.mxu0 %v284
  %553 = vmatpush.msra.mxu0 %v281
  %554 = vmatpush.msra.mxu0 %v278
  %555 = vmatpush.msra.mxu0 %v275
  %556 = vmatpush.msra.mxu0 %v272
  %557 = vmatpush.msra.mxu0 %v269
  %558 = vmatpush.msra.mxu0 %v266
  %559 = vmatpush.msra.mxu0 %v263
  %560 = vmatpush.msra.mxu0 %v260
  %561 = vmatpush.msra.mxu0 %v257
  %562 = vmatpush.msra.mxu0 %v254
  %563 = vmatpush.msra.mxu0 %v251
  %564 = vmatpush.msra.mxu0 %v248
  %565 = vmatmul.f32.gmra.mxu0 %v544
  %v566 = vpop.f32.mrf.mxu0
  %v567 = vadd.f32 0.0, %v566
  %568 = vdwg.mxu0
  %569 = vmatpush.msra.mxu0 %v294
  %570 = vmatpush.msra.mxu0 %v291
  %571 = vmatpush.msra.mxu0 %v288
  %572 = vmatpush.msra.mxu0 %v285
  %573 = vmatpush.msra.mxu0 %v282
  %574 = vmatpush.msra.mxu0 %v279
  %575 = vmatpush.msra.mxu0 %v276
  %576 = vmatpush.msra.mxu0 %v273
  %577 = vmatpush.msra.mxu0 %v270
  %578 = vmatpush.msra.mxu0 %v267
  %579 = vmatpush.msra.mxu0 %v264
  %580 = vmatpush.msra.mxu0 %v261
  %581 = vmatpush.msra.mxu0 %v258
  %582 = vmatpush.msra.mxu0 %v255
  %583 = vmatpush.msra.mxu0 %v252
  %584 = vmatpush.msra.mxu0 %v249
  %585 = vmatmul.f32.gmra.mxu0 %v544
  %v586 = vpop.f32.mrf.mxu0
  %v587 = vadd.f32 0.0, %v586
  %588 = vdwg.mxu0
  %589 = vmatpush.msra.mxu0 %v295
  %590 = vmatpush.msra.mxu0 %v292
  %591 = vmatpush.msra.mxu0 %v289
  %592 = vmatpush.msra.mxu0 %v286
  %593 = vmatpush.msra.mxu0 %v283
  %594 = vmatpush.msra.mxu0 %v280
  %595 = vmatpush.msra.mxu0 %v277
  %596 = vmatpush.msra.mxu0 %v274
  %597 = vmatpush.msra.mxu0 %v271
  %598 = vmatpush.msra.mxu0 %v268
  %599 = vmatpush.msra.mxu0 %v265
  %600 = vmatpush.msra.mxu0 %v262
  %601 = vmatpush.msra.mxu0 %v259
  %602 = vmatpush.msra.mxu0 %v256
  %603 = vmatpush.msra.mxu0 %v253
  %604 = vmatpush.msra.mxu0 %v250
  %605 = vmatmul.f32.gmra.mxu0 %v544
  %v606 = vpop.f32.mrf.mxu0
  %v607 = vadd.f32 0.0, %v606
  %608 = vdwg.mxu0
  %v609 = vadd.f32 %v546, %v567
  %v610 = vmul.f32 %v609, 0.5
  %v611 = vtanh.pop %v610
  %v612 = vadd.f32 %v611, 1.0
  %v613 = vmul.f32 %v612, 0.5
  %v614 = vadd.f32 %v547, %v587
  %v615 = vmul.f32 %v614, 0.5
  %v616 = vtanh.pop %v615
  %v617 = vadd.f32 %v616, 1.0
  %v618 = vmul.f32 %v617, 0.5
  %v619 = vadd.f32 %v607, %v298
  %v620 = vmul.f32 %v613, %v619
  %v621 = vadd.f32 %v548, %v620
  %v622 = vtanh.pop %v621
  %v623 = vsub.f32 1.0, %v618
  %v624 = vmul.f32 %v623, %v622
  %v625 = vmul.f32 %v618, %v544
  %v626 = vadd.f32 %v624, %v625
  %627 = vst [vmem:[#allocation2 + $0x18] sm:$0xff] %v626
  %v628 = vld [vmem:[#allocation3 + $0x60] sm:$0xff]
  %v629 = vld [vmem:[#allocation3 + $0x68] sm:$0xff]
  %v630 = vld [vmem:[#allocation3 + $0x70] sm:$0xff]
  %631 = vmatpush.msra.mxu0 %v293
  %632 = vmatpush.msra.mxu0 %v290
  %633 = vmatpush.msra.mxu0 %v287
  %634 = vmatpush.msra.mxu0 %v284
  %635 = vmatpush.msra.mxu0 %v281
  %636 = vmatpush.msra.mxu0 %v278
  %637 = vmatpush.msra.mxu0 %v275
  %638 = vmatpush.msra.mxu0 %v272
  %639 = vmatpush.msra.mxu0 %v269
  %640 = vmatpush.msra.mxu0 %v266
  %641 = vmatpush.msra.mxu0 %v263
  %642 = vmatpush.msra.mxu0 %v260
  %643 = vmatpush.msra.mxu0 %v257
  %644 = vmatpush.msra.mxu0 %v254
  %645 = vmatpush.msra.mxu0 %v251
  %646 = vmatpush.msra.mxu0 %v248
  %647 = vmatmul.f32.gmra.mxu0 %v626
  %v648 = vpop.f32.mrf.mxu0
  %v649 = vadd.f32 0.0, %v648
  %650 = vdwg.mxu0
  %651 = vmatpush.msra.mxu0 %v294
  %652 = vmatpush.msra.mxu0 %v291
  %653 = vmatpush.msra.mxu0 %v288
  %654 = vmatpush.msra.mxu0 %v285
  %655 = vmatpush.msra.mxu0 %v282
  %656 = vmatpush.msra.mxu0 %v279
  %657 = vmatpush.msra.mxu0 %v276
  %658 = vmatpush.msra.mxu0 %v273
  %659 = vmatpush.msra.mxu0 %v270
  %660 = vmatpush.msra.mxu0 %v267
  %661 = vmatpush.msra.mxu0 %v264
  %662 = vmatpush.msra.mxu0 %v261
  %663 = vmatpush.msra.mxu0 %v258
  %664 = vmatpush.msra.mxu0 %v255
  %665 = vmatpush.msra.mxu0 %v252
  %666 = vmatpush.msra.mxu0 %v249
  %667 = vmatmul.f32.gmra.mxu0 %v626
  %v668 = vpop.f32.mrf.mxu0
  %v669 = vadd.f32 0.0, %v668
  %670 = vdwg.mxu0
  %671 = vmatpush.msra.mxu0 %v295
  %672 = vmatpush.msra.mxu0 %v292
  %673 = vmatpush.msra.mxu0 %v289
  %674 = vmatpush.msra.mxu0 %v286
  %675 = vmatpush.msra.mxu0 %v283
  %676 = vmatpush.msra.mxu0 %v280
  %677 = vmatpush.msra.mxu0 %v277
  %678 = vmatpush.msra.mxu0 %v274
  %679 = vmatpush.msra.mxu0 %v271
  %680 = vmatpush.msra.mxu0 %v268
  %681 = vmatpush.msra.mxu0 %v265
  %682 = vmatpush.msra.mxu0 %v262
  %683 = vmatpush.msra.mxu0 %v259
  %684 = vmatpush.msra.mxu0 %v256
  %685 = vmatpush.msra.mxu0 %v253
  %686 = vmatpush.msra.mxu0 %v250
  %687 = vmatmul.f32.gmra.mxu0 %v626
  %v688 = vpop.f32.mrf.mxu0
  %v689 = vadd.f32 0.0, %v688
  %690 = vdwg.mxu0
  %v691 = vadd.f32 %v628, %v649
  %v692 = vmul.f32 %v691, 0.5
  %v693 = vtanh.pop %v692
  %v694 = vadd.f32 %v693, 1.0
  %v695 = vmul.f32 %v694, 0.5
  %v696 = vadd.f32 %v629, %v669
  %v697 = vmul.f32 %v696, 0.5
  %v698 = vtanh.pop %v697
  %v699 = vadd.f32 %v698, 1.0
  %v700 = vmul.f32 %v699, 0.5
  %v701 = vadd.f32 %v689, %v298
  %v702 = vmul.f32 %v695, %v701
  %v703 = vadd.f32 %v630, %v702
  %v704 = vtanh.pop %v703
  %v705 = vsub.f32 1.0, %v700
  %v706 = vmul.f32 %v705, %v704
  %v707 = vmul.f32 %v700, %v626
  %v708 = vadd.f32 %v706, %v707
  %709 = vst [vmem:[#allocation2 + $0x20] sm:$0xff] %v708
  %v710 = vld [vmem:[#allocation3 + $0x78] sm:$0xff]
  %v711 = vld [vmem:[#allocation3 + $0x80] sm:$0xff]
  %v712 = vld [vmem:[#allocation3 + $0x88] sm:$0xff]
  %713 = vmatpush.msra.mxu0 %v293
  %714 = vmatpush.msra.mxu0 %v290
  %715 = vmatpush.msra.mxu0 %v287
  %716 = vmatpush.msra.mxu0 %v284
  %717 = vmatpush.msra.mxu0 %v281
  %718 = vmatpush.msra.mxu0 %v278
  %719 = vmatpush.msra.mxu0 %v275
  %720 = vmatpush.msra.mxu0 %v272
  %721 = vmatpush.msra.mxu0 %v269
  %722 = vmatpush.msra.mxu0 %v266
  %723 = vmatpush.msra.mxu0 %v263
  %724 = vmatpush.msra.mxu0 %v260
  %725 = vmatpush.msra.mxu0 %v257
  %726 = vmatpush.msra.mxu0 %v254
  %727 = vmatpush.msra.mxu0 %v251
  %728 = vmatpush.msra.mxu0 %v248
  %729 = vmatmul.f32.gmra.mxu0 %v708
  %v730 = vpop.f32.mrf.mxu0
  %v731 = vadd.f32 0.0, %v730
  %732 = vdwg.mxu0
  %733 = vmatpush.msra.mxu0 %v294
  %734 = vmatpush.msra.mxu0 %v291
  %735 = vmatpush.msra.mxu0 %v288
  %736 = vmatpush.msra.mxu0 %v285
  %737 = vmatpush.msra.mxu0 %v282
  %738 = vmatpush.msra.mxu0 %v279
  %739 = vmatpush.msra.mxu0 %v276
  %740 = vmatpush.msra.mxu0 %v273
  %741 = vmatpush.msra.mxu0 %v270
  %742 = vmatpush.msra.mxu0 %v267
  %743 = vmatpush.msra.mxu0 %v264
  %744 = vmatpush.msra.mxu0 %v261
  %745 = vmatpush.msra.mxu0 %v258
  %746 = vmatpush.msra.mxu0 %v255
  %747 = vmatpush.msra.mxu0 %v252
  %748 = vmatpush.msra.mxu0 %v249
  %749 = vmatmul.f32.gmra.mxu0 %v708
  %v750 = vpop.f32.mrf.mxu0
  %v751 = vadd.f32 0.0, %v750
  %752 = vdwg.mxu0
  %753 = vmatpush.msra.mxu0 %v295
  %754 = vmatpush.msra.mxu0 %v292
  %755 = vmatpush.msra.mxu0 %v289
  %756 = vmatpush.msra.mxu0 %v286
  %757 = vmatpush.msra.mxu0 %v283
  %758 = vmatpush.msra.mxu0 %v280
  %759 = vmatpush.msra.mxu0 %v277
  %760 = vmatpush.msra.mxu0 %v274
  %761 = vmatpush.msra.mxu0 %v271
  %762 = vmatpush.msra.mxu0 %v268
  %763 = vmatpush.msra.mxu0 %v265
  %764 = vmatpush.msra.mxu0 %v262
  %765 = vmatpush.msra.mxu0 %v259
  %766 = vmatpush.msra.mxu0 %v256
  %767 = vmatpush.msra.mxu0 %v253
  %768 = vmatpush.msra.mxu0 %v250
  %769 = vmatmul.f32.gmra.mxu0 %v708
  %v770 = vpop.f32.mrf.mxu0
  %v771 = vadd.f32 0.0, %v770
  %772 = vdwg.mxu0
  %v773 = vadd.f32 %v710, %v731
  %v774 = vmul.f32 %v773, 0.5
  %v775 = vtanh.pop %v774
  %v776 = vadd.f32 %v775, 1.0
  %v777 = vmul.f32 %v776, 0.5
  %v778 = vadd.f32 %v711, %v751
  %v779 = vmul.f32 %v778, 0.5
  %v780 = vtanh.pop %v779
  %v781 = vadd.f32 %v780, 1.0
  %v782 = vmul.f32 %v781, 0.5
  %v783 = vadd.f32 %v771, %v298
  %v784 = vmul.f32 %v777, %v783
  %v785 = vadd.f32 %v712, %v784
  %v786 = vtanh.pop %v785
  %v787 = vsub.f32 1.0, %v782
  %v788 = vmul.f32 %v787, %v786
  %v789 = vmul.f32 %v782, %v708
  %v790 = vadd.f32 %v788, %v789
  %791 = vst [vmem:[#allocation2 + $0x28] sm:$0xff] %v790
  %v792 = vld [vmem:[#allocation3 + $0x90] sm:$0xff]
  %v793 = vld [vmem:[#allocation3 + $0x98] sm:$0xff]
  %v794 = vld [vmem:[#allocation3 + $0xa0] sm:$0xff]
  %795 = vmatpush.msra.mxu0 %v293
  %796 = vmatpush.msra.mxu0 %v290
  %797 = vmatpush.msra.mxu0 %v287
  %798 = vmatpush.msra.mxu0 %v284
  %799 = vmatpush.msra.mxu0 %v281
  %800 = vmatpush.msra.mxu0 %v278
  %801 = vmatpush.msra.mxu0 %v275
  %802 = vmatpush.msra.mxu0 %v272
  %803 = vmatpush.msra.mxu0 %v269
  %804 = vmatpush.msra.mxu0 %v266
  %805 = vmatpush.msra.mxu0 %v263
  %806 = vmatpush.msra.mxu0 %v260
  %807 = vmatpush.msra.mxu0 %v257
  %808 = vmatpush.msra.mxu0 %v254
  %809 = vmatpush.msra.mxu0 %v251
  %810 = vmatpush.msra.mxu0 %v248
  %811 = vmatmul.f32.gmra.mxu0 %v790
  %v812 = vpop.f32.mrf.mxu0
  %v813 = vadd.f32 0.0, %v812
  %814 = vdwg.mxu0
  %815 = vmatpush.msra.mxu0 %v294
  %816 = vmatpush.msra.mxu0 %v291
  %817 = vmatpush.msra.mxu0 %v288
  %818 = vmatpush.msra.mxu0 %v285
  %819 = vmatpush.msra.mxu0 %v282
  %820 = vmatpush.msra.mxu0 %v279
  %821 = vmatpush.msra.mxu0 %v276
  %822 = vmatpush.msra.mxu0 %v273
  %823 = vmatpush.msra.mxu0 %v270
  %824 = vmatpush.msra.mxu0 %v267
  %825 = vmatpush.msra.mxu0 %v264
  %826 = vmatpush.msra.mxu0 %v261
  %827 = vmatpush.msra.mxu0 %v258
  %828 = vmatpush.msra.mxu0 %v255
  %829 = vmatpush.msra.mxu0 %v252
  %830 = vmatpush.msra.mxu0 %v249
  %831 = vmatmul.f32.gmra.mxu0 %v790
  %v832 = vpop.f32.mrf.mxu0
  %v833 = vadd.f32 0.0, %v832
  %834 = vdwg.mxu0
  %835 = vmatpush.msra.mxu0 %v295
  %836 = vmatpush.msra.mxu0 %v292
  %837 = vmatpush.msra.mxu0 %v289
  %838 = vmatpush.msra.mxu0 %v286
  %839 = vmatpush.msra.mxu0 %v283
  %840 = vmatpush.msra.mxu0 %v280
  %841 = vmatpush.msra.mxu0 %v277
  %842 = vmatpush.msra.mxu0 %v274
  %843 = vmatpush.msra.mxu0 %v271
  %844 = vmatpush.msra.mxu0 %v268
  %845 = vmatpush.msra.mxu0 %v265
  %846 = vmatpush.msra.mxu0 %v262
  %847 = vmatpush.msra.mxu0 %v259
  %848 = vmatpush.msra.mxu0 %v256
  %849 = vmatpush.msra.mxu0 %v253
  %850 = vmatpush.msra.mxu0 %v250
  %851 = vmatmul.f32.gmra.mxu0 %v790
  %v852 = vpop.f32.mrf.mxu0
  %v853 = vadd.f32 0.0, %v852
  %854 = vdwg.mxu0
  %v855 = vadd.f32 %v792, %v813
  %v856 = vmul.f32 %v855, 0.5
  %v857 = vtanh.pop %v856
  %v858 = vadd.f32 %v857, 1.0
  %v859 = vmul.f32 %v858, 0.5
  %v860 = vadd.f32 %v793, %v833
  %v861 = vmul.f32 %v860, 0.5
  %v862 = vtanh.pop %v861
  %v863 = vadd.f32 %v862, 1.0
  %v864 = vmul.f32 %v863, 0.5
  %v865 = vadd.f32 %v853, %v298
  %v866 = vmul.f32 %v859, %v865
  %v867 = vadd.f32 %v794, %v866
  %v868 = vtanh.pop %v867
  %v869 = vsub.f32 1.0, %v864
  %v870 = vmul.f32 %v869, %v868
  %v871 = vmul.f32 %v864, %v790
  %v872 = vadd.f32 %v870, %v871
  %873 = vst [vmem:[#allocation2 + $0x30] sm:$0xff] %v872
  %v874 = vld [vmem:[#allocation3 + $0xa8] sm:$0xff]
  %v875 = vld [vmem:[#allocation3 + $0xb0] sm:$0xff]
  %v876 = vld [vmem:[#allocation3 + $0xb8] sm:$0xff]
  %877 = vmatpush.msra.mxu0 %v293
  %878 = vmatpush.msra.mxu0 %v290
  %879 = vmatpush.msra.mxu0 %v287
  %880 = vmatpush.msra.mxu0 %v284
  %881 = vmatpush.msra.mxu0 %v281
  %882 = vmatpush.msra.mxu0 %v278
  %883 = vmatpush.msra.mxu0 %v275
  %884 = vmatpush.msra.mxu0 %v272
  %885 = vmatpush.msra.mxu0 %v269
  %886 = vmatpush.msra.mxu0 %v266
  %887 = vmatpush.msra.mxu0 %v263
  %888 = vmatpush.msra.mxu0 %v260
  %889 = vmatpush.msra.mxu0 %v257
  %890 = vmatpush.msra.mxu0 %v254
  %891 = vmatpush.msra.mxu0 %v251
  %892 = vmatpush.msra.mxu0 %v248
  %893 = vmatmul.f32.gmra.mxu0 %v872
  %v894 = vpop.f32.mrf.mxu0
  %v895 = vadd.f32 0.0, %v894
  %896 = vdwg.mxu0
  %897 = vmatpush.msra.mxu0 %v294
  %898 = vmatpush.msra.mxu0 %v291
  %899 = vmatpush.msra.mxu0 %v288
  %900 = vmatpush.msra.mxu0 %v285
  %901 = vmatpush.msra.mxu0 %v282
  %902 = vmatpush.msra.mxu0 %v279
  %903 = vmatpush.msra.mxu0 %v276
  %904 = vmatpush.msra.mxu0 %v273
  %905 = vmatpush.msra.mxu0 %v270
  %906 = vmatpush.msra.mxu0 %v267
  %907 = vmatpush.msra.mxu0 %v264
  %908 = vmatpush.msra.mxu0 %v261
  %909 = vmatpush.msra.mxu0 %v258
  %910 = vmatpush.msra.mxu0 %v255
  %911 = vmatpush.msra.mxu0 %v252
  %912 = vmatpush.msra.mxu0 %v249
  %913 = vmatmul.f32.gmra.mxu0 %v872
  %v914 = vpop.f32.mrf.mxu0
  %v915 = vadd.f32 0.0, %v914
  %916 = vdwg.mxu0
  %917 = vmatpush.msra.mxu0 %v295
  %918 = vmatpush.msra.mxu0 %v292
  %919 = vmatpush.msra.mxu0 %v289
  %920 = vmatpush.msra.mxu0 %v286
  %921 = vmatpush.msra.mxu0 %v283
  %922 = vmatpush.msra.mxu0 %v280
  %923 = vmatpush.msra.mxu0 %v277
  %924 = vmatpush.msra.mxu0 %v274
  %925 = vmatpush.msra.mxu0 %v271
  %926 = vmatpush.msra.mxu0 %v268
  %927 = vmatpush.msra.mxu0 %v265
  %928 = vmatpush.msra.mxu0 %v262
  %929 = vmatpush.msra.mxu0 %v259
  %930 = vmatpush.msra.mxu0 %v256
  %931 = vmatpush.msra.mxu0 %v253
  %932 = vmatpush.msra.mxu0 %v250
  %933 = vmatmul.f32.gmra.mxu0 %v872
  %v934 = vpop.f32.mrf.mxu0
  %v935 = vadd.f32 0.0, %v934
  %936 = vdwg.mxu0
  %v937 = vadd.f32 %v874, %v895
  %v938 = vmul.f32 %v937, 0.5
  %v939 = vtanh.pop %v938
  %v940 = vadd.f32 %v939, 1.0
  %v941 = vmul.f32 %v940, 0.5
  %v942 = vadd.f32 %v875, %v915
  %v943 = vmul.f32 %v942, 0.5
  %v944 = vtanh.pop %v943
  %v945 = vadd.f32 %v944, 1.0
  %v946 = vmul.f32 %v945, 0.5
  %v947 = vadd.f32 %v935, %v298
  %v948 = vmul.f32 %v941, %v947
  %v949 = vadd.f32 %v876, %v948
  %v950 = vtanh.pop %v949
  %v951 = vsub.f32 1.0, %v946
  %v952 = vmul.f32 %v951, %v950
  %v953 = vmul.f32 %v946, %v872
  %v954 = vadd.f32 %v952, %v953
  %955 = vst [vmem:[#allocation2 + $0x38] sm:$0xff] %v954
  %v956 = vld [vmem:[#allocation2] sm:$0xff]
  %v957 = vld [vmem:[#allocation2 + $0x8] sm:$0xff]
  %v958 = vld [vmem:[#allocation2 + $0x10] sm:$0xff]
  %v959 = vld [vmem:[#allocation2 + $0x18] sm:$0xff]
  %v960 = vld [vmem:[#allocation2 + $0x20] sm:$0xff]
  %v961 = vld [vmem:[#allocation2 + $0x28] sm:$0xff]
  %v962 = vld [vmem:[#allocation2 + $0x30] sm:$0xff]
  %v963 = vld [vmem:[#allocation2 + $0x38] sm:$0xff]
  %v964 = vld [vmem:[%s5] sm:$0xff]
  %v965 = vld [vmem:[%s5 + $0x8] sm:$0xff]
  %v966 = vld [vmem:[%s5 + $0x10] sm:$0xff]
  %v967 = vld [vmem:[%s5 + $0x18] sm:$0xff]
  %v968 = vld [vmem:[%s5 + $0x20] sm:$0xff]
  %v969 = vld [vmem:[%s5 + $0x28] sm:$0xff]
  %v970 = vld [vmem:[%s5 + $0x30] sm:$0xff]
  %v971 = vld [vmem:[%s5 + $0x38] sm:$0xff]
  %v972 = vld [vmem:[%s5 + $0x40] sm:$0xff]
  %v973 = vld [vmem:[%s5 + $0x48] sm:$0xff]
  %v974 = vld [vmem:[%s5 + $0x50] sm:$0xff]
  %v975 = vld [vmem:[%s5 + $0x58] sm:$0xff]
  %v976 = vld [vmem:[%s5 + $0x60] sm:$0xff]
  %v977 = vld [vmem:[%s5 + $0x68] sm:$0xff]
  %v978 = vld [vmem:[%s5 + $0x70] sm:$0xff]
  %v979 = vld [vmem:[%s5 + $0x78] sm:$0xff]
  %v980 = vld [vmem:[%s5 + $0x80] sm:$0xff]
  %v981 = vld [vmem:[%s5 + $0x88] sm:$0xff]
  %v982 = vld [vmem:[%s5 + $0x90] sm:$0xff]
  %v983 = vld [vmem:[%s5 + $0x98] sm:$0xff]
  %v984 = vld [vmem:[%s5 + $0xa0] sm:$0xff]
  %v985 = vld [vmem:[%s5 + $0xa8] sm:$0xff]
  %v986 = vld [vmem:[%s5 + $0xb0] sm:$0xff]
  %v987 = vld [vmem:[%s5 + $0xb8] sm:$0xff]
  %v988 = vld [vmem:[%s5 + $0xc0] sm:$0xff]
  %v989 = vld [vmem:[%s5 + $0xc8] sm:$0xff]
  %v990 = vld [vmem:[%s5 + $0xd0] sm:$0xff]
  %v991 = vld [vmem:[%s5 + $0xd8] sm:$0xff]
  %v992 = vld [vmem:[%s5 + $0xe0] sm:$0xff]
  %v993 = vld [vmem:[%s5 + $0xe8] sm:$0xff]
  %v994 = vld [vmem:[%s5 + $0xf0] sm:$0xff]
  %v995 = vld [vmem:[%s5 + $0xf8] sm:$0xff]
  %v996 = vld [vmem:[%s5 + $0x100] sm:$0xff]
  %v997 = vld [vmem:[%s5 + $0x108] sm:$0xff]
  %v998 = vld [vmem:[%s5 + $0x110] sm:$0xff]
  %v999 = vld [vmem:[%s5 + $0x118] sm:$0xff]
  %v1000 = vld [vmem:[%s5 + $0x120] sm:$0xff]
  %v1001 = vld [vmem:[%s5 + $0x128] sm:$0xff]
  %v1002 = vld [vmem:[%s5 + $0x130] sm:$0xff]
  %v1003 = vld [vmem:[%s5 + $0x138] sm:$0xff]
  %v1004 = vld [vmem:[%s5 + $0x140] sm:$0xff]
  %v1005 = vld [vmem:[%s5 + $0x148] sm:$0xff]
  %v1006 = vld [vmem:[%s5 + $0x150] sm:$0xff]
  %v1007 = vld [vmem:[%s5 + $0x158] sm:$0xff]
  %v1008 = vld [vmem:[%s5 + $0x160] sm:$0xff]
  %v1009 = vld [vmem:[%s5 + $0x168] sm:$0xff]
  %v1010 = vld [vmem:[%s5 + $0x170] sm:$0xff]
  %v1011 = vld [vmem:[%s5 + $0x178] sm:$0xff]
  %v1012 = vld [vmem:[%s7] sm:$0x7]
  %v1014 = vperm.slane %v1012, 0
  %v1015 = vperm.slane %v1012, 1
  %v1016 = vperm.slane %v1012, 2
  %1020 = vmatpush.msra.mxu0 %v1009
  %1021 = vmatpush.msra.mxu0 %v1006
  %1022 = vmatpush.msra.mxu0 %v1003
  %1023 = vmatpush.msra.mxu0 %v1000
  %1024 = vmatpush.msra.mxu0 %v997
  %1025 = vmatpush.msra.mxu0 %v994
  %1026 = vmatpush.msra.mxu0 %v991
  %1027 = vmatpush.msra.mxu0 %v988
  %1028 = vmatpush.msra.mxu0 %v985
  %1029 = vmatpush.msra.mxu0 %v982
  %1030 = vmatpush.msra.mxu0 %v979
  %1031 = vmatpush.msra.mxu0 %v976
  %1032 = vmatpush.msra.mxu0 %v973
  %1033 = vmatpush.msra.mxu0 %v970
  %1034 = vmatpush.msra.mxu0 %v967
  %1035 = vmatpush.msra.mxu0 %v964
  %1036 = vmatmul.f32.gmra.mxu0 %v956
  %v1037 = vpop.f32.mrf.mxu0
  %v1038 = vadd.f32 %v1014, %v1037
  %1039 = vmatmul.f32.gmra.mxu0 %v957
  %v1040 = vpop.f32.mrf.mxu0
  %v1041 = vadd.f32 %v1014, %v1040
  %1042 = vmatmul.f32.gmra.mxu0 %v958
  %v1043 = vpop.f32.mrf.mxu0
  %v1044 = vadd.f32 %v1014, %v1043
  %1045 = vmatmul.f32.gmra.mxu0 %v959
  %v1046 = vpop.f32.mrf.mxu0
  %v1047 = vadd.f32 %v1014, %v1046
  %1048 = vmatmul.f32.gmra.mxu0 %v960
  %v1049 = vpop.f32.mrf.mxu0
  %v1050 = vadd.f32 %v1014, %v1049
  %1051 = vmatmul.f32.gmra.mxu0 %v961
  %v1052 = vpop.f32.mrf.mxu0
  %v1053 = vadd.f32 %v1014, %v1052
  %1054 = vmatmul.f32.gmra.mxu0 %v962
  %v1055 = vpop.f32.mrf.mxu0
  %v1056 = vadd.f32 %v1014, %v1055
  %1057 = vmatmul.f32.gmra.mxu0 %v963
  %v1058 = vpop.f32.mrf.mxu0
  %v1059 = vadd.f32 %v1014, %v1058
  %1060 = vdwg.mxu0
  %1061 = vmatpush.msra.mxu0 %v1010
  %1062 = vmatpush.msra.mxu0 %v1007
  %1063 = vmatpush.msra.mxu0 %v1004
  %1064 = vmatpush.msra.mxu0 %v1001
  %1065 = vmatpush.msra.mxu0 %v998
  %1066 = vmatpush.msra.mxu0 %v995
  %1067 = vmatpush.msra.mxu0 %v992
  %1068 = vmatpush.msra.mxu0 %v989
  %1069 = vmatpush.msra.mxu0 %v986
  %1070 = vmatpush.msra.mxu0 %v983
  %1071 = vmatpush.msra.mxu0 %v980
  %1072 = vmatpush.msra.mxu0 %v977
  %1073 = vmatpush.msra.mxu0 %v974
  %1074 = vmatpush.msra.mxu0 %v971
  %1075 = vmatpush.msra.mxu0 %v968
  %1076 = vmatpush.msra.mxu0 %v965
  %1077 = vmatmul.f32.gmra.mxu0 %v956
  %v1078 = vpop.f32.mrf.mxu0
  %v1079 = vadd.f32 %v1015, %v1078
  %1080 = vmatmul.f32.gmra.mxu0 %v957
  %v1081 = vpop.f32.mrf.mxu0
  %v1082 = vadd.f32 %v1015, %v1081
  %1083 = vmatmul.f32.gmra.mxu0 %v958
  %v1084 = vpop.f32.mrf.mxu0
  %v1085 = vadd.f32 %v1015, %v1084
  %1086 = vmatmul.f32.gmra.mxu0 %v959
  %v1087 = vpop.f32.mrf.mxu0
  %v1088 = vadd.f32 %v1015, %v1087
  %1089 = vmatmul.f32.gmra.mxu0 %v960
  %v1090 = vpop.f32.mrf.mxu0
  %v1091 = vadd.f32 %v1015, %v1090
  %1092 = vmatmul.f32.gmra.mxu0 %v961
  %v1093 = vpop.f32.mrf.mxu0
  %v1094 = vadd.f32 %v1015, %v1093
  %1095 = vmatmul.f32.gmra.mxu0 %v962
  %v1096 = vpop.f32.mrf.mxu0
  %v1097 = vadd.f32 %v1015, %v1096
  %1098 = vmatmul.f32.gmra.mxu0 %v963
  %v1099 = vpop.f32.mrf.mxu0
  %v1100 = vadd.f32 %v1015, %v1099
  %1101 = vdwg.mxu0
  %1102 = vmatpush.msra.mxu0 %v1011
  %1103 = vmatpush.msra.mxu0 %v1008
  %1104 = vmatpush.msra.mxu0 %v1005
  %1105 = vmatpush.msra.mxu0 %v1002
  %1106 = vmatpush.msra.mxu0 %v999
  %1107 = vmatpush.msra.mxu0 %v996
  %1108 = vmatpush.msra.mxu0 %v993
  %1109 = vmatpush.msra.mxu0 %v990
  %1110 = vmatpush.msra.mxu0 %v987
  %1111 = vmatpush.msra.mxu0 %v984
  %1112 = vmatpush.msra.mxu0 %v981
  %1113 = vmatpush.msra.mxu0 %v978
  %1114 = vmatpush.msra.mxu0 %v975
  %1115 = vmatpush.msra.mxu0 %v972
  %1116 = vmatpush.msra.mxu0 %v969
  %1117 = vmatpush.msra.mxu0 %v966
  %1118 = vmatmul.f32.gmra.mxu0 %v956
  %v1119 = vpop.f32.mrf.mxu0
  %v1120 = vadd.f32 %v1016, %v1119
  %1121 = vmatmul.f32.gmra.mxu0 %v957
  %v1122 = vpop.f32.mrf.mxu0
  %v1123 = vadd.f32 %v1016, %v1122
  %1124 = vmatmul.f32.gmra.mxu0 %v958
  %v1125 = vpop.f32.mrf.mxu0
  %v1126 = vadd.f32 %v1016, %v1125
  %1127 = vmatmul.f32.gmra.mxu0 %v959
  %v1128 = vpop.f32.mrf.mxu0
  %v1129 = vadd.f32 %v1016, %v1128
  %1130 = vmatmul.f32.gmra.mxu0 %v960
  %v1131 = vpop.f32.mrf.mxu0
  %v1132 = vadd.f32 %v1016, %v1131
  %1133 = vmatmul.f32.gmra.mxu0 %v961
  %v1134 = vpop.f32.mrf.mxu0
  %v1135 = vadd.f32 %v1016, %v1134
  %1136 = vmatmul.f32.gmra.mxu0 %v962
  %v1137 = vpop.f32.mrf.mxu0
  %v1138 = vadd.f32 %v1016, %v1137
  %1139 = vmatmul.f32.gmra.mxu0 %v963
  %v1140 = vpop.f32.mrf.mxu0
  %v1141 = vadd.f32 %v1016, %v1140
  %1142 = vdwg.mxu0
  %1143 = vst [vmem:[#allocation3] sm:$0xff] %v1038
  %1144 = vst [vmem:[#allocation3 + $0x8] sm:$0xff] %v1079
  %1145 = vst [vmem:[#allocation3 + $0x10] sm:$0xff] %v1120
  %1146 = vst [vmem:[#allocation3 + $0x18] sm:$0xff] %v1041
  %1147 = vst [vmem:[#allocation3 + $0x20] sm:$0xff] %v1082
  %1148 = vst [vmem:[#allocation3 + $0x28] sm:$0xff] %v1123
  %1149 = vst [vmem:[#allocation3 + $0x30] sm:$0xff] %v1044
  %1150 = vst [vmem:[#allocation3 + $0x38] sm:$0xff] %v1085
  %1151 = vst [vmem:[#allocation3 + $0x40] sm:$0xff] %v1126
  %1152 = vst [vmem:[#allocation3 + $0x48] sm:$0xff] %v1047
  %1153 = vst [vmem:[#allocation3 + $0x50] sm:$0xff] %v1088
  %1154 = vst [vmem:[#allocation3 + $0x58] sm:$0xff] %v1129
  %1155 = vst [vmem:[#allocation3 + $0x60] sm:$0xff] %v1050
  %1156 = vst [vmem:[#allocation3 + $0x68] sm:$0xff] %v1091
  %1157 = vst [vmem:[#allocation3 + $0x70] sm:$0xff] %v1132
  %1158 = vst [vmem:[#allocation3 + $0x78] sm:$0xff] %v1053
  %1159 = vst [vmem:[#allocation3 + $0x80] sm:$0xff] %v1094
  %1160 = vst [vmem:[#allocation3 + $0x88] sm:$0xff] %v1135
  %1161 = vst [vmem:[#allocation3 + $0x90] sm:$0xff] %v1056
  %1162 = vst [vmem:[#allocation3 + $0x98] sm:$0xff] %v1097
  %1163 = vst [vmem:[#allocation3 + $0xa0] sm:$0xff] %v1138
  %1164 = vst [vmem:[#allocation3 + $0xa8] sm:$0xff] %v1059
  %1165 = vst [vmem:[#allocation3 + $0xb0] sm:$0xff] %v1100
  %1166 = vst [vmem:[#allocation3 + $0xb8] sm:$0xff] %v1141
  %v1167 = vld [vmem:[%s6] sm:$0xff]
  %v1168 = vld [vmem:[%s6 + $0x8] sm:$0xff]
  %v1169 = vld [vmem:[%s6 + $0x10] sm:$0xff]
  %v1170 = vld [vmem:[%s6 + $0x18] sm:$0xff]
  %v1171 = vld [vmem:[%s6 + $0x20] sm:$0xff]
  %v1172 = vld [vmem:[%s6 + $0x28] sm:$0xff]
  %v1173 = vld [vmem:[%s6 + $0x30] sm:$0xff]
  %v1174 = vld [vmem:[%s6 + $0x38] sm:$0xff]
  %v1175 = vld [vmem:[%s6 + $0x40] sm:$0xff]
  %v1176 = vld [vmem:[%s6 + $0x48] sm:$0xff]
  %v1177 = vld [vmem:[%s6 + $0x50] sm:$0xff]
  %v1178 = vld [vmem:[%s6 + $0x58] sm:$0xff]
  %v1179 = vld [vmem:[%s6 + $0x60] sm:$0xff]
  %v1180 = vld [vmem:[%s6 + $0x68] sm:$0xff]
  %v1181 = vld [vmem:[%s6 + $0x70] sm:$0xff]
  %v1182 = vld [vmem:[%s6 + $0x78] sm:$0xff]
  %v1183 = vld [vmem:[%s6 + $0x80] sm:$0xff]
  %v1184 = vld [vmem:[%s6 + $0x88] sm:$0xff]
  %v1185 = vld [vmem:[%s6 + $0x90] sm:$0xff]
  %v1186 = vld [vmem:[%s6 + $0x98] sm:$0xff]
  %v1187 = vld [vmem:[%s6 + $0xa0] sm:$0xff]
  %v1188 = vld [vmem:[%s6 + $0xa8] sm:$0xff]
  %v1189 = vld [vmem:[%s6 + $0xb0] sm:$0xff]
  %v1190 = vld [vmem:[%s6 + $0xb8] sm:$0xff]
  %v1191 = vld [vmem:[%s6 + $0xc0] sm:$0xff]
  %v1192 = vld [vmem:[%s6 + $0xc8] sm:$0xff]
  %v1193 = vld [vmem:[%s6 + $0xd0] sm:$0xff]
  %v1194 = vld [vmem:[%s6 + $0xd8] sm:$0xff]
  %v1195 = vld [vmem:[%s6 + $0xe0] sm:$0xff]
  %v1196 = vld [vmem:[%s6 + $0xe8] sm:$0xff]
  %v1197 = vld [vmem:[%s6 + $0xf0] sm:$0xff]
  %v1198 = vld [vmem:[%s6 + $0xf8] sm:$0xff]
  %v1199 = vld [vmem:[%s6 + $0x100] sm:$0xff]
  %v1200 = vld [vmem:[%s6 + $0x108] sm:$0xff]
  %v1201 = vld [vmem:[%s6 + $0x110] sm:$0xff]
  %v1202 = vld [vmem:[%s6 + $0x118] sm:$0xff]
  %v1203 = vld [vmem:[%s6 + $0x120] sm:$0xff]
  %v1204 = vld [vmem:[%s6 + $0x128] sm:$0xff]
  %v1205 = vld [vmem:[%s6 + $0x130] sm:$0xff]
  %v1206 = vld [vmem:[%s6 + $0x138] sm:$0xff]
  %v1207 = vld [vmem:[%s6 + $0x140] sm:$0xff]
  %v1208 = vld [vmem:[%s6 + $0x148] sm:$0xff]
  %v1209 = vld [vmem:[%s6 + $0x150] sm:$0xff]
  %v1210 = vld [vmem:[%s6 + $0x158] sm:$0xff]
  %v1211 = vld [vmem:[%s6 + $0x160] sm:$0xff]
  %v1212 = vld [vmem:[%s6 + $0x168] sm:$0xff]
  %v1213 = vld [vmem:[%s6 + $0x170] sm:$0xff]
  %v1214 = vld [vmem:[%s6 + $0x178] sm:$0xff]
  %v1215 = vld [vmem:[%s8] sm:$0x1]
  %v1217 = vperm.slane %v1215, 0
  %v1219 = vld [vmem:[#allocation3] sm:$0xff]
  %v1220 = vld [vmem:[#allocation3 + $0x8] sm:$0xff]
  %v1221 = vld [vmem:[#allocation3 + $0x10] sm:$0xff]
  %1222 = vmatpush.msra.mxu0 %v1212
  %1223 = vmatpush.msra.mxu0 %v1209
  %1224 = vmatpush.msra.mxu0 %v1206
  %1225 = vmatpush.msra.mxu0 %v1203
  %1226 = vmatpush.msra.mxu0 %v1200
  %1227 = vmatpush.msra.mxu0 %v1197
  %1228 = vmatpush.msra.mxu0 %v1194
  %1229 = vmatpush.msra.mxu0 %v1191
  %1230 = vmatpush.msra.mxu0 %v1188
  %1231 = vmatpush.msra.mxu0 %v1185
  %1232 = vmatpush.msra.mxu0 %v1182
  %1233 = vmatpush.msra.mxu0 %v1179
  %1234 = vmatpush.msra.mxu0 %v1176
  %1235 = vmatpush.msra.mxu0 %v1173
  %1236 = vmatpush.msra.mxu0 %v1170
  %1237 = vmatpush.msra.mxu0 %v1167
  %1238 = vmatmul.f32.gmra.mxu0 0.0
  %v1239 = vpop.f32.mrf.mxu0
  %v1240 = vadd.f32 0.0, %v1239
  %1241 = vdwg.mxu0
  %1242 = vmatpush.msra.mxu0 %v1213
  %1243 = vmatpush.msra.mxu0 %v1210
  %1244 = vmatpush.msra.mxu0 %v1207
  %1245 = vmatpush.msra.mxu0 %v1204
  %1246 = vmatpush.msra.mxu0 %v1201
  %1247 = vmatpush.msra.mxu0 %v1198
  %1248 = vmatpush.msra.mxu0 %v1195
  %1249 = vmatpush.msra.mxu0 %v1192
  %1250 = vmatpush.msra.mxu0 %v1189
  %1251 = vmatpush.msra.mxu0 %v1186
  %1252 = vmatpush.msra.mxu0 %v1183
  %1253 = vmatpush.msra.mxu0 %v1180
  %1254 = vmatpush.msra.mxu0 %v1177
  %1255 = vmatpush.msra.mxu0 %v1174
  %1256 = vmatpush.msra.mxu0 %v1171
  %1257 = vmatpush.msra.mxu0 %v1168
  %1258 = vmatmul.f32.gmra.mxu0 0.0
  %v1259 = vpop.f32.mrf.mxu0
  %v1260 = vadd.f32 0.0, %v1259
  %1261 = vdwg.mxu0
  %1262 = vmatpush.msra.mxu0 %v1214
  %1263 = vmatpush.msra.mxu0 %v1211
  %1264 = vmatpush.msra.mxu0 %v1208
  %1265 = vmatpush.msra.mxu0 %v1205
  %1266 = vmatpush.msra.mxu0 %v1202
  %1267 = vmatpush.msra.mxu0 %v1199
  %1268 = vmatpush.msra.mxu0 %v1196
  %1269 = vmatpush.msra.mxu0 %v1193
  %1270 = vmatpush.msra.mxu0 %v1190
  %1271 = vmatpush.msra.mxu0 %v1187
  %1272 = vmatpush.msra.mxu0 %v1184
  %1273 = vmatpush.msra.mxu0 %v1181
  %1274 = vmatpush.msra.mxu0 %v1178
  %1275 = vmatpush.msra.mxu0 %v1175
  %1276 = vmatpush.msra.mxu0 %v1172
  %1277 = vmatpush.msra.mxu0 %v1169
  %1278 = vmatmul.f32.gmra.mxu0 0.0
  %v1279 = vpop.f32.mrf.mxu0
  %v1280 = vadd.f32 0.0, %v1279
  %1281 = vdwg.mxu0
  %v1282 = vadd.f32 %v1219, %v1240
  %v1283 = vmul.f32 %v1282, 0.5
  %v1284 = vtanh.pop %v1283
  %v1285 = vadd.f32 %v1284, 1.0
  %v1286 = vmul.f32 %v1285, 0.5
  %v1287 = vadd.f32 %v1220, %v1260
  %v1288 = vmul.f32 %v1287, 0.5
  %v1289 = vtanh.pop %v1288
  %v1290 = vadd.f32 %v1289, 1.0
  %v1291 = vmul.f32 %v1290, 0.5
  %v1292 = vadd.f32 %v1280, %v1217
  %v1293 = vmul.f32 %v1286, %v1292
  %v1294 = vadd.f32 %v1221, %v1293
  %v1295 = vtanh.pop %v1294
  %v1296 = vsub.f32 1.0, %v1291
  %v1297 = vmul.f32 %v1296, %v1295
  %v1298 = vmul.f32 %v1291, 0.0
  %v1299 = vadd.f32 %v1297, %v1298
  %v1300 = vld [vmem:[#allocation3 + $0x18] sm:$0xff]
  %v1301 = vld [vmem:[#allocation3 + $0x20] sm:$0xff]
  %v1302 = vld [vmem:[#allocation3 + $0x28] sm:$0xff]
  %1303 = vmatpush.msra.mxu0 %v1212
  %1304 = vmatpush.msra.mxu0 %v1209
  %1305 = vmatpush.msra.mxu0 %v1206
  %1306 = vmatpush.msra.mxu0 %v1203
  %1307 = vmatpush.msra.mxu0 %v1200
  %1308 = vmatpush.msra.mxu0 %v1197
  %1309 = vmatpush.msra.mxu0 %v1194
  %1310 = vmatpush.msra.mxu0 %v1191
  %1311 = vmatpush.msra.mxu0 %v1188
  %1312 = vmatpush.msra.mxu0 %v1185
  %1313 = vmatpush.msra.mxu0 %v1182
  %1314 = vmatpush.msra.mxu0 %v1179
  %1315 = vmatpush.msra.mxu0 %v1176
  %1316 = vmatpush.msra.mxu0 %v1173
  %1317 = vmatpush.msra.mxu0 %v1170
  %1318 = vmatpush.msra.mxu0 %v1167
  %1319 = vmatmul.f32.gmra.mxu0 %v1299
  %v1320 = vpop.f32.mrf.mxu0
  %v1321 = vadd.f32 0.0, %v1320
  %1322 = vdwg.mxu0
  %1323 = vmatpush.msra.mxu0 %v1213
  %1324 = vmatpush.msra.mxu0 %v1210
  %1325 = vmatpush.msra.mxu0 %v1207
  %1326 = vmatpush.msra.mxu0 %v1204
  %1327 = vmatpush.msra.mxu0 %v1201
  %1328 = vmatpush.msra.mxu0 %v1198
  %1329 = vmatpush.msra.mxu0 %v1195
  %1330 = vmatpush.msra.mxu0 %v1192
  %1331 = vmatpush.msra.mxu0 %v1189
  %1332 = vmatpush.msra.mxu0 %v1186
  %1333 = vmatpush.msra.mxu0 %v1183
  %1334 = vmatpush.msra.mxu0 %v1180
  %1335 = vmatpush.msra.mxu0 %v1177
  %1336 = vmatpush.msra.mxu0 %v1174
  %1337 = vmatpush.msra.mxu0 %v1171
  %1338 = vmatpush.msra.mxu0 %v1168
  %1339 = vmatmul.f32.gmra.mxu0 %v1299
  %v1340 = vpop.f32.mrf.mxu0
  %v1341 = vadd.f32 0.0, %v1340
  %1342 = vdwg.mxu0
  %1343 = vmatpush.msra.mxu0 %v1214
  %1344 = vmatpush.msra.mxu0 %v1211
  %1345 = vmatpush.msra.mxu0 %v1208
  %1346 = vmatpush.msra.mxu0 %v1205
  %1347 = vmatpush.msra.mxu0 %v1202
  %1348 = vmatpush.msra.mxu0 %v1199
  %1349 = vmatpush.msra.mxu0 %v1196
  %1350 = vmatpush.msra.mxu0 %v1193
  %1351 = vmatpush.msra.mxu0 %v1190
  %1352 = vmatpush.msra.mxu0 %v1187
  %1353 = vmatpush.msra.mxu0 %v1184
  %1354 = vmatpush.msra.mxu0 %v1181
  %1355 = vmatpush.msra.mxu0 %v1178
  %1356 = vmatpush.msra.mxu0 %v1175
  %1357 = vmatpush.msra.mxu0 %v1172
  %1358 = vmatpush.msra.mxu0 %v1169
  %1359 = vmatmul.f32.gmra.mxu0 %v1299
  %v1360 = vpop.f32.mrf.mxu0
  %v1361 = vadd.f32 0.0, %v1360
  %1362 = vdwg.mxu0
  %v1363 = vadd.f32 %v1300, %v1321
  %v1364 = vmul.f32 %v1363, 0.5
  %v1365 = vtanh.pop %v1364
  %v1366 = vadd.f32 %v1365, 1.0
  %v1367 = vmul.f32 %v1366, 0.5
  %v1368 = vadd.f32 %v1301, %v1341
  %v1369 = vmul.f32 %v1368, 0.5
  %v1370 = vtanh.pop %v1369
  %v1371 = vadd.f32 %v1370, 1.0
  %v1372 = vmul.f32 %v1371, 0.5
  %v1373 = vadd.f32 %v1361, %v1217
  %v1374 = vmul.f32 %v1367, %v1373
  %v1375 = vadd.f32 %v1302, %v1374
  %v1376 = vtanh.pop %v1375
  %v1377 = vsub.f32 1.0, %v1372
  %v1378 = vmul.f32 %v1377, %v1376
  %v1379 = vmul.f32 %v1372, %v1299
  %v1380 = vadd.f32 %v1378, %v1379
  %v1381 = vld [vmem:[#allocation3 + $0x30] sm:$0xff]
  %v1382 = vld [vmem:[#allocation3 + $0x38] sm:$0xff]
  %v1383 = vld [vmem:[#allocation3 + $0x40] sm:$0xff]
  %1384 = vmatpush.msra.mxu0 %v1212
  %1385 = vmatpush.msra.mxu0 %v1209
  %1386 = vmatpush.msra.mxu0 %v1206
  %1387 = vmatpush.msra.mxu0 %v1203
  %1388 = vmatpush.msra.mxu0 %v1200
  %1389 = vmatpush.msra.mxu0 %v1197
  %1390 = vmatpush.msra.mxu0 %v1194
  %1391 = vmatpush.msra.mxu0 %v1191
  %1392 = vmatpush.msra.mxu0 %v1188
  %1393 = vmatpush.msra.mxu0 %v1185
  %1394 = vmatpush.msra.mxu0 %v1182
  %1395 = vmatpush.msra.mxu0 %v1179
  %1396 = vmatpush.msra.mxu0 %v1176
  %1397 = vmatpush.msra.mxu0 %v1173
  %1398 = vmatpush.msra.mxu0 %v1170
  %1399 = vmatpush.msra.mxu0 %v1167
  %1400 = vmatmul.f32.gmra.mxu0 %v1380
  %v1401 = vpop.f32.mrf.mxu0
  %v1402 = vadd.f32 0.0, %v1401
  %1403 = vdwg.mxu0
  %1404 = vmatpush.msra.mxu0 %v1213
  %1405 = vmatpush.msra.mxu0 %v1210
  %1406 = vmatpush.msra.mxu0 %v1207
  %1407 = vmatpush.msra.mxu0 %v1204
  %1408 = vmatpush.msra.mxu0 %v1201
  %1409 = vmatpush.msra.mxu0 %v1198
  %1410 = vmatpush.msra.mxu0 %v1195
  %1411 = vmatpush.msra.mxu0 %v1192
  %1412 = vmatpush.msra.mxu0 %v1189
  %1413 = vmatpush.msra.mxu0 %v1186
  %1414 = vmatpush.msra.mxu0 %v1183
  %1415 = vmatpush.msra.mxu0 %v1180
  %1416 = vmatpush.msra.mxu0 %v1177
  %1417 = vmatpush.msra.mxu0 %v1174
  %1418 = vmatpush.msra.mxu0 %v1171
  %1419 = vmatpush.msra.mxu0 %v1168
  %1420 = vmatmul.f32.gmra.mxu0 %v1380
  %v1421 = vpop.f32.mrf.mxu0
  %v1422 = vadd.f32 0.0, %v1421
  %1423 = vdwg.mxu0
  %1424 = vmatpush.msra.mxu0 %v1214
  %1425 = vmatpush.msra.mxu0 %v1211
  %1426 = vmatpush.msra.mxu0 %v1208
  %1427 = vmatpush.msra.mxu0 %v1205
  %1428 = vmatpush.msra.mxu0 %v1202
  %1429 = vmatpush.msra.mxu0 %v1199
  %1430 = vmatpush.msra.mxu0 %v1196
  %1431 = vmatpush.msra.mxu0 %v1193
  %1432 = vmatpush.msra.mxu0 %v1190
  %1433 = vmatpush.msra.mxu0 %v1187
  %1434 = vmatpush.msra.mxu0 %v1184
  %1435 = vmatpush.msra.mxu0 %v1181
  %1436 = vmatpush.msra.mxu0 %v1178
  %1437 = vmatpush.msra.mxu0 %v1175
  %1438 = vmatpush.msra.mxu0 %v1172
  %1439 = vmatpush.msra.mxu0 %v1169
  %1440 = vmatmul.f32.gmra.mxu0 %v1380
  %v1441 = vpop.f32.mrf.mxu0
  %v1442 = vadd.f32 0.0, %v1441
  %1443 = vdwg.mxu0
  %v1444 = vadd.f32 %v1381, %v1402
  %v1445 = vmul.f32 %v1444, 0.5
  %v1446 = vtanh.pop %v1445
  %v1447 = vadd.f32 %v1446, 1.0
  %v1448 = vmul.f32 %v1447, 0.5
  %v1449 = vadd.f32 %v1382, %v1422
  %v1450 = vmul.f32 %v1449, 0.5
  %v1451 = vtanh.pop %v1450
  %v1452 = vadd.f32 %v1451, 1.0
  %v1453 = vmul.f32 %v1452, 0.5
  %v1454 = vadd.f32 %v1442, %v1217
  %v1455 = vmul.f32 %v1448, %v1454
  %v1456 = vadd.f32 %v1383, %v1455
  %v1457 = vtanh.pop %v1456
  %v1458 = vsub.f32 1.0, %v1453
  %v1459 = vmul.f32 %v1458, %v1457
  %v1460 = vmul.f32 %v1453, %v1380
  %v1461 = vadd.f32 %v1459, %v1460
  %v1462 = vld [vmem:[#allocation3 + $0x48] sm:$0xff]
  %v1463 = vld [vmem:[#allocation3 + $0x50] sm:$0xff]
  %v1464 = vld [vmem:[#allocation3 + $0x58] sm:$0xff]
  %1465 = vmatpush.msra.mxu0 %v1212
  %1466 = vmatpush.msra.mxu0 %v1209
  %1467 = vmatpush.msra.mxu0 %v1206
  %1468 = vmatpush.msra.mxu0 %v1203
  %1469 = vmatpush.msra.mxu0 %v1200
  %1470 = vmatpush.msra.mxu0 %v1197
  %1471 = vmatpush.msra.mxu0 %v1194
  %1472 = vmatpush.msra.mxu0 %v1191
  %1473 = vmatpush.msra.mxu0 %v1188
  %1474 = vmatpush.msra.mxu0 %v1185
  %1475 = vmatpush.msra.mxu0 %v1182
  %1476 = vmatpush.msra.mxu0 %v1179
  %1477 = vmatpush.msra.mxu0 %v1176
  %1478 = vmatpush.msra.mxu0 %v1173
  %1479 = vmatpush.msra.mxu0 %v1170
  %1480 = vmatpush.msra.mxu0 %v1167
  %1481 = vmatmul.f32.gmra.mxu0 %v1461
  %v1482 = vpop.f32.mrf.mxu0
  %v1483 = vadd.f32 0.0, %v1482
  %1484 = vdwg.mxu0
  %1485 = vmatpush.msra.mxu0 %v1213
  %1486 = vmatpush.msra.mxu0 %v1210
  %1487 = vmatpush.msra.mxu0 %v1207
  %1488 = vmatpush.msra.mxu0 %v1204
  %1489 = vmatpush.msra.mxu0 %v1201
  %1490 = vmatpush.msra.mxu0 %v1198
  %1491 = vmatpush.msra.mxu0 %v1195
  %1492 = vmatpush.msra.mxu0 %v1192
  %1493 = vmatpush.msra.mxu0 %v1189
  %1494 = vmatpush.msra.mxu0 %v1186
  %1495 = vmatpush.msra.mxu0 %v1183
  %1496 = vmatpush.msra.mxu0 %v1180
  %1497 = vmatpush.msra.mxu0 %v1177
  %1498 = vmatpush.msra.mxu0 %v1174
  %1499 = vmatpush.msra.mxu0 %v1171
  %1500 = vmatpush.msra.mxu0 %v1168
  %1501 = vmatmul.f32.gmra.mxu0 %v1461
  %v1502 = vpop.f32.mrf.mxu0
  %v1503 = vadd.f32 0.0, %v1502
  %1504 = vdwg.mxu0
  %1505 = vmatpush.msra.mxu0 %v1214
  %1506 = vmatpush.msra.mxu0 %v1211
  %1507 = vmatpush.msra.mxu0 %v1208
  %1508 = vmatpush.msra.mxu0 %v1205
  %1509 = vmatpush.msra.mxu0 %v1202
  %1510 = vmatpush.msra.mxu0 %v1199
  %1511 = vmatpush.msra.mxu0 %v1196
  %1512 = vmatpush.msra.mxu0 %v1193
  %1513 = vmatpush.msra.mxu0 %v1190
  %1514 = vmatpush.msra.mxu0 %v1187
  %1515 = vmatpush.msra.mxu0 %v1184
  %1516 = vmatpush.msra.mxu0 %v1181
  %1517 = vmatpush.msra.mxu0 %v1178
  %1518 = vmatpush.msra.mxu0 %v1175
  %1519 = vmatpush.msra.mxu0 %v1172
  %1520 = vmatpush.msra.mxu0 %v1169
  %1521 = vmatmul.f32.gmra.mxu0 %v1461
  %v1522 = vpop.f32.mrf.mxu0
  %v1523 = vadd.f32 0.0, %v1522
  %1524 = vdwg.mxu0
  %v1525 = vadd.f32 %v1462, %v1483
  %v1526 = vmul.f32 %v1525, 0.5
  %v1527 = vtanh.pop %v1526
  %v1528 = vadd.f32 %v1527, 1.0
  %v1529 = vmul.f32 %v1528, 0.5
  %v1530 = vadd.f32 %v1463, %v1503
  %v1531 = vmul.f32 %v1530, 0.5
  %v1532 = vtanh.pop %v1531
  %v1533 = vadd.f32 %v1532, 1.0
  %v1534 = vmul.f32 %v1533, 0.5
  %v1535 = vadd.f32 %v1523, %v1217
  %v1536 = vmul.f32 %v1529, %v1535
  %v1537 = vadd.f32 %v1464, %v1536
  %v1538 = vtanh.pop %v1537
  %v1539 = vsub.f32 1.0, %v1534
  %v1540 = vmul.f32 %v1539, %v1538
  %v1541 = vmul.f32 %v1534, %v1461
  %v1542 = vadd.f32 %v1540, %v1541
  %v1543 = vld [vmem:[#allocation3 + $0x60] sm:$0xff]
  %v1544 = vld [vmem:[#allocation3 + $0x68] sm:$0xff]
  %v1545 = vld [vmem:[#allocation3 + $0x70] sm:$0xff]
  %1546 = vmatpush.msra.mxu0 %v1212
  %1547 = vmatpush.msra.mxu0 %v1209
  %1548 = vmatpush.msra.mxu0 %v1206
  %1549 = vmatpush.msra.mxu0 %v1203
  %1550 = vmatpush.msra.mxu0 %v1200
  %1551 = vmatpush.msra.mxu0 %v1197
  %1552 = vmatpush.msra.mxu0 %v1194
  %1553 = vmatpush.msra.mxu0 %v1191
  %1554 = vmatpush.msra.mxu0 %v1188
  %1555 = vmatpush.msra.mxu0 %v1185
  %1556 = vmatpush.msra.mxu0 %v1182
  %1557 = vmatpush.msra.mxu0 %v1179
  %1558 = vmatpush.msra.mxu0 %v1176
  %1559 = vmatpush.msra.mxu0 %v1173
  %1560 = vmatpush.msra.mxu0 %v1170
  %1561 = vmatpush.msra.mxu0 %v1167
  %1562 = vmatmul.f32.gmra.mxu0 %v1542
  %v1563 = vpop.f32.mrf.mxu0
  %v1564 = vadd.f32 0.0, %v1563
  %1565 = vdwg.mxu0
  %1566 = vmatpush.msra.mxu0 %v1213
  %1567 = vmatpush.msra.mxu0 %v1210
  %1568 = vmatpush.msra.mxu0 %v1207
  %1569 = vmatpush.msra.mxu0 %v1204
  %1570 = vmatpush.msra.mxu0 %v1201
  %1571 = vmatpush.msra.mxu0 %v1198
  %1572 = vmatpush.msra.mxu0 %v1195
  %1573 = vmatpush.msra.mxu0 %v1192
  %1574 = vmatpush.msra.mxu0 %v1189
  %1575 = vmatpush.msra.mxu0 %v1186
  %1576 = vmatpush.msra.mxu0 %v1183
  %1577 = vmatpush.msra.mxu0 %v1180
  %1578 = vmatpush.msra.mxu0 %v1177
  %1579 = vmatpush.msra.mxu0 %v1174
  %1580 = vmatpush.msra.mxu0 %v1171
  %1581 = vmatpush.msra.mxu0 %v1168
  %1582 = vmatmul.f32.gmra.mxu0 %v1542
  %v1583 = vpop.f32.mrf.mxu0
  %v1584 = vadd.f32 0.0, %v1583
  %1585 = vdwg.mxu0
  %1586 = vmatpush.msra.mxu0 %v1214
  %1587 = vmatpush.msra.mxu0 %v1211
  %1588 = vmatpush.msra.mxu0 %v1208
  %1589 = vmatpush.msra.mxu0 %v1205
  %1590 = vmatpush.msra.mxu0 %v1202
  %1591 = vmatpush.msra.mxu0 %v1199
  %1592 = vmatpush.msra.mxu0 %v1196
  %1593 = vmatpush.msra.mxu0 %v1193
  %1594 = vmatpush.msra.mxu0 %v1190
  %1595 = vmatpush.msra.mxu0 %v1187
  %1596 = vmatpush.msra.mxu0 %v1184
  %1597 = vmatpush.msra.mxu0 %v1181
  %1598 = vmatpush.msra.mxu0 %v1178
  %1599 = vmatpush.msra.mxu0 %v1175
  %1600 = vmatpush.msra.mxu0 %v1172
  %1601 = vmatpush.msra.mxu0 %v1169
  %1602 = vmatmul.f32.gmra.mxu0 %v1542
  %v1603 = vpop.f32.mrf.mxu0
  %v1604 = vadd.f32 0.0, %v1603
  %1605 = vdwg.mxu0
  %v1606 = vadd.f32 %v1543, %v1564
  %v1607 = vmul.f32 %v1606, 0.5
  %v1608 = vtanh.pop %v1607
  %v1609 = vadd.f32 %v1608, 1.0
  %v1610 = vmul.f32 %v1609, 0.5
  %v1611 = vadd.f32 %v1544, %v1584
  %v1612 = vmul.f32 %v1611, 0.5
  %v1613 = vtanh.pop %v1612
  %v1614 = vadd.f32 %v1613, 1.0
  %v1615 = vmul.f32 %v1614, 0.5
  %v1616 = vadd.f32 %v1604, %v1217
  %v1617 = vmul.f32 %v1610, %v1616
  %v1618 = vadd.f32 %v1545, %v1617
  %v1619 = vtanh.pop %v1618
  %v1620 = vsub.f32 1.0, %v1615
  %v1621 = vmul.f32 %v1620, %v1619
  %v1622 = vmul.f32 %v1615, %v1542
  %v1623 = vadd.f32 %v1621, %v1622
  %v1624 = vld [vmem:[#allocation3 + $0x78] sm:$0xff]
  %v1625 = vld [vmem:[#allocation3 + $0x80] sm:$0xff]
  %v1626 = vld [vmem:[#allocation3 + $0x88] sm:$0xff]
  %1627 = vmatpush.msra.mxu0 %v1212
  %1628 = vmatpush.msra.mxu0 %v1209
  %1629 = vmatpush.msra.mxu0 %v1206
  %1630 = vmatpush.msra.mxu0 %v1203
  %1631 = vmatpush.msra.mxu0 %v1200
  %1632 = vmatpush.msra.mxu0 %v1197
  %1633 = vmatpush.msra.mxu0 %v1194
  %1634 = vmatpush.msra.mxu0 %v1191
  %1635 = vmatpush.msra.mxu0 %v1188
  %1636 = vmatpush.msra.mxu0 %v1185
  %1637 = vmatpush.msra.mxu0 %v1182
  %1638 = vmatpush.msra.mxu0 %v1179
  %1639 = vmatpush.msra.mxu0 %v1176
  %1640 = vmatpush.msra.mxu0 %v1173
  %1641 = vmatpush.msra.mxu0 %v1170
  %1642 = vmatpush.msra.mxu0 %v1167
  %1643 = vmatmul.f32.gmra.mxu0 %v1623
  %v1644 = vpop.f32.mrf.mxu0
  %v1645 = vadd.f32 0.0, %v1644
  %1646 = vdwg.mxu0
  %1647 = vmatpush.msra.mxu0 %v1213
  %1648 = vmatpush.msra.mxu0 %v1210
  %1649 = vmatpush.msra.mxu0 %v1207
  %1650 = vmatpush.msra.mxu0 %v1204
  %1651 = vmatpush.msra.mxu0 %v1201
  %1652 = vmatpush.msra.mxu0 %v1198
  %1653 = vmatpush.msra.mxu0 %v1195
  %1654 = vmatpush.msra.mxu0 %v1192
  %1655 = vmatpush.msra.mxu0 %v1189
  %1656 = vmatpush.msra.mxu0 %v1186
  %1657 = vmatpush.msra.mxu0 %v1183
  %1658 = vmatpush.msra.mxu0 %v1180
  %1659 = vmatpush.msra.mxu0 %v1177
  %1660 = vmatpush.msra.mxu0 %v1174
  %1661 = vmatpush.msra.mxu0 %v1171
  %1662 = vmatpush.msra.mxu0 %v1168
  %1663 = vmatmul.f32.gmra.mxu0 %v1623
  %v1664 = vpop.f32.mrf.mxu0
  %v1665 = vadd.f32 0.0, %v1664
  %1666 = vdwg.mxu0
  %1667 = vmatpush.msra.mxu0 %v1214
  %1668 = vmatpush.msra.mxu0 %v1211
  %1669 = vmatpush.msra.mxu0 %v1208
  %1670 = vmatpush.msra.mxu0 %v1205
  %1671 = vmatpush.msra.mxu0 %v1202
  %1672 = vmatpush.msra.mxu0 %v1199
  %1673 = vmatpush.msra.mxu0 %v1196
  %1674 = vmatpush.msra.mxu0 %v1193
  %1675 = vmatpush.msra.mxu0 %v1190
  %1676 = vmatpush.msra.mxu0 %v1187
  %1677 = vmatpush.msra.mxu0 %v1184
  %1678 = vmatpush.msra.mxu0 %v1181
  %1679 = vmatpush.msra.mxu0 %v1178
  %1680 = vmatpush.msra.mxu0 %v1175
  %1681 = vmatpush.msra.mxu0 %v1172
  %1682 = vmatpush.msra.mxu0 %v1169
  %1683 = vmatmul.f32.gmra.mxu0 %v1623
  %v1684 = vpop.f32.mrf.mxu0
  %v1685 = vadd.f32 0.0, %v1684
  %1686 = vdwg.mxu0
  %v1687 = vadd.f32 %v1624, %v1645
  %v1688 = vmul.f32 %v1687, 0.5
  %v1689 = vtanh.pop %v1688
  %v1690 = vadd.f32 %v1689, 1.0
  %v1691 = vmul.f32 %v1690, 0.5
  %v1692 = vadd.f32 %v1625, %v1665
  %v1693 = vmul.f32 %v1692, 0.5
  %v1694 = vtanh.pop %v1693
  %v1695 = vadd.f32 %v1694, 1.0
  %v1696 = vmul.f32 %v1695, 0.5
  %v1697 = vadd.f32 %v1685, %v1217
  %v1698 = vmul.f32 %v1691, %v1697
  %v1699 = vadd.f32 %v1626, %v1698
  %v1700 = vtanh.pop %v1699
  %v1701 = vsub.f32 1.0, %v1696
  %v1702 = vmul.f32 %v1701, %v1700
  %v1703 = vmul.f32 %v1696, %v1623
  %v1704 = vadd.f32 %v1702, %v1703
  %v1705 = vld [vmem:[#allocation3 + $0x90] sm:$0xff]
  %v1706 = vld [vmem:[#allocation3 + $0x98] sm:$0xff]
  %v1707 = vld [vmem:[#allocation3 + $0xa0] sm:$0xff]
  %1708 = vmatpush.msra.mxu0 %v1212
  %1709 = vmatpush.msra.mxu0 %v1209
  %1710 = vmatpush.msra.mxu0 %v1206
  %1711 = vmatpush.msra.mxu0 %v1203
  %1712 = vmatpush.msra.mxu0 %v1200
  %1713 = vmatpush.msra.mxu0 %v1197
  %1714 = vmatpush.msra.mxu0 %v1194
  %1715 = vmatpush.msra.mxu0 %v1191
  %1716 = vmatpush.msra.mxu0 %v1188
  %1717 = vmatpush.msra.mxu0 %v1185
  %1718 = vmatpush.msra.mxu0 %v1182
  %1719 = vmatpush.msra.mxu0 %v1179
  %1720 = vmatpush.msra.mxu0 %v1176
  %1721 = vmatpush.msra.mxu0 %v1173
  %1722 = vmatpush.msra.mxu0 %v1170
  %1723 = vmatpush.msra.mxu0 %v1167
  %1724 = vmatmul.f32.gmra.mxu0 %v1704
  %v1725 = vpop.f32.mrf.mxu0
  %v1726 = vadd.f32 0.0, %v1725
  %1727 = vdwg.mxu0
  %1728 = vmatpush.msra.mxu0 %v1213
  %1729 = vmatpush.msra.mxu0 %v1210
  %1730 = vmatpush.msra.mxu0 %v1207
  %1731 = vmatpush.msra.mxu0 %v1204
  %1732 = vmatpush.msra.mxu0 %v1201
  %1733 = vmatpush.msra.mxu0 %v1198
  %1734 = vmatpush.msra.mxu0 %v1195
  %1735 = vmatpush.msra.mxu0 %v1192
  %1736 = vmatpush.msra.mxu0 %v1189
  %1737 = vmatpush.msra.mxu0 %v1186
  %1738 = vmatpush.msra.mxu0 %v1183
  %1739 = vmatpush.msra.mxu0 %v1180
  %1740 = vmatpush.msra.mxu0 %v1177
  %1741 = vmatpush.msra.mxu0 %v1174
  %1742 = vmatpush.msra.mxu0 %v1171
  %1743 = vmatpush.msra.mxu0 %v1168
  %1744 = vmatmul.f32.gmra.mxu0 %v1704
  %v1745 = vpop.f32.mrf.mxu0
  %v1746 = vadd.f32 0.0, %v1745
  %1747 = vdwg.mxu0
  %1748 = vmatpush.msra.mxu0 %v1214
  %1749 = vmatpush.msra.mxu0 %v1211
  %1750 = vmatpush.msra.mxu0 %v1208
  %1751 = vmatpush.msra.mxu0 %v1205
  %1752 = vmatpush.msra.mxu0 %v1202
  %1753 = vmatpush.msra.mxu0 %v1199
  %1754 = vmatpush.msra.mxu0 %v1196
  %1755 = vmatpush.msra.mxu0 %v1193
  %1756 = vmatpush.msra.mxu0 %v1190
  %1757 = vmatpush.msra.mxu0 %v1187
  %1758 = vmatpush.msra.mxu0 %v1184
  %1759 = vmatpush.msra.mxu0 %v1181
  %1760 = vmatpush.msra.mxu0 %v1178
  %1761 = vmatpush.msra.mxu0 %v1175
  %1762 = vmatpush.msra.mxu0 %v1172
  %1763 = vmatpush.msra.mxu0 %v1169
  %1764 = vmatmul.f32.gmra.mxu0 %v1704
  %v1765 = vpop.f32.mrf.mxu0
  %v1766 = vadd.f32 0.0, %v1765
  %1767 = vdwg.mxu0
  %v1768 = vadd.f32 %v1705, %v1726
  %v1769 = vmul.f32 %v1768, 0.5
  %v1770 = vtanh.pop %v1769
  %v1771 = vadd.f32 %v1770, 1.0
  %v1772 = vmul.f32 %v1771, 0.5
  %v1773 = vadd.f32 %v1706, %v1746
  %v1774 = vmul.f32 %v1773, 0.5
  %v1775 = vtanh.pop %v1774
  %v1776 = vadd.f32 %v1775, 1.0
  %v1777 = vmul.f32 %v1776, 0.5
  %v1778 = vadd.f32 %v1766, %v1217
  %v1779 = vmul.f32 %v1772, %v1778
  %v1780 = vadd.f32 %v1707, %v1779
  %v1781 = vtanh.pop %v1780
  %v1782 = vsub.f32 1.0, %v1777
  %v1783 = vmul.f32 %v1782, %v1781
  %v1784 = vmul.f32 %v1777, %v1704
  %v1785 = vadd.f32 %v1783, %v1784
  %v1786 = vld [vmem:[#allocation3 + $0xa8] sm:$0xff]
  %v1787 = vld [vmem:[#allocation3 + $0xb0] sm:$0xff]
  %v1788 = vld [vmem:[#allocation3 + $0xb8] sm:$0xff]
  %1789 = vmatpush.msra.mxu0 %v1212
  %1790 = vmatpush.msra.mxu0 %v1209
  %1791 = vmatpush.msra.mxu0 %v1206
  %1792 = vmatpush.msra.mxu0 %v1203
  %1793 = vmatpush.msra.mxu0 %v1200
  %1794 = vmatpush.msra.mxu0 %v1197
  %1795 = vmatpush.msra.mxu0 %v1194
  %1796 = vmatpush.msra.mxu0 %v1191
  %1797 = vmatpush.msra.mxu0 %v1188
  %1798 = vmatpush.msra.mxu0 %v1185
  %1799 = vmatpush.msra.mxu0 %v1182
  %1800 = vmatpush.msra.mxu0 %v1179
  %1801 = vmatpush.msra.mxu0 %v1176
  %1802 = vmatpush.msra.mxu0 %v1173
  %1803 = vmatpush.msra.mxu0 %v1170
  %1804 = vmatpush.msra.mxu0 %v1167
  %1805 = vmatmul.f32.gmra.mxu0 %v1785
  %v1806 = vpop.f32.mrf.mxu0
  %v1807 = vadd.f32 0.0, %v1806
  %1808 = vdwg.mxu0
  %1809 = vmatpush.msra.mxu0 %v1213
  %1810 = vmatpush.msra.mxu0 %v1210
  %1811 = vmatpush.msra.mxu0 %v1207
  %1812 = vmatpush.msra.mxu0 %v1204
  %1813 = vmatpush.msra.mxu0 %v1201
  %1814 = vmatpush.msra.mxu0 %v1198
  %1815 = vmatpush.msra.mxu0 %v1195
  %1816 = vmatpush.msra.mxu0 %v1192
  %1817 = vmatpush.msra.mxu0 %v1189
  %1818 = vmatpush.msra.mxu0 %v1186
  %1819 = vmatpush.msra.mxu0 %v1183
  %1820 = vmatpush.msra.mxu0 %v1180
  %1821 = vmatpush.msra.mxu0 %v1177
  %1822 = vmatpush.msra.mxu0 %v1174
  %1823 = vmatpush.msra.mxu0 %v1171
  %1824 = vmatpush.msra.mxu0 %v1168
  %1825 = vmatmul.f32.gmra.mxu0 %v1785
  %v1826 = vpop.f32.mrf.mxu0
  %v1827 = vadd.f32 0.0, %v1826
  %1828 = vdwg.mxu0
  %1829 = vmatpush.msra.mxu0 %v1214
  %1830 = vmatpush.msra.mxu0 %v1211
  %1831 = vmatpush.msra.mxu0 %v1208
  %1832 = vmatpush.msra.mxu0 %v1205
  %1833 = vmatpush.msra.mxu0 %v1202
  %1834 = vmatpush.msra.mxu0 %v1199
  %1835 = vmatpush.msra.mxu0 %v1196
  %1836 = vmatpush.msra.mxu0 %v1193
  %1837 = vmatpush.msra.mxu0 %v1190
  %1838 = vmatpush.msra.mxu0 %v1187
  %1839 = vmatpush.msra.mxu0 %v1184
  %1840 = vmatpush.msra.mxu0 %v1181
  %1841 = vmatpush.msra.mxu0 %v1178
  %1842 = vmatpush.msra.mxu0 %v1175
  %1843 = vmatpush.msra.mxu0 %v1172
  %1844 = vmatpush.msra.mxu0 %v1169
  %1845 = vmatmul.f32.gmra.mxu0 %v1785
  %v1846 = vpop.f32.mrf.mxu0
  %v1847 = vadd.f32 0.0, %v1846
  %1848 = vdwg.mxu0
  %v1849 = vadd.f32 %v1786, %v1807
  %v1850 = vmul.f32 %v1849, 0.5
  %v1851 = vtanh.pop %v1850
  %v1852 = vadd.f32 %v1851, 1.0
  %v1853 = vmul.f32 %v1852, 0.5
  %v1854 = vadd.f32 %v1787, %v1827
  %v1855 = vmul.f32 %v1854, 0.5
  %v1856 = vtanh.pop %v1855
  %v1857 = vadd.f32 %v1856, 1.0
  %v1858 = vmul.f32 %v1857, 0.5
  %v1859 = vadd.f32 %v1847, %v1217
  %v1860 = vmul.f32 %v1853, %v1859
  %v1861 = vadd.f32 %v1788, %v1860
  %v1862 = vtanh.pop %v1861
  %v1863 = vsub.f32 1.0, %v1858
  %v1864 = vmul.f32 %v1863, %v1862
  %v1865 = vmul.f32 %v1858, %v1785
  %v1866 = vadd.f32 %v1864, %v1865
  %v1867 = vld [vmem:[%s9] sm:$0xff]
  %v1868 = vld [vmem:[%s9 + $0x8] sm:$0xff]
  %v1869 = vld [vmem:[%s9 + $0x10] sm:$0xff]
  %v1870 = vld [vmem:[%s9 + $0x18] sm:$0xff]
  %v1871 = vld [vmem:[%s9 + $0x20] sm:$0xff]
  %v1872 = vld [vmem:[%s9 + $0x28] sm:$0xff]
  %v1873 = vld [vmem:[%s9 + $0x30] sm:$0xff]
  %v1874 = vld [vmem:[%s9 + $0x38] sm:$0xff]
  %v1875 = vld [vmem:[%s9 + $0x40] sm:$0xff]
  %v1876 = vld [vmem:[%s9 + $0x48] sm:$0xff]
  %v1877 = vld [vmem:[%s9 + $0x50] sm:$0xff]
  %v1878 = vld [vmem:[%s9 + $0x58] sm:$0xff]
  %v1879 = vld [vmem:[%s9 + $0x60] sm:$0xff]
  %v1880 = vld [vmem:[%s9 + $0x68] sm:$0xff]
  %v1881 = vld [vmem:[%s9 + $0x70] sm:$0xff]
  %v1882 = vld [vmem:[%s9 + $0x78] sm:$0xff]
  %v1883 = vld [vmem:[%s9 + $0x80] sm:$0xff]
  %v1884 = vld [vmem:[%s9 + $0x88] sm:$0xff]
  %v1885 = vld [vmem:[%s9 + $0x90] sm:$0xff]
  %v1886 = vld [vmem:[%s9 + $0x98] sm:$0xff]
  %v1887 = vld [vmem:[%s9 + $0xa0] sm:$0xff]
  %v1888 = vld [vmem:[%s9 + $0xa8] sm:$0xff]
  %v1889 = vld [vmem:[%s9 + $0xb0] sm:$0xff]
  %v1890 = vld [vmem:[%s9 + $0xb8] sm:$0xff]
  %v1891 = vld [vmem:[%s9 + $0xc0] sm:$0xff]
  %v1892 = vld [vmem:[%s9 + $0xc8] sm:$0xff]
  %v1893 = vld [vmem:[%s9 + $0xd0] sm:$0xff]
  %v1894 = vld [vmem:[%s9 + $0xd8] sm:$0xff]
  %v1895 = vld [vmem:[%s9 + $0xe0] sm:$0xff]
  %v1896 = vld [vmem:[%s9 + $0xe8] sm:$0xff]
  %v1897 = vld [vmem:[%s9 + $0xf0] sm:$0xff]
  %v1898 = vld [vmem:[%s9 + $0xf8] sm:$0xff]
  %v1899 = vld [vmem:[%s10] sm:$0x1]
  %v1901 = vperm.slane %v1899, 0
  %1903 = vmatpush.msra.mxu0 %v1882
  %1904 = vmatpush.msra.mxu0 %v1881
  %1905 = vmatpush.msra.mxu0 %v1880
  %1906 = vmatpush.msra.mxu0 %v1879
  %1907 = vmatpush.msra.mxu0 %v1878
  %1908 = vmatpush.msra.mxu0 %v1877
  %1909 = vmatpush.msra.mxu0 %v1876
  %1910 = vmatpush.msra.mxu0 %v1875
  %1911 = vmatpush.msra.mxu0 %v1874
  %1912 = vmatpush.msra.mxu0 %v1873
  %1913 = vmatpush.msra.mxu0 %v1872
  %1914 = vmatpush.msra.mxu0 %v1871
  %1915 = vmatpush.msra.mxu0 %v1870
  %1916 = vmatpush.msra.mxu0 %v1869
  %1917 = vmatpush.msra.mxu0 %v1868
  %1918 = vmatpush.msra.mxu0 %v1867
  %1919 = vmatmul.f32.gmra.mxu0 %v954
  %v1920 = vpop.f32.mrf.mxu0
  %v1921 = vadd.f32 %v1901, %v1920
  %1922 = vdwg.mxu0
  %1923 = vmatpush.msra.mxu0 %v1898
  %1924 = vmatpush.msra.mxu0 %v1897
  %1925 = vmatpush.msra.mxu0 %v1896
  %1926 = vmatpush.msra.mxu0 %v1895
  %1927 = vmatpush.msra.mxu0 %v1894
  %1928 = vmatpush.msra.mxu0 %v1893
  %1929 = vmatpush.msra.mxu0 %v1892
  %1930 = vmatpush.msra.mxu0 %v1891
  %1931 = vmatpush.msra.mxu0 %v1890
  %1932 = vmatpush.msra.mxu0 %v1889
  %1933 = vmatpush.msra.mxu0 %v1888
  %1934 = vmatpush.msra.mxu0 %v1887
  %1935 = vmatpush.msra.mxu0 %v1886
  %1936 = vmatpush.msra.mxu0 %v1885
  %1937 = vmatpush.msra.mxu0 %v1884
  %1938 = vmatpush.msra.mxu0 %v1883
  %1939 = vmatmul.f32.gmra.mxu0 %v1866
  %v1940 = vpop.f32.mrf.mxu0
  %v1941 = vadd.f32 %v1921, %v1940
  %1942 = vdwg.mxu0
  %v1943 = vld [vmem:[%s11] sm:$0xff]
  %v1944 = vld [vmem:[%s11 + $0x8] sm:$0x3]
  %vm1945 = vcmask 80896
  %v1947 = vsel %vm1945, %v1941, 0
  %vm1949 = vcmask 1041408
  %v1951 = vsel %vm1949, %v1944, 0
  %1953 = vmatpush.msra.mxu0 0.0
  %1954 = vmatpush.msra.mxu0 0.0
  %1955 = vmatpush.msra.mxu0 0.0
  %1956 = vmatpush.msra.mxu0 0.0
  %1957 = vmatpush.msra.mxu0 0.0
  %1958 = vmatpush.msra.mxu0 0.0
  %1959 = vmatpush.msra.mxu0 0.0
  %1960 = vmatpush.msra.mxu0 0.0
  %1961 = vmatpush.msra.mxu0 0.0
  %1962 = vmatpush.msra.mxu0 0.0
  %1963 = vmatpush.msra.mxu0 0.0
  %1964 = vmatpush.msra.mxu0 0.0
  %1965 = vmatpush.msra.mxu0 0.0
  %1966 = vmatpush.msra.mxu0 0.0
  %1967 = vmatpush.msra.mxu0 %v1951
  %1968 = vmatpush.msra.mxu0 %v1943
  %1969 = vmatmul.f32.gmra.mxu0 %v1947
  %v1970 = vpop.f32.mrf.mxu0
  %v1971 = vadd.f32 0.0, %v1970
  %1972 = vdwg.mxu0
  %vm1973 = vcmask 130048
  %1974 = vst.msk [vmem:[%s13] sm:$0xff] %vm1973, %v1971
  %v1975 = vlaneseq
  %v1976 = vand.u32 %v1975, 127
  %v1977 = vmul.f32 %v1971, %v1971
  %v1978 = vsel %vm69, %v1977, 0.0
  %1979 = vadd.xlane.f32.xlu0 %v1978
  %v1980 = vpop.xlane.xlu0 %1979
  %v1981 = vadd.f32 %v1980, 0.001
  %vm1982 = vcmp.eq.s32.totalorder %v1976, 0
  %v1983 = vsel %vm1982, 1, 0
  %v1984 = vcvt.s32.f32 %v1983
  %v1985 = vmul.f32 %v1981, %v1984
  %v1986 = vadd.f32 %v1985, 0.0
  %1988 = vrot.lane.b32.xlu0 %v1971, 4
  %v1989 = vpop.permute.xlu0 %1988
  %v1991 = vmul.f32 %v1971, %v1989
  %1993 = vrot.lane.b32.xlu0 %v1991, 124
  %v1994 = vpop.permute.xlu0 %1993
  %v1996 = vsel %vm69, %v1994, 0.0
  %1997 = vadd.xlane.f32.xlu0 %v1996
  %v1998 = vpop.xlane.xlu0 %1997
  %vm1999 = vcmp.eq.s32.totalorder %v1976, 4
  %vm2000 = vcmp.eq.s32.totalorder %v1976, 1
  %vm2001 = vmor %vm1999, %vm2000
  %v2002 = vsel %vm2001, 1, 0
  %v2003 = vcvt.s32.f32 %v2002
  %v2004 = vmul.f32 %v1998, %v2003
  %v2005 = vadd.f32 %v1986, %v2004
  %2007 = vrot.lane.b32.xlu0 %v1977, 124
  %v2008 = vpop.permute.xlu0 %2007
  %v2010 = vsel %vm69, %v2008, 0.0
  %2011 = vadd.xlane.f32.xlu0 %v2010
  %v2012 = vpop.xlane.xlu0 %2011
  %v2013 = vadd.f32 %v2012, 0.001
  %vm2014 = vcmp.eq.s32.totalorder %v1976, 5
  %v2015 = vsel %vm2014, 1, 0
  %v2016 = vcvt.s32.f32 %v2015
  %v2017 = vmul.f32 %v2013, %v2016
  %v2018 = vadd.f32 %v2005, %v2017
  %2019 = vrot.lane.b32.xlu0 %v1971, 8
  %v2020 = vpop.permute.xlu0 %2019
  %v2022 = vmul.f32 %v1971, %v2020
  %2024 = vrot.lane.b32.xlu0 %v2022, 120
  %v2025 = vpop.permute.xlu0 %2024
  %v2027 = vsel %vm69, %v2025, 0.0
  %2028 = vadd.xlane.f32.xlu0 %v2027
  %v2029 = vpop.xlane.xlu0 %2028
  %vm2030 = vcmp.eq.s32.totalorder %v1976, 8
  %vm2031 = vcmp.eq.s32.totalorder %v1976, 2
  %vm2032 = vmor %vm2030, %vm2031
  %v2033 = vsel %vm2032, 1, 0
  %v2034 = vcvt.s32.f32 %v2033
  %v2035 = vmul.f32 %v2029, %v2034
  %v2036 = vadd.f32 %v2018, %v2035
  %2037 = vrot.lane.b32.xlu0 %v1991, 120
  %v2038 = vpop.permute.xlu0 %2037
  %v2040 = vsel %vm69, %v2038, 0.0
  %2041 = vadd.xlane.f32.xlu0 %v2040
  %v2042 = vpop.xlane.xlu0 %2041
  %vm2043 = vcmp.eq.s32.totalorder %v1976, 9
  %vm2044 = vcmp.eq.s32.totalorder %v1976, 6
  %vm2045 = vmor %vm2043, %vm2044
  %v2046 = vsel %vm2045, 1, 0
  %v2047 = vcvt.s32.f32 %v2046
  %v2048 = vmul.f32 %v2042, %v2047
  %v2049 = vadd.f32 %v2036, %v2048
  %2050 = vrot.lane.b32.xlu0 %v1977, 120
  %v2051 = vpop.permute.xlu0 %2050
  %v2053 = vsel %vm69, %v2051, 0.0
  %2054 = vadd.xlane.f32.xlu0 %v2053
  %v2055 = vpop.xlane.xlu0 %2054
  %v2056 = vadd.f32 %v2055, 0.001
  %vm2057 = vcmp.eq.s32.totalorder %v1976, 10
  %v2058 = vsel %vm2057, 1, 0
  %v2059 = vcvt.s32.f32 %v2058
  %v2060 = vmul.f32 %v2056, %v2059
  %v2061 = vadd.f32 %v2049, %v2060
  %2062 = vrot.lane.b32.xlu0 %v1971, 12
  %v2063 = vpop.permute.xlu0 %2062
  %v2065 = vmul.f32 %v1971, %v2063
  %2067 = vrot.lane.b32.xlu0 %v2065, 116
  %v2068 = vpop.permute.xlu0 %2067
  %v2070 = vsel %vm69, %v2068, 0.0
  %2071 = vadd.xlane.f32.xlu0 %v2070
  %v2072 = vpop.xlane.xlu0 %2071
  %vm2073 = vcmp.eq.s32.totalorder %v1976, 12
  %vm2074 = vcmp.eq.s32.totalorder %v1976, 3
  %vm2075 = vmor %vm2073, %vm2074
  %v2076 = vsel %vm2075, 1, 0
  %v2077 = vcvt.s32.f32 %v2076
  %v2078 = vmul.f32 %v2072, %v2077
  %v2079 = vadd.f32 %v2061, %v2078
  %2080 = vrot.lane.b32.xlu0 %v2022, 116
  %v2081 = vpop.permute.xlu0 %2080
  %v2083 = vsel %vm69, %v2081, 0.0
  %2084 = vadd.xlane.f32.xlu0 %v2083
  %v2085 = vpop.xlane.xlu0 %2084
  %vm2086 = vcmp.eq.s32.totalorder %v1976, 13
  %vm2087 = vcmp.eq.s32.totalorder %v1976, 7
  %vm2088 = vmor %vm2086, %vm2087
  %v2089 = vsel %vm2088, 1, 0
  %v2090 = vcvt.s32.f32 %v2089
  %v2091 = vmul.f32 %v2085, %v2090
  %v2092 = vadd.f32 %v2079, %v2091
  %2093 = vrot.lane.b32.xlu0 %v1991, 116
  %v2094 = vpop.permute.xlu0 %2093
  %v2096 = vsel %vm69, %v2094, 0.0
  %2097 = vadd.xlane.f32.xlu0 %v2096
  %v2098 = vpop.xlane.xlu0 %2097
  %vm2099 = vcmp.eq.s32.totalorder %v1976, 14
  %vm2100 = vcmp.eq.s32.totalorder %v1976, 11
  %vm2101 = vmor %vm2099, %vm2100
  %v2102 = vsel %vm2101, 1, 0
  %v2103 = vcvt.s32.f32 %v2102
  %v2104 = vmul.f32 %v2098, %v2103
  %v2105 = vadd.f32 %v2092, %v2104
  %2106 = vrot.lane.b32.xlu0 %v1977, 116
  %v2107 = vpop.permute.xlu0 %2106
  %v2109 = vsel %vm69, %v2107, 0.0
  %2110 = vadd.xlane.f32.xlu0 %v2109
  %v2111 = vpop.xlane.xlu0 %2110
  %v2112 = vadd.f32 %v2111, 0.001
  %vm2113 = vcmp.eq.s32.totalorder %v1976, 15
  %v2114 = vsel %vm2113, 1, 0
  %v2115 = vcvt.s32.f32 %v2114
  %v2116 = vmul.f32 %v2112, %v2115
  %v2117 = vadd.f32 %v2105, %v2116
  %2118 = vst.msk [vmem:[%s12] sm:$0xff] %vm1973, %v2117
  // Predicated region
  $region50: #{gru_net_diffusion_forward.1} parent=0 // pred_check
    _
  $region51: #{gru_net_diffusion_forward.1} parent=0 // pred_check_branch
    %2120 = sbr.rel (0) target = $region53
  $region52: #{gru_net_diffusion_forward.1} parent=0 // pred_region
    _
  $region53: #{gru_net_diffusion_forward.1} parent=0 // pred_fallthru
    _
  // Predicated region
  $region54: #{gru_net_diffusion_forward.1} parent=0 // pred_check
    _
  $region55: #{gru_net_diffusion_forward.1} parent=0 // pred_check_branch
    %2122 = sbr.rel (0) target = $region57
  $region56: #{gru_net_diffusion_forward.1} parent=0 // pred_region
    _
  $region57: #{gru_net_diffusion_forward.1} parent=0 // pred_fallthru
    _
  // Predicated region
  $region58: #{gru_net_diffusion_forward.1} parent=0 // pred_check
    _
  $region59: #{gru_net_diffusion_forward.1} parent=0 // pred_check_branch
    %2124 = sbr.rel (0) target = $region61
  $region60: #{gru_net_diffusion_forward.1} parent=0 // pred_region
    _
  $region61: #{gru_net_diffusion_forward.1} parent=0 // pred_fallthru
    _
  // Predicated region
  $region62: #{gru_net_diffusion_forward.1} parent=0 // pred_check
    _
  $region63: #{gru_net_diffusion_forward.1} parent=0 // pred_check_branch
    %2126 = sbr.rel (0) target = $region65
  $region64: #{gru_net_diffusion_forward.1} parent=0 // pred_region
    _
  $region65: #{gru_net_diffusion_forward.1} parent=0 // pred_fallthru
    _

</llo_original>
